<compile_context>
chip_gen: v6e
topology: v6e:2x2x1
jax: 0.10.0
libtpu: 0.0.40
codegen_flags: <defaults>
</compile_context>

<pallas_src>
import jax
import jax.numpy as jnp
import numpy as np
from jax import lax
from jax.experimental import pallas as pl
from jax.experimental.pallas import tpu as pltpu

KERNEL_SIZE = 7
PAD = 3  # padding for the 7x7 "same" conv


# --------------------------------------------------------------------------
# Kernel
# --------------------------------------------------------------------------
def cbam_kernel(x_ref, w1_ref, w2_ref, t_ref, o_ref):
    """One grid step over a lane-dense (Bt, C, H*W) slab.

    x_ref:  (Bt, C, HW)  input block (VMEM)
    w1_ref: (C, hidden)  = fc1.weight.T (VMEM)
    w2_ref: (hidden, C)  = fc2.weight.T (VMEM)
    t_ref:  (2*HW, HW)   Toeplitz matrix of the 7x7 spatial conv (VMEM)
    o_ref:  (Bt, C, HW)  output block (VMEM)
    """
    x = x_ref[...].astype(jnp.float32)                      # (Bt, C, HW)
    Bt = x.shape[0]

    # ---------------- Channel attention ----------------
    # AdaptiveAvg/MaxPool2d(1) == one lane-axis reduce over the flat HW dim.
    avg_c = jnp.mean(x, axis=2)                             # (Bt, C)
    max_c = jnp.max(x, axis=2)                              # (Bt, C)
    pools = jnp.concatenate([avg_c, max_c], axis=0)         # (2Bt, C)

    w1 = w1_ref[...].astype(jnp.float32)                    # (C, hidden)
    w2 = w2_ref[...].astype(jnp.float32)                    # (hidden, C)

    h = jnp.maximum(
        jnp.dot(pools, w1, preferred_element_type=jnp.float32,
                precision=lax.Precision.HIGHEST), 0.0)      # (2Bt, hidden) = relu(fc1)
    att = jnp.dot(h, w2, preferred_element_type=jnp.float32,
                  precision=lax.Precision.HIGHEST)          # (2Bt, C)      = fc2
    ca = jax.nn.sigmoid(att[:Bt] + att[Bt:])                # (Bt, C)

    # ---------------- Spatial attention ----------------
    scaled = x * ca[:, :, None]                             # (Bt, C, HW); dies after pools
    avg_s = jnp.mean(scaled, axis=1)                        # (Bt, HW)
    max_s = jnp.max(scaled, axis=1)                         # (Bt, HW)
    pooled = jnp.concatenate([avg_s, max_s], axis=1)        # (Bt, 2*HW)

    # 7x7 "same" conv over [avg|max] channels == one MXU matmul against the
    # precomputed Toeplitz matrix.
    sa = jax.nn.sigmoid(
        jnp.dot(pooled, t_ref[...], preferred_element_type=jnp.float32,
                precision=lax.Precision.HIGHEST))           # (Bt, HW)

    # Fused final write: x * channel_att * spatial_att, full-width store.
    o_ref[...] = (x * ca[:, :, None] * sa[:, None, :]).astype(o_ref.dtype)


# --------------------------------------------------------------------------
# Host-side helpers
# --------------------------------------------------------------------------
def _build_conv_matrix(sconv, H, W):
    """(2,7,7) conv taps -> (2*HW, HW) matrix T so that the padded 7x7
    cross-correlation over the stacked [avg|max] maps equals flat @ T."""
    sconv = np.asarray(sconv, dtype=np.float32)
    HW = H * W
    T = np.zeros((2 * HW, HW), dtype=np.float32)
    for c in range(2):
        for dy in range(KERNEL_SIZE):
            for dx in range(KERNEL_SIZE):
                w = float(sconv[c, dy, dx])
                if w == 0.0:
                    continue
                for y in range(H):
                    iy = y + dy - PAD
                    if not (0 <= iy < H):
                        continue
                    for xx in range(W):
                        ix = xx + dx - PAD
                        if 0 <= ix < W:
                            T[c * HW + iy * W + ix, y * W + xx] += w
    return jnp.asarray(T)


def _tpu_generation():
    try:
        kind = jax.devices()[0].device_kind.lower()
    except Exception:
        return None
    for g in (7, 6, 5, 4):
        if f"v{g}" in kind:
            return g
    return None


def _budget_for_generation(gen):
    """Returns (per-step VMEM budget, explicit vmem_limit_bytes, need-even-steps)."""
    if gen == 7:   # 64 MiB VMEM shared by 2 TensorCores
        return 20 << 20, 40 << 20, True
    if gen == 6:   # 1 TC, 128 MiB physical (32 MiB scoped default)
        return 24 << 20, 48 << 20, False
    # v5e and unknown generations: conservative.
    return 12 << 20, 24 << 20, False


def _pick_batch_tile(B, C, HW, itemsize, budget_bytes, *, even_steps=False):
    """Largest batch tile bt that divides B and fits the per-step budget.

    Working-set model:
      fixed : 2x-buffered Toeplitz matrix + tiny MLP weights
      per-b : 2x double-buffered input + 2x output slabs (device dtype)
              + ~3 f32 temporaries (x, scaled, fused store)
    With even_steps=True (v7x) prefer a bt whose grid-step count is even so
    the 'parallel' grid axis load-balances across the 2 TensorCores.
    """
    fixed = 2 * (2 * HW * HW * 4) + (4 << 10)
    per_b = C * HW
    per_batch_bytes = 4 * per_b * itemsize + 3 * per_b * 4
    if fixed + per_batch_bytes > budget_bytes:
        raise ValueError(
            f"one batch element needs ~{(fixed + per_batch_bytes) >> 20} MiB of VMEM, "
            f"over the {budget_bytes >> 20} MiB budget; tile over C or HW instead")
    best, best_even = 1, None
    for d in range(1, B + 1):
        if B % d:
            continue
        if fixed + d * per_batch_bytes > budget_bytes:
            continue
        best = max(best, d)
        if (B // d) % 2 == 0:
            best_even = d if best_even is None else max(best_even, d)
    if even_steps and best_even is not None:
        return best_even
    return best


# --------------------------------------------------------------------------
# Wrapper
# --------------------------------------------------------------------------
def cbam_attention(x, w1, w2, sconv, *, bt=None):
    """x: (B, C, H, W). w1: (C, hidden) = fc1.weight.T. w2: (C, hidden) = fc2.weight.
    sconv: (2, 7, 7) spatial conv weight (avg channel first)."""
    B, C, H, W = x.shape
    HW = H * W
    hidden = w1.shape[1]

    x_flat = x.reshape(B, C, HW)                       # lane-dense layout
    w2t = jnp.asarray(w2).T                            # (hidden, C): fc2 as a plain dot
    conv_mat = _build_conv_matrix(sconv, H, W)         # (2*HW, HW)

    budget, vmem_limit, even_steps = _budget_for_generation(_tpu_generation())
    if bt is None:
        bt = _pick_batch_tile(B, C, HW, jnp.dtype(x.dtype).itemsize, budget,
                              even_steps=even_steps)
    if B % bt:
        raise ValueError(f"batch tile {bt} must divide batch {B}")

    out_flat = pl.pallas_call(
        cbam_kernel,
        out_shape=jax.ShapeDtypeStruct((B, C, HW), x.dtype),
        grid=(B // bt,),
        in_specs=[
            pl.BlockSpec((bt, C, HW), lambda b: (b, 0, 0)),
            pl.BlockSpec((C, hidden), lambda b: (0, 0)),
            pl.BlockSpec((hidden, C), lambda b: (0, 0)),
            pl.BlockSpec((2 * HW, HW), lambda b: (0, 0)),
        ],
        out_specs=pl.BlockSpec((bt, C, HW), lambda b: (b, 0, 0)),
        compiler_params=pltpu.CompilerParams(
            dimension_semantics=("parallel",),
            vmem_limit_bytes=vmem_limit),
    )(x_flat, w1, w2t, conv_mat)
    return out_flat.reshape(B, C, H, W)


# --------------------------------------------------------------------------
# Pure-JAX reference (matches the PyTorch module semantics)
# --------------------------------------------------------------------------
def cbam_reference(x, w1, w2, sconv):
    avg_c = jnp.mean(x, axis=(2, 3), keepdims=True)     # (B, C, 1, 1)
    max_c = jnp.max(x, axis=(2, 3), keepdims=True)

    def mlp(v):
        h = jnp.einsum('bcij,ch->bhij', v, w1, precision=lax.Precision.HIGHEST)  # fc1
        h = jnp.maximum(h, 0.0)
        return jnp.einsum('bhij,ch->bcij', h, w2, precision=lax.Precision.HIGHEST)  # fc2

    ca = jax.nn.sigmoid(mlp(avg_c) + mlp(max_c))
    x1 = x * ca

    avg_s = jnp.mean(x1, axis=1, keepdims=True)
    max_s = jnp.max(x1, axis=1, keepdims=True)
    s = jnp.concatenate([avg_s, max_s], axis=1)          # (B, 2, H, W)
    sa = lax.conv_general_dilated(
        s, sconv[None], window_strides=(1, 1), padding=[(PAD, PAD), (PAD, PAD)],
        dimension_numbers=('NCHW', 'OIHW', 'NCHW'),
        precision=lax.Precision.HIGHEST)
    sa = jax.nn.sigmoid(sa)
    return x1 * sa


if __name__ == "__main__":
    B, C, H, W = 4, 32, 16, 16
    scaling = 16
    hidden = C // scaling                                # = 2

    key = jax.random.PRNGKey(0)
    k1, k2, k3, k4 = jax.random.split(key, 4)
    x = jax.random.normal(k1, (B, C, H, W), dtype=jnp.float32)
    # Deterministic synthetic weights (shapes from the nn.Module __init__).
    w1 = 0.1 * jax.random.normal(k2, (C, hidden), dtype=jnp.float32)      # fc1.weight.T
    w2 = 0.1 * jax.random.normal(k3, (C, hidden), dtype=jnp.float32)      # fc2.weight
    sconv = 0.1 * jax.random.normal(k4, (2, KERNEL_SIZE, KERNEL_SIZE), dtype=jnp.float32)

    out = jax.block_until_ready(cbam_attention(x, w1, w2, sconv))
    ref = cbam_reference(x, w1, w2, sconv)
    assert out.shape == (B, C, H, W)
    np.testing.assert_allclose(np.asarray(out), np.asarray(ref), rtol=2e-4, atol=2e-5)
    print("KERNEL_OK")
</pallas_src>

<mosaic_0001>
module attributes {stable_mosaic.version = 11 : i64} {
  func.func @cbam_kernel(%arg0: i32, %arg1: memref<4x32x256xf32, #tpu.memory_space<vmem>>, %arg2: memref<32x2xf32, #tpu.memory_space<vmem>>, %arg3: memref<2x32xf32, #tpu.memory_space<vmem>>, %arg4: memref<512x256xf32, #tpu.memory_space<vmem>>, %arg5: memref<4x32x256xf32, #tpu.memory_space<vmem>>) attributes {dimension_semantics = [#tpu.dimension_semantics<parallel>], iteration_bounds = array<i64: 1>, scalar_prefetch = 0 : i64, scratch_operands = 0 : i64, tpu.core_type = #tpu.core_type<tc>, window_params = [{transform_indices = @transform_0, window_bounds = array<i64: 4, 32, 256>}, {pipeline_mode = #tpu.pipeline_mode<synchronous>, transform_indices = @transform_1, window_bounds = array<i64: 32, 2>}, {pipeline_mode = #tpu.pipeline_mode<synchronous>, transform_indices = @transform_2, window_bounds = array<i64: 2, 32>}, {pipeline_mode = #tpu.pipeline_mode<synchronous>, transform_indices = @transform_3, window_bounds = array<i64: 512, 256>}, {transform_indices = @transform_4, window_bounds = array<i64: 4, 32, 256>}]} {
    %c0 = arith.constant 0 : index
    %c0_0 = arith.constant 0 : index
    %c0_1 = arith.constant 0 : index
    %0 = vector.load %arg1[%c0, %c0_0, %c0_1] : memref<4x32x256xf32, #tpu.memory_space<vmem>>, vector<4x32x256xf32>
    %cst = arith.constant dense<0.000000e+00> : vector<4x32xf32>
    %1 = vector.multi_reduction <add>, %0, %cst [2] : vector<4x32x256xf32> to vector<4x32xf32>
    %cst_2 = arith.constant 2.560000e+02 : f32
    %2 = vector.broadcast %cst_2 : f32 to vector<4x32xf32>
    %3 = arith.divf %1, %2 : vector<4x32xf32>
    %cst_3 = arith.constant dense<0xFF800000> : vector<4x32xf32>
    %4 = vector.multi_reduction <maximumf>, %0, %cst_3 [2] : vector<4x32x256xf32> to vector<4x32xf32>
    %5 = tpu.concatenate %3, %4 in 0 : vector<4x32xf32>, vector<4x32xf32> -> vector<8x32xf32>
    %c0_4 = arith.constant 0 : index
    %c0_5 = arith.constant 0 : index
    %6 = vector.load %arg2[%c0_4, %c0_5] : memref<32x2xf32, #tpu.memory_space<vmem>>, vector<32x2xf32>
    %c0_6 = arith.constant 0 : index
    %c0_7 = arith.constant 0 : index
    %7 = vector.load %arg3[%c0_6, %c0_7] : memref<2x32xf32, #tpu.memory_space<vmem>>, vector<2x32xf32>
    %cst_8 = arith.constant dense<0.000000e+00> : vector<8x2xf32>
    %8 = tpu.matmul %5, %6, %cst_8 {dimension_numbers = #tpu.dot_dimension_numbers<[1], [0], [0], [1], [0, 0, 1, 1], [], []>, precision = #tpu.contract_precision<fp32>} : vector<8x32xf32>, vector<32x2xf32>, vector<8x2xf32> -> vector<8x2xf32>
    %cst_9 = arith.constant 0.000000e+00 : f32
    %9 = vector.broadcast %cst_9 : f32 to vector<8x2xf32>
    %10 = arith.maximumf %8, %9 : vector<8x2xf32>
    %cst_10 = arith.constant dense<0.000000e+00> : vector<8x32xf32>
    %11 = tpu.matmul %10, %7, %cst_10 {dimension_numbers = #tpu.dot_dimension_numbers<[1], [0], [0], [1], [0, 0, 1, 1], [], []>, precision = #tpu.contract_precision<fp32>} : vector<8x2xf32>, vector<2x32xf32>, vector<8x32xf32> -> vector<8x32xf32>
    %12 = vector.extract_strided_slice %11 {offsets = [0, 0], sizes = [4, 32], strides = [1, 1]} : vector<8x32xf32> to vector<4x32xf32>
    %13 = vector.extract_strided_slice %11 {offsets = [4, 0], sizes = [4, 32], strides = [1, 1]} : vector<8x32xf32> to vector<4x32xf32>
    %14 = arith.addf %12, %13 : vector<4x32xf32>
    %15 = arith.negf %14 : vector<4x32xf32>
    %16 = math.exp %15 : vector<4x32xf32>
    %cst_11 = arith.constant 1.000000e+00 : f32
    %17 = vector.broadcast %cst_11 : f32 to vector<4x32xf32>
    %18 = arith.addf %17, %16 : vector<4x32xf32>
    %19 = arith.divf %17, %18 : vector<4x32xf32>
    %20 = vector.shape_cast %19 : vector<4x32xf32> to vector<4x32x1xf32>
    %21 = vector.broadcast %20 : vector<4x32x1xf32> to vector<4x32x256xf32>
    %22 = arith.mulf %0, %21 : vector<4x32x256xf32>
    %cst_12 = arith.constant dense<0.000000e+00> : vector<4x256xf32>
    %23 = vector.multi_reduction <add>, %22, %cst_12 [1] : vector<4x32x256xf32> to vector<4x256xf32>
    %cst_13 = arith.constant 3.200000e+01 : f32
    %24 = vector.broadcast %cst_13 : f32 to vector<4x256xf32>
    %25 = arith.divf %23, %24 : vector<4x256xf32>
    %cst_14 = arith.constant dense<0xFF800000> : vector<4x256xf32>
    %26 = vector.multi_reduction <maximumf>, %22, %cst_14 [1] : vector<4x32x256xf32> to vector<4x256xf32>
    %27 = tpu.concatenate %25, %26 in 1 : vector<4x256xf32>, vector<4x256xf32> -> vector<4x512xf32>
    %c0_15 = arith.constant 0 : index
    %c0_16 = arith.constant 0 : index
    %28 = vector.load %arg4[%c0_15, %c0_16] : memref<512x256xf32, #tpu.memory_space<vmem>>, vector<512x256xf32>
    %cst_17 = arith.constant dense<0.000000e+00> : vector<4x256xf32>
    %29 = tpu.matmul %27, %28, %cst_17 {dimension_numbers = #tpu.dot_dimension_numbers<[1], [0], [0], [1], [0, 0, 1, 1], [], []>, precision = #tpu.contract_precision<fp32>} : vector<4x512xf32>, vector<512x256xf32>, vector<4x256xf32> -> vector<4x256xf32>
    %30 = arith.negf %29 : vector<4x256xf32>
    %31 = math.exp %30 : vector<4x256xf32>
    %cst_18 = arith.constant 1.000000e+00 : f32
    %32 = vector.broadcast %cst_18 : f32 to vector<4x256xf32>
    %33 = arith.addf %32, %31 : vector<4x256xf32>
    %34 = arith.divf %32, %33 : vector<4x256xf32>
    %35 = vector.shape_cast %19 : vector<4x32xf32> to vector<4x32x1xf32>
    %36 = vector.broadcast %35 : vector<4x32x1xf32> to vector<4x32x256xf32>
    %37 = arith.mulf %0, %36 : vector<4x32x256xf32>
    %38 = vector.shape_cast %34 : vector<4x256xf32> to vector<4x1x256xf32>
    %39 = vector.broadcast %38 : vector<4x1x256xf32> to vector<4x32x256xf32>
    %40 = arith.mulf %37, %39 : vector<4x32x256xf32>
    %c0_19 = arith.constant 0 : index
    %c0_20 = arith.constant 0 : index
    %c0_21 = arith.constant 0 : index
    %41 = vector.load %arg5[%c0_19, %c0_20, %c0_21] : memref<4x32x256xf32, #tpu.memory_space<vmem>>, vector<4x32x256xf32>
    tpu.vector_store %arg5[%c0_19, %c0_20, %c0_21], %40 {strides = array<i32>} : memref<4x32x256xf32, #tpu.memory_space<vmem>>, vector<4x32x256xf32>,
    return
  }
  func.func @transform_0(%arg0: i32) -> (i32, i32, i32) {
    %c0_i32 = arith.constant 0 : i32
    %c0_i32_0 = arith.constant 0 : i32
    %c0_i32_1 = arith.constant 0 : i32
    return %arg0, %c0_i32, %c0_i32_0 : i32, i32, i32
  }
  func.func @transform_1(%arg0: i32) -> (i32, i32) {
    %c0_i32 = arith.constant 0 : i32
    %c0_i32_0 = arith.constant 0 : i32
    %c0_i32_1 = arith.constant 0 : i32
    return %c0_i32, %c0_i32_0 : i32, i32
  }
  func.func @transform_2(%arg0: i32) -> (i32, i32) {
    %c0_i32 = arith.constant 0 : i32
    %c0_i32_0 = arith.constant 0 : i32
    %c0_i32_1 = arith.constant 0 : i32
    return %c0_i32, %c0_i32_0 : i32, i32
  }
  func.func @transform_3(%arg0: i32) -> (i32, i32) {
    %c0_i32 = arith.constant 0 : i32
    %c0_i32_0 = arith.constant 0 : i32
    %c0_i32_1 = arith.constant 0 : i32
    return %c0_i32, %c0_i32_0 : i32, i32
  }
  func.func @transform_4(%arg0: i32) -> (i32, i32, i32) {
    %c0_i32 = arith.constant 0 : i32
    %c0_i32_0 = arith.constant 0 : i32
    %c0_i32_1 = arith.constant 0 : i32
    return %arg0, %c0_i32, %c0_i32_0 : i32, i32, i32
  }
}

</mosaic_0001>

<llo_original>
// kernel: tpu_custom_call.1
$region0: #{tpu_custom_call.1}
  #allocation0 [shape = 'u32[]', space=smem, size = 0x4, offset = 0x4, fixed_abs, tag = 'smem constant byte address 0x4 - core index']
  #allocation1 [shape = 'u32[144,128]{1,0:T(1,128)}', space=vmem, size = 0x12000, scoped, tag = 'internal scratch']
  %s0 = inlined_call_operand.hbm [shape: f32[4,32,256], index: 0, kind: input, shape index: {}]
  %s1 = inlined_call_operand.vmem [shape: f32[32,2], index: 1, kind: input, shape index: {}]
  %s2 = inlined_call_operand.vmem [shape: f32[2,32], index: 2, kind: input, shape index: {}]
  %s3 = inlined_call_operand.hbm [shape: f32[512,256], index: 3, kind: input, shape index: {}]
  %s4 = inlined_call_operand.hbm [shape: f32[4,32,256], index: 4, kind: output, shape index: {}]
  %s5 = sld [smem:[#allocation0]]
  $region34: #{tpu_custom_call.1} parent=0
    _
  %s7 = ssub.s32 1, %s5
  %s8 = scalar_select 0, %s7, %s5
  $region1: #{tpu_custom_call.1} parent=0
    #allocation2 [shape = 'u8[131072]{0}', space=vmem, size = 0x20000, scoped, tag = 'input window, operand 0, single buffered']
    #allocation3 [shape = 's32[1]{0}', space=sflag, size = 0x4, scoped, tag = 'scoped memory for tpu_custom_call.1']
    #allocation4 [shape = 's32[1]{0}', space=sflag, size = 0x4, scoped, tag = 'scoped memory for tpu_custom_call.1']
    #allocation5 [shape = 'u8[524288]{0}', space=vmem, size = 0x80000, scoped, tag = 'input window, operand 3, single buffered']
    #allocation6 [shape = 's32[1]{0}', space=sflag, size = 0x4, scoped, tag = 'scoped memory for tpu_custom_call.1']
    #allocation7 [shape = 'u8[131072]{0}', space=vmem, size = 0x20000, scoped, tag = 'output window, operand 0, single buffered']
    %9 = vsyncpa [#allocation3], 0
    %10 = vsyncpa [#allocation6], 0
    %11 = vsyncpa [#allocation4], 0
    // Predicated region
    $region2: #{tpu_custom_call.1} parent=1 // pred_check
      _
    $region3: #{tpu_custom_call.1} parent=1 // pred_check_branch
      %13 = sbr.rel (0) target = $region5
    $region4: #{tpu_custom_call.1} parent=1 // pred_region
      %s15 = ssub.s32 4096, 4096
      %16 = vsyncadd [#allocation3], %s15
      %s17 = sshll.u32 [#allocation2], 4
      %s18 = int_to_ptr.vmem [resolvable:$true] %s17
      %23 = dma.hbm_to_vmem [thread:$0]  %s0, 4096, %s18, [#allocation3], 256, 256, 16
    $region5: #{tpu_custom_call.1} parent=1 // pred_fallthru
      _
    // Predicated region
    $region6: #{tpu_custom_call.1} parent=1 // pred_check
      _
    $region7: #{tpu_custom_call.1} parent=1 // pred_check_branch
      %25 = sbr.rel (0) target = $region9
    $region8: #{tpu_custom_call.1} parent=1 // pred_region
      _
    $region9: #{tpu_custom_call.1} parent=1 // pred_fallthru
      _
    // Predicated region
    $region10: #{tpu_custom_call.1} parent=1 // pred_check
      _
    $region11: #{tpu_custom_call.1} parent=1 // pred_check_branch
      %27 = sbr.rel (0) target = $region13
    $region12: #{tpu_custom_call.1} parent=1 // pred_region
      _
    $region13: #{tpu_custom_call.1} parent=1 // pred_fallthru
      _
    // Predicated region
    $region14: #{tpu_custom_call.1} parent=1 // pred_check
      _
    $region15: #{tpu_custom_call.1} parent=1 // pred_check_branch
      %29 = sbr.rel (0) target = $region17
    $region16: #{tpu_custom_call.1} parent=1 // pred_region
      %s31 = ssub.s32 16384, 16384
      %32 = vsyncadd [#allocation6], %s31
      %s33 = sshll.u32 [#allocation5], 4
      %s34 = int_to_ptr.vmem [resolvable:$true] %s33
      %39 = dma.hbm_to_vmem [thread:$0]  %s3, 16384, %s34, [#allocation6], 256, 256, 16
    $region17: #{tpu_custom_call.1} parent=1 // pred_fallthru
      _
    // Predicated region
    $region18: #{tpu_custom_call.1} parent=1 // pred_check
      _
    $region19: #{tpu_custom_call.1} parent=1 // pred_check_branch
      %41 = sbr.rel (0) target = $region21
    $region20: #{tpu_custom_call.1} parent=1 // pred_region
      %42 = dma.done [#allocation3], 4096
    $region21: #{tpu_custom_call.1} parent=1 // pred_fallthru
      _
    // Predicated region
    $region22: #{tpu_custom_call.1} parent=1 // pred_check
      _
    $region23: #{tpu_custom_call.1} parent=1 // pred_check_branch
      %44 = sbr.rel (0) target = $region25
    $region24: #{tpu_custom_call.1} parent=1 // pred_region
      %45 = dma.done [#allocation6], 16384
    $region25: #{tpu_custom_call.1} parent=1 // pred_fallthru
      _
    %v46 = vld [vmem:[#allocation2] sm:$0xff]
    %v47 = vld [vmem:[#allocation2 + $0x8] sm:$0xff]
    %v48 = vld [vmem:[#allocation2 + $0x10] sm:$0xff]
    %v49 = vld [vmem:[#allocation2 + $0x18] sm:$0xff]
    %v50 = vld [vmem:[#allocation2 + $0x20] sm:$0xff]
    %v51 = vld [vmem:[#allocation2 + $0x28] sm:$0xff]
    %v52 = vld [vmem:[#allocation2 + $0x30] sm:$0xff]
    %v53 = vld [vmem:[#allocation2 + $0x38] sm:$0xff]
    %v54 = vld [vmem:[#allocation2 + $0x40] sm:$0xff]
    %v55 = vld [vmem:[#allocation2 + $0x48] sm:$0xff]
    %v56 = vld [vmem:[#allocation2 + $0x50] sm:$0xff]
    %v57 = vld [vmem:[#allocation2 + $0x58] sm:$0xff]
    %v58 = vld [vmem:[#allocation2 + $0x60] sm:$0xff]
    %v59 = vld [vmem:[#allocation2 + $0x68] sm:$0xff]
    %v60 = vld [vmem:[#allocation2 + $0x70] sm:$0xff]
    %v61 = vld [vmem:[#allocation2 + $0x78] sm:$0xff]
    %v62 = vld [vmem:[#allocation2 + $0x80] sm:$0xff]
    %v63 = vld [vmem:[#allocation2 + $0x88] sm:$0xff]
    %v64 = vld [vmem:[#allocation2 + $0x90] sm:$0xff]
    %v65 = vld [vmem:[#allocation2 + $0x98] sm:$0xff]
    %v66 = vld [vmem:[#allocation2 + $0xa0] sm:$0xff]
    %v67 = vld [vmem:[#allocation2 + $0xa8] sm:$0xff]
    %v68 = vld [vmem:[#allocation2 + $0xb0] sm:$0xff]
    %v69 = vld [vmem:[#allocation2 + $0xb8] sm:$0xff]
    %v70 = vld [vmem:[#allocation2 + $0xc0] sm:$0xff]
    %v71 = vld [vmem:[#allocation2 + $0xc8] sm:$0xff]
    %v72 = vld [vmem:[#allocation2 + $0xd0] sm:$0xff]
    %v73 = vld [vmem:[#allocation2 + $0xd8] sm:$0xff]
    %v74 = vld [vmem:[#allocation2 + $0xe0] sm:$0xff]
    %v75 = vld [vmem:[#allocation2 + $0xe8] sm:$0xff]
    %v76 = vld [vmem:[#allocation2 + $0xf0] sm:$0xff]
    %v77 = vld [vmem:[#allocation2 + $0xf8] sm:$0xff]
    %v78 = vadd.f32 %v46, %v47
    %79 = vadd.xlane.f32.xlu0 %v78
    %v80 = vpop.xlane.xlu0 %79
    %v81 = vadd.f32 %v48, %v49
    %82 = vadd.xlane.f32.xlu0 %v81
    %v83 = vpop.xlane.xlu0 %82
    %v84 = vadd.f32 %v50, %v51
    %85 = vadd.xlane.f32.xlu0 %v84
    %v86 = vpop.xlane.xlu0 %85
    %v87 = vadd.f32 %v52, %v53
    %88 = vadd.xlane.f32.xlu0 %v87
    %v89 = vpop.xlane.xlu0 %88
    %v90 = vadd.f32 %v54, %v55
    %91 = vadd.xlane.f32.xlu0 %v90
    %v92 = vpop.xlane.xlu0 %91
    %v93 = vadd.f32 %v56, %v57
    %94 = vadd.xlane.f32.xlu0 %v93
    %v95 = vpop.xlane.xlu0 %94
    %v96 = vadd.f32 %v58, %v59
    %97 = vadd.xlane.f32.xlu0 %v96
    %v98 = vpop.xlane.xlu0 %97
    %v99 = vadd.f32 %v60, %v61
    %100 = vadd.xlane.f32.xlu0 %v99
    %v101 = vpop.xlane.xlu0 %100
    %v102 = vadd.f32 %v62, %v63
    %103 = vadd.xlane.f32.xlu0 %v102
    %v104 = vpop.xlane.xlu0 %103
    %v105 = vadd.f32 %v64, %v65
    %106 = vadd.xlane.f32.xlu0 %v105
    %v107 = vpop.xlane.xlu0 %106
    %v108 = vadd.f32 %v66, %v67
    %109 = vadd.xlane.f32.xlu0 %v108
    %v110 = vpop.xlane.xlu0 %109
    %v111 = vadd.f32 %v68, %v69
    %112 = vadd.xlane.f32.xlu0 %v111
    %v113 = vpop.xlane.xlu0 %112
    %v114 = vadd.f32 %v70, %v71
    %115 = vadd.xlane.f32.xlu0 %v114
    %v116 = vpop.xlane.xlu0 %115
    %v117 = vadd.f32 %v72, %v73
    %118 = vadd.xlane.f32.xlu0 %v117
    %v119 = vpop.xlane.xlu0 %118
    %v120 = vadd.f32 %v74, %v75
    %121 = vadd.xlane.f32.xlu0 %v120
    %v122 = vpop.xlane.xlu0 %121
    %v123 = vadd.f32 %v76, %v77
    %124 = vadd.xlane.f32.xlu0 %v123
    %v125 = vpop.xlane.xlu0 %124
    %v126 = vrcp.pop 256.0
    %v127 = vmul.f32 %v80, %v126
    %v128 = vmul.f32 %v83, %v126
    %v129 = vmul.f32 %v86, %v126
    %v130 = vmul.f32 %v89, %v126
    %v131 = vmul.f32 %v92, %v126
    %v132 = vmul.f32 %v95, %v126
    %v133 = vmul.f32 %v98, %v126
    %v134 = vmul.f32 %v101, %v126
    %v135 = vmul.f32 %v104, %v126
    %v136 = vmul.f32 %v107, %v126
    %v137 = vmul.f32 %v110, %v126
    %v138 = vmul.f32 %v113, %v126
    %v139 = vmul.f32 %v116, %v126
    %v140 = vmul.f32 %v119, %v126
    %v141 = vmul.f32 %v122, %v126
    %v142 = vmul.f32 %v125, %v126
    %v143 = vmax.f32 %v46, %v47
    %144 = vmax.xlane.f32.xlu0 %v143
    %v145 = vpop.xlane.xlu0 %144
    %v146 = vmax.f32 %v48, %v49
    %147 = vmax.xlane.f32.xlu0 %v146
    %v148 = vpop.xlane.xlu0 %147
    %v149 = vmax.f32 %v50, %v51
    %150 = vmax.xlane.f32.xlu0 %v149
    %v151 = vpop.xlane.xlu0 %150
    %v152 = vmax.f32 %v52, %v53
    %153 = vmax.xlane.f32.xlu0 %v152
    %v154 = vpop.xlane.xlu0 %153
    %v155 = vmax.f32 %v54, %v55
    %156 = vmax.xlane.f32.xlu0 %v155
    %v157 = vpop.xlane.xlu0 %156
    %v158 = vmax.f32 %v56, %v57
    %159 = vmax.xlane.f32.xlu0 %v158
    %v160 = vpop.xlane.xlu0 %159
    %v161 = vmax.f32 %v58, %v59
    %162 = vmax.xlane.f32.xlu0 %v161
    %v163 = vpop.xlane.xlu0 %162
    %v164 = vmax.f32 %v60, %v61
    %165 = vmax.xlane.f32.xlu0 %v164
    %v166 = vpop.xlane.xlu0 %165
    %v167 = vmax.f32 %v62, %v63
    %168 = vmax.xlane.f32.xlu0 %v167
    %v169 = vpop.xlane.xlu0 %168
    %v170 = vmax.f32 %v64, %v65
    %171 = vmax.xlane.f32.xlu0 %v170
    %v172 = vpop.xlane.xlu0 %171
    %v173 = vmax.f32 %v66, %v67
    %174 = vmax.xlane.f32.xlu0 %v173
    %v175 = vpop.xlane.xlu0 %174
    %v176 = vmax.f32 %v68, %v69
    %177 = vmax.xlane.f32.xlu0 %v176
    %v178 = vpop.xlane.xlu0 %177
    %v179 = vmax.f32 %v70, %v71
    %180 = vmax.xlane.f32.xlu0 %v179
    %v181 = vpop.xlane.xlu0 %180
    %v182 = vmax.f32 %v72, %v73
    %183 = vmax.xlane.f32.xlu0 %v182
    %v184 = vpop.xlane.xlu0 %183
    %v185 = vmax.f32 %v74, %v75
    %186 = vmax.xlane.f32.xlu0 %v185
    %v187 = vpop.xlane.xlu0 %186
    %v188 = vmax.f32 %v76, %v77
    %189 = vmax.xlane.f32.xlu0 %v188
    %v190 = vpop.xlane.xlu0 %189
    %v207 = vlaneseq
    %v208 = vand.u32 %v207, 127
    %v209 = vlaneseq
    %v210 = vshrl.u32 %v209, 7
    %v211 = vsub.s32 %v208, %v210
    %v212 = vrot.slane %v127, %v211
    %v213 = vadd.s32 %v208, 4294967288
    %v214 = vlaneseq
    %v215 = vshrl.u32 %v214, 7
    %v216 = vsub.s32 %v213, %v215
    %v217 = vrot.slane %v128, %v216
    %vm218 = vcmask 130112
    %v219 = vsel %vm218, %v217, %v212
    %v220 = vadd.s32 %v208, 4294967280
    %v221 = vlaneseq
    %v222 = vshrl.u32 %v221, 7
    %v223 = vsub.s32 %v220, %v222
    %v224 = vrot.slane %v129, %v223
    %vm225 = vcmask 195712
    %v226 = vsel %vm225, %v224, %v219
    %v227 = vadd.s32 %v208, 4294967272
    %v228 = vlaneseq
    %v229 = vshrl.u32 %v228, 7
    %v230 = vsub.s32 %v227, %v229
    %v231 = vrot.slane %v130, %v230
    %vm232 = vcmask 261312
    %v233 = vsel %vm232, %v231, %v226
    %v234 = vlaneseq
    %v235 = vshrl.u32 %v234, 7
    %v236 = vsub.s32 %v208, %v235
    %v237 = vrot.slane %v131, %v236
    %v238 = vlaneseq
    %v239 = vshrl.u32 %v238, 7
    %v240 = vsub.s32 %v213, %v239
    %v241 = vrot.slane %v132, %v240
    %v242 = vsel %vm218, %v241, %v237
    %v243 = vlaneseq
    %v244 = vshrl.u32 %v243, 7
    %v245 = vsub.s32 %v220, %v244
    %v246 = vrot.slane %v133, %v245
    %v247 = vsel %vm225, %v246, %v242
    %v248 = vlaneseq
    %v249 = vshrl.u32 %v248, 7
    %v250 = vsub.s32 %v227, %v249
    %v251 = vrot.slane %v134, %v250
    %v252 = vsel %vm232, %v251, %v247
    %v253 = vlaneseq
    %v254 = vshrl.u32 %v253, 7
    %v255 = vsub.s32 %v208, %v254
    %v256 = vrot.slane %v135, %v255
    %v257 = vlaneseq
    %v258 = vshrl.u32 %v257, 7
    %v259 = vsub.s32 %v213, %v258
    %v260 = vrot.slane %v136, %v259
    %v261 = vsel %vm218, %v260, %v256
    %v262 = vlaneseq
    %v263 = vshrl.u32 %v262, 7
    %v264 = vsub.s32 %v220, %v263
    %v265 = vrot.slane %v137, %v264
    %v266 = vsel %vm225, %v265, %v261
    %v267 = vlaneseq
    %v268 = vshrl.u32 %v267, 7
    %v269 = vsub.s32 %v227, %v268
    %v270 = vrot.slane %v138, %v269
    %v271 = vsel %vm232, %v270, %v266
    %v272 = vlaneseq
    %v273 = vshrl.u32 %v272, 7
    %v274 = vsub.s32 %v208, %v273
    %v275 = vrot.slane %v139, %v274
    %v276 = vlaneseq
    %v277 = vshrl.u32 %v276, 7
    %v278 = vsub.s32 %v213, %v277
    %v279 = vrot.slane %v140, %v278
    %v280 = vsel %vm218, %v279, %v275
    %v281 = vlaneseq
    %v282 = vshrl.u32 %v281, 7
    %v283 = vsub.s32 %v220, %v282
    %v284 = vrot.slane %v141, %v283
    %v285 = vsel %vm225, %v284, %v280
    %v286 = vlaneseq
    %v287 = vshrl.u32 %v286, 7
    %v288 = vsub.s32 %v227, %v287
    %v289 = vrot.slane %v142, %v288
    %v290 = vsel %vm232, %v289, %v285
    %vm291 = vcmask 1041409
    %v292 = vsel %vm291, %v252, %v233
    %vm293 = vcmask 1042434
    %v294 = vsel %vm293, %v271, %v292
    %vm295 = vcmask 1043459
    %v296 = vsel %vm295, %v290, %v294
    %v314 = vlaneseq
    %v315 = vshrl.u32 %v314, 7
    %v316 = vsub.s32 %v208, %v315
    %v317 = vrot.slane %v145, %v316
    %v318 = vlaneseq
    %v319 = vshrl.u32 %v318, 7
    %v320 = vsub.s32 %v213, %v319
    %v321 = vrot.slane %v148, %v320
    %v322 = vsel %vm218, %v321, %v317
    %v323 = vlaneseq
    %v324 = vshrl.u32 %v323, 7
    %v325 = vsub.s32 %v220, %v324
    %v326 = vrot.slane %v151, %v325
    %v327 = vsel %vm225, %v326, %v322
    %v328 = vlaneseq
    %v329 = vshrl.u32 %v328, 7
    %v330 = vsub.s32 %v227, %v329
    %v331 = vrot.slane %v154, %v330
    %v332 = vsel %vm232, %v331, %v327
    %v333 = vlaneseq
    %v334 = vshrl.u32 %v333, 7
    %v335 = vsub.s32 %v208, %v334
    %v336 = vrot.slane %v157, %v335
    %v337 = vlaneseq
    %v338 = vshrl.u32 %v337, 7
    %v339 = vsub.s32 %v213, %v338
    %v340 = vrot.slane %v160, %v339
    %v341 = vsel %vm218, %v340, %v336
    %v342 = vlaneseq
    %v343 = vshrl.u32 %v342, 7
    %v344 = vsub.s32 %v220, %v343
    %v345 = vrot.slane %v163, %v344
    %v346 = vsel %vm225, %v345, %v341
    %v347 = vlaneseq
    %v348 = vshrl.u32 %v347, 7
    %v349 = vsub.s32 %v227, %v348
    %v350 = vrot.slane %v166, %v349
    %v351 = vsel %vm232, %v350, %v346
    %v352 = vlaneseq
    %v353 = vshrl.u32 %v352, 7
    %v354 = vsub.s32 %v208, %v353
    %v355 = vrot.slane %v169, %v354
    %v356 = vlaneseq
    %v357 = vshrl.u32 %v356, 7
    %v358 = vsub.s32 %v213, %v357
    %v359 = vrot.slane %v172, %v358
    %v360 = vsel %vm218, %v359, %v355
    %v361 = vlaneseq
    %v362 = vshrl.u32 %v361, 7
    %v363 = vsub.s32 %v220, %v362
    %v364 = vrot.slane %v175, %v363
    %v365 = vsel %vm225, %v364, %v360
    %v366 = vlaneseq
    %v367 = vshrl.u32 %v366, 7
    %v368 = vsub.s32 %v227, %v367
    %v369 = vrot.slane %v178, %v368
    %v370 = vsel %vm232, %v369, %v365
    %v371 = vlaneseq
    %v372 = vshrl.u32 %v371, 7
    %v373 = vsub.s32 %v208, %v372
    %v374 = vrot.slane %v181, %v373
    %v375 = vlaneseq
    %v376 = vshrl.u32 %v375, 7
    %v377 = vsub.s32 %v213, %v376
    %v378 = vrot.slane %v184, %v377
    %v379 = vsel %vm218, %v378, %v374
    %v380 = vlaneseq
    %v381 = vshrl.u32 %v380, 7
    %v382 = vsub.s32 %v220, %v381
    %v383 = vrot.slane %v187, %v382
    %v384 = vsel %vm225, %v383, %v379
    %v385 = vlaneseq
    %v386 = vshrl.u32 %v385, 7
    %v387 = vsub.s32 %v227, %v386
    %v388 = vrot.slane %v190, %v387
    %v389 = vsel %vm232, %v388, %v384
    %vm390 = vcmask 1045509
    %v391 = vsel %vm390, %v351, %v332
    %vm392 = vcmask 1046534
    %v393 = vsel %vm392, %v370, %v391
    %vm394 = vcmask 1047559
    %v395 = vsel %vm394, %v389, %v393
    %vm397 = vcmask 1043456
    %v398 = vsel %vm397, %v296, %v395
    %v399 = vld [vmem:[%s1] sm:$0xff]
    %v400 = vld [vmem:[%s1 + $0x8] sm:$0xff]
    %v401 = vld [vmem:[%s1 + $0x10] sm:$0xff]
    %v402 = vld [vmem:[%s1 + $0x18] sm:$0xff]
    %v403 = vld [vmem:[%s2] sm:$0x3]
    %vm404 = vcmask 261120
    %v406 = vsel %vm404, %v398, 0
    %408 = vmatprep.subr.mxu0 0.0
    %409 = vmatpush1.msra.mxu0 0.0
    %410 = vmatprep.subr.mxu0 0.0
    %411 = vmatpush1.msra.mxu0 0.0
    %412 = vmatprep.subr.mxu0 0.0
    %413 = vmatpush1.msra.mxu0 0.0
    %414 = vmatprep.subr.mxu0 0.0
    %415 = vmatpush1.msra.mxu0 0.0
    %416 = vmatprep.subr.mxu0 0.0
    %417 = vmatpush1.msra.mxu0 0.0
    %418 = vmatprep.subr.mxu0 0.0
    %419 = vmatpush1.msra.mxu0 0.0
    %420 = vmatprep.subr.mxu0 0.0
    %421 = vmatpush1.msra.mxu0 0.0
    %422 = vmatprep.subr.mxu0 0.0
    %423 = vmatpush1.msra.mxu0 0.0
    %424 = vmatprep.subr.mxu0 0.0
    %425 = vmatpush1.msra.mxu0 0.0
    %426 = vmatprep.subr.mxu0 0.0
    %427 = vmatpush1.msra.mxu0 0.0
    %428 = vmatprep.subr.mxu0 0.0
    %429 = vmatpush1.msra.mxu0 0.0
    %430 = vmatprep.subr.mxu0 0.0
    %431 = vmatpush1.msra.mxu0 0.0
    %432 = vmatprep.subr.mxu0 0.0
    %v433 = vand.u32 %v402, 4294901760
    %434 = vmatpush1.msra.mxu0 %v433
    %435 = vmatprep.subr.mxu0 0.0
    %v436 = vand.u32 %v401, 4294901760
    %437 = vmatpush1.msra.mxu0 %v436
    %438 = vmatprep.subr.mxu0 0.0
    %v439 = vand.u32 %v400, 4294901760
    %440 = vmatpush1.msra.mxu0 %v439
    %441 = vmatprep.subr.mxu0 0.0
    %v442 = vand.u32 %v399, 4294901760
    %443 = vmatpush1.msra.mxu0 %v442
    %444 = vmatprep.subr.mxu0 0.0
    %445 = vmatpush2.msra.mxu0 0.0
    %446 = vmatprep.subr.mxu0 0.0
    %447 = vmatpush2.msra.mxu0 0.0
    %448 = vmatprep.subr.mxu0 0.0
    %449 = vmatpush2.msra.mxu0 0.0
    %450 = vmatprep.subr.mxu0 0.0
    %451 = vmatpush2.msra.mxu0 0.0
    %452 = vmatprep.subr.mxu0 0.0
    %453 = vmatpush2.msra.mxu0 0.0
    %454 = vmatprep.subr.mxu0 0.0
    %455 = vmatpush2.msra.mxu0 0.0
    %456 = vmatprep.subr.mxu0 0.0
    %457 = vmatpush2.msra.mxu0 0.0
    %458 = vmatprep.subr.mxu0 0.0
    %459 = vmatpush2.msra.mxu0 0.0
    %460 = vmatprep.subr.mxu0 0.0
    %461 = vmatpush2.msra.mxu0 0.0
    %462 = vmatprep.subr.mxu0 0.0
    %463 = vmatpush2.msra.mxu0 0.0
    %464 = vmatprep.subr.mxu0 0.0
    %465 = vmatpush2.msra.mxu0 0.0
    %466 = vmatprep.subr.mxu0 0.0
    %467 = vmatpush2.msra.mxu0 0.0
    %468 = vmatprep.subr.mxu0 0.0
    %469 = vmatpush2.msra.mxu0 0.0
    %470 = vmatprep.subr.mxu0 0.0
    %471 = vmatpush2.msra.mxu0 0.0
    %472 = vmatprep.subr.mxu0 0.0
    %473 = vmatpush2.msra.mxu0 0.0
    %474 = vmatprep.subr.mxu0 0.0
    %475 = vmatpush2.msra.mxu0 0.0
    %476 = vmatprep.mubr.f32.mxu0 0.0
    %v477 = vand.u32 %v406, 4294901760
    %v478 = vsub.f32 %v406, %v477
    %v479 = vand.u32 %v478, 4294901760
    %v480 = vsub.f32 %v478, %v479
    %v481 = vand.u32 %v480, 4294901760
    %482 = vmatmul.mubr.f32.gmra.mxu0 %v481
    %v483 = vpop.f32.mrf.mxu0
    %v484 = vadd.f32 0.0, %v483
    %v485 = vpop.f32.mrf.mxu0
    %486 = vdwg.mxu0
    %487 = vmatprep.subr.mxu0 0.0
    %488 = vmatpush1.msra.mxu0 0.0
    %489 = vmatprep.subr.mxu0 0.0
    %490 = vmatpush1.msra.mxu0 0.0
    %491 = vmatprep.subr.mxu0 0.0
    %492 = vmatpush1.msra.mxu0 0.0
    %493 = vmatprep.subr.mxu0 0.0
    %494 = vmatpush1.msra.mxu0 0.0
    %495 = vmatprep.subr.mxu0 0.0
    %496 = vmatpush1.msra.mxu0 0.0
    %497 = vmatprep.subr.mxu0 0.0
    %498 = vmatpush1.msra.mxu0 0.0
    %499 = vmatprep.subr.mxu0 0.0
    %500 = vmatpush1.msra.mxu0 0.0
    %501 = vmatprep.subr.mxu0 0.0
    %502 = vmatpush1.msra.mxu0 0.0
    %503 = vmatprep.subr.mxu0 0.0
    %504 = vmatpush1.msra.mxu0 0.0
    %505 = vmatprep.subr.mxu0 0.0
    %506 = vmatpush1.msra.mxu0 0.0
    %507 = vmatprep.subr.mxu0 0.0
    %508 = vmatpush1.msra.mxu0 0.0
    %509 = vmatprep.subr.mxu0 0.0
    %510 = vmatpush1.msra.mxu0 0.0
    %511 = vmatprep.subr.mxu0 0.0
    %v512 = vand.u32 %v402, 4294901760
    %v513 = vsub.f32 %v402, %v512
    %v514 = vand.u32 %v513, 4294901760
    %v515 = vsub.f32 %v513, %v514
    %v516 = vand.u32 %v515, 4294901760
    %517 = vmatpush1.msra.mxu0 %v516
    %518 = vmatprep.subr.mxu0 0.0
    %v519 = vand.u32 %v401, 4294901760
    %v520 = vsub.f32 %v401, %v519
    %v521 = vand.u32 %v520, 4294901760
    %v522 = vsub.f32 %v520, %v521
    %v523 = vand.u32 %v522, 4294901760
    %524 = vmatpush1.msra.mxu0 %v523
    %525 = vmatprep.subr.mxu0 0.0
    %v526 = vand.u32 %v400, 4294901760
    %v527 = vsub.f32 %v400, %v526
    %v528 = vand.u32 %v527, 4294901760
    %v529 = vsub.f32 %v527, %v528
    %v530 = vand.u32 %v529, 4294901760
    %531 = vmatpush1.msra.mxu0 %v530
    %532 = vmatprep.subr.mxu0 0.0
    %v533 = vand.u32 %v399, 4294901760
    %v534 = vsub.f32 %v399, %v533
    %v535 = vand.u32 %v534, 4294901760
    %v536 = vsub.f32 %v534, %v535
    %v537 = vand.u32 %v536, 4294901760
    %538 = vmatpush1.msra.mxu0 %v537
    %539 = vmatprep.subr.mxu0 0.0
    %540 = vmatpush2.msra.mxu0 0.0
    %541 = vmatprep.subr.mxu0 0.0
    %542 = vmatpush2.msra.mxu0 0.0
    %543 = vmatprep.subr.mxu0 0.0
    %544 = vmatpush2.msra.mxu0 0.0
    %545 = vmatprep.subr.mxu0 0.0
    %546 = vmatpush2.msra.mxu0 0.0
    %547 = vmatprep.subr.mxu0 0.0
    %548 = vmatpush2.msra.mxu0 0.0
    %549 = vmatprep.subr.mxu0 0.0
    %550 = vmatpush2.msra.mxu0 0.0
    %551 = vmatprep.subr.mxu0 0.0
    %552 = vmatpush2.msra.mxu0 0.0
    %553 = vmatprep.subr.mxu0 0.0
    %554 = vmatpush2.msra.mxu0 0.0
    %555 = vmatprep.subr.mxu0 0.0
    %556 = vmatpush2.msra.mxu0 0.0
    %557 = vmatprep.subr.mxu0 0.0
    %558 = vmatpush2.msra.mxu0 0.0
    %559 = vmatprep.subr.mxu0 0.0
    %560 = vmatpush2.msra.mxu0 0.0
    %561 = vmatprep.subr.mxu0 0.0
    %562 = vmatpush2.msra.mxu0 0.0
    %563 = vmatprep.subr.mxu0 0.0
    %564 = vmatpush2.msra.mxu0 0.0
    %565 = vmatprep.subr.mxu0 0.0
    %566 = vmatpush2.msra.mxu0 0.0
    %567 = vmatprep.subr.mxu0 0.0
    %568 = vmatpush2.msra.mxu0 0.0
    %569 = vmatprep.subr.mxu0 0.0
    %570 = vmatpush2.msra.mxu0 0.0
    %571 = vmatprep.mubr.f32.mxu0 0.0
    %v572 = vand.u32 %v406, 4294901760
    %573 = vmatmul.mubr.f32.gmra.mxu0 %v572
    %v574 = vpop.f32.mrf.mxu0
    %v575 = vadd.f32 %v484, %v574
    %v576 = vpop.f32.mrf.mxu0
    %577 = vdwg.mxu0
    %578 = vmatprep.subr.mxu0 0.0
    %579 = vmatpush1.msra.mxu0 0.0
    %580 = vmatprep.subr.mxu0 0.0
    %581 = vmatpush1.msra.mxu0 0.0
    %582 = vmatprep.subr.mxu0 0.0
    %583 = vmatpush1.msra.mxu0 0.0
    %584 = vmatprep.subr.mxu0 0.0
    %585 = vmatpush1.msra.mxu0 0.0
    %586 = vmatprep.subr.mxu0 0.0
    %587 = vmatpush1.msra.mxu0 0.0
    %588 = vmatprep.subr.mxu0 0.0
    %589 = vmatpush1.msra.mxu0 0.0
    %590 = vmatprep.subr.mxu0 0.0
    %591 = vmatpush1.msra.mxu0 0.0
    %592 = vmatprep.subr.mxu0 0.0
    %593 = vmatpush1.msra.mxu0 0.0
    %594 = vmatprep.subr.mxu0 0.0
    %595 = vmatpush1.msra.mxu0 0.0
    %596 = vmatprep.subr.mxu0 0.0
    %597 = vmatpush1.msra.mxu0 0.0
    %598 = vmatprep.subr.mxu0 0.0
    %599 = vmatpush1.msra.mxu0 0.0
    %600 = vmatprep.subr.mxu0 0.0
    %601 = vmatpush1.msra.mxu0 0.0
    %602 = vmatprep.subr.mxu0 0.0
    %v603 = vand.u32 %v402, 4294901760
    %v604 = vsub.f32 %v402, %v603
    %605 = vmatpush1.msra.mxu0 %v604
    %606 = vmatprep.subr.mxu0 0.0
    %v607 = vand.u32 %v401, 4294901760
    %v608 = vsub.f32 %v401, %v607
    %609 = vmatpush1.msra.mxu0 %v608
    %610 = vmatprep.subr.mxu0 0.0
    %v611 = vand.u32 %v400, 4294901760
    %v612 = vsub.f32 %v400, %v611
    %613 = vmatpush1.msra.mxu0 %v612
    %614 = vmatprep.subr.mxu0 0.0
    %v615 = vand.u32 %v399, 4294901760
    %v616 = vsub.f32 %v399, %v615
    %617 = vmatpush1.msra.mxu0 %v616
    %618 = vmatprep.subr.mxu0 0.0
    %619 = vmatpush2.msra.mxu0 0.0
    %620 = vmatprep.subr.mxu0 0.0
    %621 = vmatpush2.msra.mxu0 0.0
    %622 = vmatprep.subr.mxu0 0.0
    %623 = vmatpush2.msra.mxu0 0.0
    %624 = vmatprep.subr.mxu0 0.0
    %625 = vmatpush2.msra.mxu0 0.0
    %626 = vmatprep.subr.mxu0 0.0
    %627 = vmatpush2.msra.mxu0 0.0
    %628 = vmatprep.subr.mxu0 0.0
    %629 = vmatpush2.msra.mxu0 0.0
    %630 = vmatprep.subr.mxu0 0.0
    %631 = vmatpush2.msra.mxu0 0.0
    %632 = vmatprep.subr.mxu0 0.0
    %633 = vmatpush2.msra.mxu0 0.0
    %634 = vmatprep.subr.mxu0 0.0
    %635 = vmatpush2.msra.mxu0 0.0
    %636 = vmatprep.subr.mxu0 0.0
    %637 = vmatpush2.msra.mxu0 0.0
    %638 = vmatprep.subr.mxu0 0.0
    %639 = vmatpush2.msra.mxu0 0.0
    %640 = vmatprep.subr.mxu0 0.0
    %641 = vmatpush2.msra.mxu0 0.0
    %642 = vmatprep.subr.mxu0 0.0
    %643 = vmatpush2.msra.mxu0 0.0
    %644 = vmatprep.subr.mxu0 0.0
    %645 = vmatpush2.msra.mxu0 0.0
    %646 = vmatprep.subr.mxu0 0.0
    %647 = vmatpush2.msra.mxu0 0.0
    %648 = vmatprep.subr.mxu0 0.0
    %649 = vmatpush2.msra.mxu0 0.0
    %650 = vmatprep.mubr.f32.mxu0 0.0
    %v651 = vand.u32 %v406, 4294901760
    %v652 = vsub.f32 %v406, %v651
    %653 = vmatmul.mubr.f32.gmra.mxu0 %v652
    %v654 = vpop.f32.mrf.mxu0
    %v655 = vadd.f32 %v575, %v654
    %v656 = vpop.f32.mrf.mxu0
    %657 = vdwg.mxu0
    %658 = vmatprep.subr.mxu0 0.0
    %659 = vmatpush1.msra.mxu0 0.0
    %660 = vmatprep.subr.mxu0 0.0
    %661 = vmatpush1.msra.mxu0 0.0
    %662 = vmatprep.subr.mxu0 0.0
    %663 = vmatpush1.msra.mxu0 0.0
    %664 = vmatprep.subr.mxu0 0.0
    %665 = vmatpush1.msra.mxu0 0.0
    %666 = vmatprep.subr.mxu0 0.0
    %667 = vmatpush1.msra.mxu0 0.0
    %668 = vmatprep.subr.mxu0 0.0
    %669 = vmatpush1.msra.mxu0 0.0
    %670 = vmatprep.subr.mxu0 0.0
    %671 = vmatpush1.msra.mxu0 0.0
    %672 = vmatprep.subr.mxu0 0.0
    %673 = vmatpush1.msra.mxu0 0.0
    %674 = vmatprep.subr.mxu0 0.0
    %675 = vmatpush1.msra.mxu0 0.0
    %676 = vmatprep.subr.mxu0 0.0
    %677 = vmatpush1.msra.mxu0 0.0
    %678 = vmatprep.subr.mxu0 0.0
    %679 = vmatpush1.msra.mxu0 0.0
    %680 = vmatprep.subr.mxu0 0.0
    %681 = vmatpush1.msra.mxu0 0.0
    %682 = vmatprep.subr.mxu0 0.0
    %v683 = vand.u32 %v402, 4294901760
    %684 = vmatpush1.msra.mxu0 %v683
    %685 = vmatprep.subr.mxu0 0.0
    %v686 = vand.u32 %v401, 4294901760
    %687 = vmatpush1.msra.mxu0 %v686
    %688 = vmatprep.subr.mxu0 0.0
    %v689 = vand.u32 %v400, 4294901760
    %690 = vmatpush1.msra.mxu0 %v689
    %691 = vmatprep.subr.mxu0 0.0
    %v692 = vand.u32 %v399, 4294901760
    %693 = vmatpush1.msra.mxu0 %v692
    %694 = vmatprep.subr.mxu0 0.0
    %695 = vmatpush2.msra.mxu0 0.0
    %696 = vmatprep.subr.mxu0 0.0
    %697 = vmatpush2.msra.mxu0 0.0
    %698 = vmatprep.subr.mxu0 0.0
    %699 = vmatpush2.msra.mxu0 0.0
    %700 = vmatprep.subr.mxu0 0.0
    %701 = vmatpush2.msra.mxu0 0.0
    %702 = vmatprep.subr.mxu0 0.0
    %703 = vmatpush2.msra.mxu0 0.0
    %704 = vmatprep.subr.mxu0 0.0
    %705 = vmatpush2.msra.mxu0 0.0
    %706 = vmatprep.subr.mxu0 0.0
    %707 = vmatpush2.msra.mxu0 0.0
    %708 = vmatprep.subr.mxu0 0.0
    %709 = vmatpush2.msra.mxu0 0.0
    %710 = vmatprep.subr.mxu0 0.0
    %711 = vmatpush2.msra.mxu0 0.0
    %712 = vmatprep.subr.mxu0 0.0
    %713 = vmatpush2.msra.mxu0 0.0
    %714 = vmatprep.subr.mxu0 0.0
    %715 = vmatpush2.msra.mxu0 0.0
    %716 = vmatprep.subr.mxu0 0.0
    %717 = vmatpush2.msra.mxu0 0.0
    %718 = vmatprep.subr.mxu0 0.0
    %719 = vmatpush2.msra.mxu0 0.0
    %720 = vmatprep.subr.mxu0 0.0
    %721 = vmatpush2.msra.mxu0 0.0
    %722 = vmatprep.subr.mxu0 0.0
    %723 = vmatpush2.msra.mxu0 0.0
    %724 = vmatprep.subr.mxu0 0.0
    %725 = vmatpush2.msra.mxu0 0.0
    %726 = vmatprep.mubr.f32.mxu0 0.0
    %v727 = vand.u32 %v406, 4294901760
    %v728 = vsub.f32 %v406, %v727
    %v729 = vand.u32 %v728, 4294901760
    %730 = vmatmul.mubr.f32.gmra.mxu0 %v729
    %v731 = vpop.f32.mrf.mxu0
    %v732 = vadd.f32 %v655, %v731
    %v733 = vpop.f32.mrf.mxu0
    %734 = vdwg.mxu0
    %735 = vmatprep.subr.mxu0 0.0
    %736 = vmatpush1.msra.mxu0 0.0
    %737 = vmatprep.subr.mxu0 0.0
    %738 = vmatpush1.msra.mxu0 0.0
    %739 = vmatprep.subr.mxu0 0.0
    %740 = vmatpush1.msra.mxu0 0.0
    %741 = vmatprep.subr.mxu0 0.0
    %742 = vmatpush1.msra.mxu0 0.0
    %743 = vmatprep.subr.mxu0 0.0
    %744 = vmatpush1.msra.mxu0 0.0
    %745 = vmatprep.subr.mxu0 0.0
    %746 = vmatpush1.msra.mxu0 0.0
    %747 = vmatprep.subr.mxu0 0.0
    %748 = vmatpush1.msra.mxu0 0.0
    %749 = vmatprep.subr.mxu0 0.0
    %750 = vmatpush1.msra.mxu0 0.0
    %751 = vmatprep.subr.mxu0 0.0
    %752 = vmatpush1.msra.mxu0 0.0
    %753 = vmatprep.subr.mxu0 0.0
    %754 = vmatpush1.msra.mxu0 0.0
    %755 = vmatprep.subr.mxu0 0.0
    %756 = vmatpush1.msra.mxu0 0.0
    %757 = vmatprep.subr.mxu0 0.0
    %758 = vmatpush1.msra.mxu0 0.0
    %759 = vmatprep.subr.mxu0 0.0
    %v760 = vand.u32 %v402, 4294901760
    %v761 = vsub.f32 %v402, %v760
    %v762 = vand.u32 %v761, 4294901760
    %763 = vmatpush1.msra.mxu0 %v762
    %764 = vmatprep.subr.mxu0 0.0
    %v765 = vand.u32 %v401, 4294901760
    %v766 = vsub.f32 %v401, %v765
    %v767 = vand.u32 %v766, 4294901760
    %768 = vmatpush1.msra.mxu0 %v767
    %769 = vmatprep.subr.mxu0 0.0
    %v770 = vand.u32 %v400, 4294901760
    %v771 = vsub.f32 %v400, %v770
    %v772 = vand.u32 %v771, 4294901760
    %773 = vmatpush1.msra.mxu0 %v772
    %774 = vmatprep.subr.mxu0 0.0
    %v775 = vand.u32 %v399, 4294901760
    %v776 = vsub.f32 %v399, %v775
    %v777 = vand.u32 %v776, 4294901760
    %778 = vmatpush1.msra.mxu0 %v777
    %779 = vmatprep.subr.mxu0 0.0
    %780 = vmatpush2.msra.mxu0 0.0
    %781 = vmatprep.subr.mxu0 0.0
    %782 = vmatpush2.msra.mxu0 0.0
    %783 = vmatprep.subr.mxu0 0.0
    %784 = vmatpush2.msra.mxu0 0.0
    %785 = vmatprep.subr.mxu0 0.0
    %786 = vmatpush2.msra.mxu0 0.0
    %787 = vmatprep.subr.mxu0 0.0
    %788 = vmatpush2.msra.mxu0 0.0
    %789 = vmatprep.subr.mxu0 0.0
    %790 = vmatpush2.msra.mxu0 0.0
    %791 = vmatprep.subr.mxu0 0.0
    %792 = vmatpush2.msra.mxu0 0.0
    %793 = vmatprep.subr.mxu0 0.0
    %794 = vmatpush2.msra.mxu0 0.0
    %795 = vmatprep.subr.mxu0 0.0
    %796 = vmatpush2.msra.mxu0 0.0
    %797 = vmatprep.subr.mxu0 0.0
    %798 = vmatpush2.msra.mxu0 0.0
    %799 = vmatprep.subr.mxu0 0.0
    %800 = vmatpush2.msra.mxu0 0.0
    %801 = vmatprep.subr.mxu0 0.0
    %802 = vmatpush2.msra.mxu0 0.0
    %803 = vmatprep.subr.mxu0 0.0
    %804 = vmatpush2.msra.mxu0 0.0
    %805 = vmatprep.subr.mxu0 0.0
    %806 = vmatpush2.msra.mxu0 0.0
    %807 = vmatprep.subr.mxu0 0.0
    %808 = vmatpush2.msra.mxu0 0.0
    %809 = vmatprep.subr.mxu0 0.0
    %810 = vmatpush2.msra.mxu0 0.0
    %811 = vmatprep.mubr.f32.mxu0 0.0
    %v812 = vand.u32 %v406, 4294901760
    %813 = vmatmul.mubr.f32.gmra.mxu0 %v812
    %v814 = vpop.f32.mrf.mxu0
    %v815 = vadd.f32 %v732, %v814
    %v816 = vpop.f32.mrf.mxu0
    %817 = vdwg.mxu0
    %818 = vmatprep.subr.mxu0 0.0
    %819 = vmatpush1.msra.mxu0 0.0
    %820 = vmatprep.subr.mxu0 0.0
    %821 = vmatpush1.msra.mxu0 0.0
    %822 = vmatprep.subr.mxu0 0.0
    %823 = vmatpush1.msra.mxu0 0.0
    %824 = vmatprep.subr.mxu0 0.0
    %825 = vmatpush1.msra.mxu0 0.0
    %826 = vmatprep.subr.mxu0 0.0
    %827 = vmatpush1.msra.mxu0 0.0
    %828 = vmatprep.subr.mxu0 0.0
    %829 = vmatpush1.msra.mxu0 0.0
    %830 = vmatprep.subr.mxu0 0.0
    %831 = vmatpush1.msra.mxu0 0.0
    %832 = vmatprep.subr.mxu0 0.0
    %833 = vmatpush1.msra.mxu0 0.0
    %834 = vmatprep.subr.mxu0 0.0
    %835 = vmatpush1.msra.mxu0 0.0
    %836 = vmatprep.subr.mxu0 0.0
    %837 = vmatpush1.msra.mxu0 0.0
    %838 = vmatprep.subr.mxu0 0.0
    %839 = vmatpush1.msra.mxu0 0.0
    %840 = vmatprep.subr.mxu0 0.0
    %841 = vmatpush1.msra.mxu0 0.0
    %842 = vmatprep.subr.mxu0 0.0
    %v843 = vand.u32 %v402, 4294901760
    %844 = vmatpush1.msra.mxu0 %v843
    %845 = vmatprep.subr.mxu0 0.0
    %v846 = vand.u32 %v401, 4294901760
    %847 = vmatpush1.msra.mxu0 %v846
    %848 = vmatprep.subr.mxu0 0.0
    %v849 = vand.u32 %v400, 4294901760
    %850 = vmatpush1.msra.mxu0 %v849
    %851 = vmatprep.subr.mxu0 0.0
    %v852 = vand.u32 %v399, 4294901760
    %853 = vmatpush1.msra.mxu0 %v852
    %854 = vmatprep.subr.mxu0 0.0
    %855 = vmatpush2.msra.mxu0 0.0
    %856 = vmatprep.subr.mxu0 0.0
    %857 = vmatpush2.msra.mxu0 0.0
    %858 = vmatprep.subr.mxu0 0.0
    %859 = vmatpush2.msra.mxu0 0.0
    %860 = vmatprep.subr.mxu0 0.0
    %861 = vmatpush2.msra.mxu0 0.0
    %862 = vmatprep.subr.mxu0 0.0
    %863 = vmatpush2.msra.mxu0 0.0
    %864 = vmatprep.subr.mxu0 0.0
    %865 = vmatpush2.msra.mxu0 0.0
    %866 = vmatprep.subr.mxu0 0.0
    %867 = vmatpush2.msra.mxu0 0.0
    %868 = vmatprep.subr.mxu0 0.0
    %869 = vmatpush2.msra.mxu0 0.0
    %870 = vmatprep.subr.mxu0 0.0
    %871 = vmatpush2.msra.mxu0 0.0
    %872 = vmatprep.subr.mxu0 0.0
    %873 = vmatpush2.msra.mxu0 0.0
    %874 = vmatprep.subr.mxu0 0.0
    %875 = vmatpush2.msra.mxu0 0.0
    %876 = vmatprep.subr.mxu0 0.0
    %877 = vmatpush2.msra.mxu0 0.0
    %878 = vmatprep.subr.mxu0 0.0
    %879 = vmatpush2.msra.mxu0 0.0
    %880 = vmatprep.subr.mxu0 0.0
    %881 = vmatpush2.msra.mxu0 0.0
    %882 = vmatprep.subr.mxu0 0.0
    %883 = vmatpush2.msra.mxu0 0.0
    %884 = vmatprep.subr.mxu0 0.0
    %885 = vmatpush2.msra.mxu0 0.0
    %886 = vmatprep.mubr.f32.mxu0 0.0
    %v887 = vand.u32 %v406, 4294901760
    %888 = vmatmul.mubr.f32.gmra.mxu0 %v887
    %v889 = vpop.f32.mrf.mxu0
    %v890 = vadd.f32 %v815, %v889
    %v891 = vpop.f32.mrf.mxu0
    %892 = vdwg.mxu0
    %v893 = vmax.f32 %v890, 0.0
    %vm894 = vcmask 15360
    %v896 = vsel %vm894, %v893, 0
    %vm898 = vcmask 1041408
    %v900 = vsel %vm898, %v403, 0
    %902 = vmatprep.subr.mxu0 0.0
    %903 = vmatpush1.msra.mxu0 0.0
    %904 = vmatprep.subr.mxu0 0.0
    %905 = vmatpush1.msra.mxu0 0.0
    %906 = vmatprep.subr.mxu0 0.0
    %907 = vmatpush1.msra.mxu0 0.0
    %908 = vmatprep.subr.mxu0 0.0
    %909 = vmatpush1.msra.mxu0 0.0
    %910 = vmatprep.subr.mxu0 0.0
    %911 = vmatpush1.msra.mxu0 0.0
    %912 = vmatprep.subr.mxu0 0.0
    %913 = vmatpush1.msra.mxu0 0.0
    %914 = vmatprep.subr.mxu0 0.0
    %915 = vmatpush1.msra.mxu0 0.0
    %916 = vmatprep.subr.mxu0 0.0
    %917 = vmatpush1.msra.mxu0 0.0
    %918 = vmatprep.subr.mxu0 0.0
    %919 = vmatpush1.msra.mxu0 0.0
    %920 = vmatprep.subr.mxu0 0.0
    %921 = vmatpush1.msra.mxu0 0.0
    %922 = vmatprep.subr.mxu0 0.0
    %923 = vmatpush1.msra.mxu0 0.0
    %924 = vmatprep.subr.mxu0 0.0
    %925 = vmatpush1.msra.mxu0 0.0
    %926 = vmatprep.subr.mxu0 0.0
    %927 = vmatpush1.msra.mxu0 0.0
    %928 = vmatprep.subr.mxu0 0.0
    %929 = vmatpush1.msra.mxu0 0.0
    %930 = vmatprep.subr.mxu0 0.0
    %931 = vmatpush1.msra.mxu0 0.0
    %932 = vmatprep.subr.mxu0 0.0
    %v933 = vand.u32 %v900, 4294901760
    %934 = vmatpush1.msra.mxu0 %v933
    %935 = vmatprep.subr.mxu0 0.0
    %936 = vmatpush2.msra.mxu0 0.0
    %937 = vmatprep.subr.mxu0 0.0
    %938 = vmatpush2.msra.mxu0 0.0
    %939 = vmatprep.subr.mxu0 0.0
    %940 = vmatpush2.msra.mxu0 0.0
    %941 = vmatprep.subr.mxu0 0.0
    %942 = vmatpush2.msra.mxu0 0.0
    %943 = vmatprep.subr.mxu0 0.0
    %944 = vmatpush2.msra.mxu0 0.0
    %945 = vmatprep.subr.mxu0 0.0
    %946 = vmatpush2.msra.mxu0 0.0
    %947 = vmatprep.subr.mxu0 0.0
    %948 = vmatpush2.msra.mxu0 0.0
    %949 = vmatprep.subr.mxu0 0.0
    %950 = vmatpush2.msra.mxu0 0.0
    %951 = vmatprep.subr.mxu0 0.0
    %952 = vmatpush2.msra.mxu0 0.0
    %953 = vmatprep.subr.mxu0 0.0
    %954 = vmatpush2.msra.mxu0 0.0
    %955 = vmatprep.subr.mxu0 0.0
    %956 = vmatpush2.msra.mxu0 0.0
    %957 = vmatprep.subr.mxu0 0.0
    %958 = vmatpush2.msra.mxu0 0.0
    %959 = vmatprep.subr.mxu0 0.0
    %960 = vmatpush2.msra.mxu0 0.0
    %961 = vmatprep.subr.mxu0 0.0
    %962 = vmatpush2.msra.mxu0 0.0
    %963 = vmatprep.subr.mxu0 0.0
    %964 = vmatpush2.msra.mxu0 0.0
    %965 = vmatprep.subr.mxu0 0.0
    %966 = vmatpush2.msra.mxu0 0.0
    %967 = vmatprep.mubr.f32.mxu0 0.0
    %v968 = vand.u32 %v896, 4294901760
    %v969 = vsub.f32 %v896, %v968
    %v970 = vand.u32 %v969, 4294901760
    %v971 = vsub.f32 %v969, %v970
    %v972 = vand.u32 %v971, 4294901760
    %973 = vmatmul.mubr.f32.gmra.mxu0 %v972
    %v974 = vpop.f32.mrf.mxu0
    %v975 = vadd.f32 0.0, %v974
    %v976 = vpop.f32.mrf.mxu0
    %977 = vdwg.mxu0
    %978 = vmatprep.subr.mxu0 0.0
    %979 = vmatpush1.msra.mxu0 0.0
    %980 = vmatprep.subr.mxu0 0.0
    %981 = vmatpush1.msra.mxu0 0.0
    %982 = vmatprep.subr.mxu0 0.0
    %983 = vmatpush1.msra.mxu0 0.0
    %984 = vmatprep.subr.mxu0 0.0
    %985 = vmatpush1.msra.mxu0 0.0
    %986 = vmatprep.subr.mxu0 0.0
    %987 = vmatpush1.msra.mxu0 0.0
    %988 = vmatprep.subr.mxu0 0.0
    %989 = vmatpush1.msra.mxu0 0.0
    %990 = vmatprep.subr.mxu0 0.0
    %991 = vmatpush1.msra.mxu0 0.0
    %992 = vmatprep.subr.mxu0 0.0
    %993 = vmatpush1.msra.mxu0 0.0
    %994 = vmatprep.subr.mxu0 0.0
    %995 = vmatpush1.msra.mxu0 0.0
    %996 = vmatprep.subr.mxu0 0.0
    %997 = vmatpush1.msra.mxu0 0.0
    %998 = vmatprep.subr.mxu0 0.0
    %999 = vmatpush1.msra.mxu0 0.0
    %1000 = vmatprep.subr.mxu0 0.0
    %1001 = vmatpush1.msra.mxu0 0.0
    %1002 = vmatprep.subr.mxu0 0.0
    %1003 = vmatpush1.msra.mxu0 0.0
    %1004 = vmatprep.subr.mxu0 0.0
    %1005 = vmatpush1.msra.mxu0 0.0
    %1006 = vmatprep.subr.mxu0 0.0
    %1007 = vmatpush1.msra.mxu0 0.0
    %1008 = vmatprep.subr.mxu0 0.0
    %v1009 = vand.u32 %v900, 4294901760
    %v1010 = vsub.f32 %v900, %v1009
    %v1011 = vand.u32 %v1010, 4294901760
    %v1012 = vsub.f32 %v1010, %v1011
    %v1013 = vand.u32 %v1012, 4294901760
    %1014 = vmatpush1.msra.mxu0 %v1013
    %1015 = vmatprep.subr.mxu0 0.0
    %1016 = vmatpush2.msra.mxu0 0.0
    %1017 = vmatprep.subr.mxu0 0.0
    %1018 = vmatpush2.msra.mxu0 0.0
    %1019 = vmatprep.subr.mxu0 0.0
    %1020 = vmatpush2.msra.mxu0 0.0
    %1021 = vmatprep.subr.mxu0 0.0
    %1022 = vmatpush2.msra.mxu0 0.0
    %1023 = vmatprep.subr.mxu0 0.0
    %1024 = vmatpush2.msra.mxu0 0.0
    %1025 = vmatprep.subr.mxu0 0.0
    %1026 = vmatpush2.msra.mxu0 0.0
    %1027 = vmatprep.subr.mxu0 0.0
    %1028 = vmatpush2.msra.mxu0 0.0
    %1029 = vmatprep.subr.mxu0 0.0
    %1030 = vmatpush2.msra.mxu0 0.0
    %1031 = vmatprep.subr.mxu0 0.0
    %1032 = vmatpush2.msra.mxu0 0.0
    %1033 = vmatprep.subr.mxu0 0.0
    %1034 = vmatpush2.msra.mxu0 0.0
    %1035 = vmatprep.subr.mxu0 0.0
    %1036 = vmatpush2.msra.mxu0 0.0
    %1037 = vmatprep.subr.mxu0 0.0
    %1038 = vmatpush2.msra.mxu0 0.0
    %1039 = vmatprep.subr.mxu0 0.0
    %1040 = vmatpush2.msra.mxu0 0.0
    %1041 = vmatprep.subr.mxu0 0.0
    %1042 = vmatpush2.msra.mxu0 0.0
    %1043 = vmatprep.subr.mxu0 0.0
    %1044 = vmatpush2.msra.mxu0 0.0
    %1045 = vmatprep.subr.mxu0 0.0
    %1046 = vmatpush2.msra.mxu0 0.0
    %1047 = vmatprep.mubr.f32.mxu0 0.0
    %v1048 = vand.u32 %v896, 4294901760
    %1049 = vmatmul.mubr.f32.gmra.mxu0 %v1048
    %v1050 = vpop.f32.mrf.mxu0
    %v1051 = vadd.f32 %v975, %v1050
    %v1052 = vpop.f32.mrf.mxu0
    %1053 = vdwg.mxu0
    %1054 = vmatprep.subr.mxu0 0.0
    %1055 = vmatpush1.msra.mxu0 0.0
    %1056 = vmatprep.subr.mxu0 0.0
    %1057 = vmatpush1.msra.mxu0 0.0
    %1058 = vmatprep.subr.mxu0 0.0
    %1059 = vmatpush1.msra.mxu0 0.0
    %1060 = vmatprep.subr.mxu0 0.0
    %1061 = vmatpush1.msra.mxu0 0.0
    %1062 = vmatprep.subr.mxu0 0.0
    %1063 = vmatpush1.msra.mxu0 0.0
    %1064 = vmatprep.subr.mxu0 0.0
    %1065 = vmatpush1.msra.mxu0 0.0
    %1066 = vmatprep.subr.mxu0 0.0
    %1067 = vmatpush1.msra.mxu0 0.0
    %1068 = vmatprep.subr.mxu0 0.0
    %1069 = vmatpush1.msra.mxu0 0.0
    %1070 = vmatprep.subr.mxu0 0.0
    %1071 = vmatpush1.msra.mxu0 0.0
    %1072 = vmatprep.subr.mxu0 0.0
    %1073 = vmatpush1.msra.mxu0 0.0
    %1074 = vmatprep.subr.mxu0 0.0
    %1075 = vmatpush1.msra.mxu0 0.0
    %1076 = vmatprep.subr.mxu0 0.0
    %1077 = vmatpush1.msra.mxu0 0.0
    %1078 = vmatprep.subr.mxu0 0.0
    %1079 = vmatpush1.msra.mxu0 0.0
    %1080 = vmatprep.subr.mxu0 0.0
    %1081 = vmatpush1.msra.mxu0 0.0
    %1082 = vmatprep.subr.mxu0 0.0
    %1083 = vmatpush1.msra.mxu0 0.0
    %1084 = vmatprep.subr.mxu0 0.0
    %v1085 = vand.u32 %v900, 4294901760
    %v1086 = vsub.f32 %v900, %v1085
    %1087 = vmatpush1.msra.mxu0 %v1086
    %1088 = vmatprep.subr.mxu0 0.0
    %1089 = vmatpush2.msra.mxu0 0.0
    %1090 = vmatprep.subr.mxu0 0.0
    %1091 = vmatpush2.msra.mxu0 0.0
    %1092 = vmatprep.subr.mxu0 0.0
    %1093 = vmatpush2.msra.mxu0 0.0
    %1094 = vmatprep.subr.mxu0 0.0
    %1095 = vmatpush2.msra.mxu0 0.0
    %1096 = vmatprep.subr.mxu0 0.0
    %1097 = vmatpush2.msra.mxu0 0.0
    %1098 = vmatprep.subr.mxu0 0.0
    %1099 = vmatpush2.msra.mxu0 0.0
    %1100 = vmatprep.subr.mxu0 0.0
    %1101 = vmatpush2.msra.mxu0 0.0
    %1102 = vmatprep.subr.mxu0 0.0
    %1103 = vmatpush2.msra.mxu0 0.0
    %1104 = vmatprep.subr.mxu0 0.0
    %1105 = vmatpush2.msra.mxu0 0.0
    %1106 = vmatprep.subr.mxu0 0.0
    %1107 = vmatpush2.msra.mxu0 0.0
    %1108 = vmatprep.subr.mxu0 0.0
    %1109 = vmatpush2.msra.mxu0 0.0
    %1110 = vmatprep.subr.mxu0 0.0
    %1111 = vmatpush2.msra.mxu0 0.0
    %1112 = vmatprep.subr.mxu0 0.0
    %1113 = vmatpush2.msra.mxu0 0.0
    %1114 = vmatprep.subr.mxu0 0.0
    %1115 = vmatpush2.msra.mxu0 0.0
    %1116 = vmatprep.subr.mxu0 0.0
    %1117 = vmatpush2.msra.mxu0 0.0
    %1118 = vmatprep.subr.mxu0 0.0
    %1119 = vmatpush2.msra.mxu0 0.0
    %1120 = vmatprep.mubr.f32.mxu0 0.0
    %v1121 = vand.u32 %v896, 4294901760
    %v1122 = vsub.f32 %v896, %v1121
    %1123 = vmatmul.mubr.f32.gmra.mxu0 %v1122
    %v1124 = vpop.f32.mrf.mxu0
    %v1125 = vadd.f32 %v1051, %v1124
    %v1126 = vpop.f32.mrf.mxu0
    %1127 = vdwg.mxu0
    %1128 = vmatprep.subr.mxu0 0.0
    %1129 = vmatpush1.msra.mxu0 0.0
    %1130 = vmatprep.subr.mxu0 0.0
    %1131 = vmatpush1.msra.mxu0 0.0
    %1132 = vmatprep.subr.mxu0 0.0
    %1133 = vmatpush1.msra.mxu0 0.0
    %1134 = vmatprep.subr.mxu0 0.0
    %1135 = vmatpush1.msra.mxu0 0.0
    %1136 = vmatprep.subr.mxu0 0.0
    %1137 = vmatpush1.msra.mxu0 0.0
    %1138 = vmatprep.subr.mxu0 0.0
    %1139 = vmatpush1.msra.mxu0 0.0
    %1140 = vmatprep.subr.mxu0 0.0
    %1141 = vmatpush1.msra.mxu0 0.0
    %1142 = vmatprep.subr.mxu0 0.0
    %1143 = vmatpush1.msra.mxu0 0.0
    %1144 = vmatprep.subr.mxu0 0.0
    %1145 = vmatpush1.msra.mxu0 0.0
    %1146 = vmatprep.subr.mxu0 0.0
    %1147 = vmatpush1.msra.mxu0 0.0
    %1148 = vmatprep.subr.mxu0 0.0
    %1149 = vmatpush1.msra.mxu0 0.0
    %1150 = vmatprep.subr.mxu0 0.0
    %1151 = vmatpush1.msra.mxu0 0.0
    %1152 = vmatprep.subr.mxu0 0.0
    %1153 = vmatpush1.msra.mxu0 0.0
    %1154 = vmatprep.subr.mxu0 0.0
    %1155 = vmatpush1.msra.mxu0 0.0
    %1156 = vmatprep.subr.mxu0 0.0
    %1157 = vmatpush1.msra.mxu0 0.0
    %1158 = vmatprep.subr.mxu0 0.0
    %v1159 = vand.u32 %v900, 4294901760
    %1160 = vmatpush1.msra.mxu0 %v1159
    %1161 = vmatprep.subr.mxu0 0.0
    %1162 = vmatpush2.msra.mxu0 0.0
    %1163 = vmatprep.subr.mxu0 0.0
    %1164 = vmatpush2.msra.mxu0 0.0
    %1165 = vmatprep.subr.mxu0 0.0
    %1166 = vmatpush2.msra.mxu0 0.0
    %1167 = vmatprep.subr.mxu0 0.0
    %1168 = vmatpush2.msra.mxu0 0.0
    %1169 = vmatprep.subr.mxu0 0.0
    %1170 = vmatpush2.msra.mxu0 0.0
    %1171 = vmatprep.subr.mxu0 0.0
    %1172 = vmatpush2.msra.mxu0 0.0
    %1173 = vmatprep.subr.mxu0 0.0
    %1174 = vmatpush2.msra.mxu0 0.0
    %1175 = vmatprep.subr.mxu0 0.0
    %1176 = vmatpush2.msra.mxu0 0.0
    %1177 = vmatprep.subr.mxu0 0.0
    %1178 = vmatpush2.msra.mxu0 0.0
    %1179 = vmatprep.subr.mxu0 0.0
    %1180 = vmatpush2.msra.mxu0 0.0
    %1181 = vmatprep.subr.mxu0 0.0
    %1182 = vmatpush2.msra.mxu0 0.0
    %1183 = vmatprep.subr.mxu0 0.0
    %1184 = vmatpush2.msra.mxu0 0.0
    %1185 = vmatprep.subr.mxu0 0.0
    %1186 = vmatpush2.msra.mxu0 0.0
    %1187 = vmatprep.subr.mxu0 0.0
    %1188 = vmatpush2.msra.mxu0 0.0
    %1189 = vmatprep.subr.mxu0 0.0
    %1190 = vmatpush2.msra.mxu0 0.0
    %1191 = vmatprep.subr.mxu0 0.0
    %1192 = vmatpush2.msra.mxu0 0.0
    %1193 = vmatprep.mubr.f32.mxu0 0.0
    %v1194 = vand.u32 %v896, 4294901760
    %v1195 = vsub.f32 %v896, %v1194
    %v1196 = vand.u32 %v1195, 4294901760
    %1197 = vmatmul.mubr.f32.gmra.mxu0 %v1196
    %v1198 = vpop.f32.mrf.mxu0
    %v1199 = vadd.f32 %v1125, %v1198
    %v1200 = vpop.f32.mrf.mxu0
    %1201 = vdwg.mxu0
    %1202 = vmatprep.subr.mxu0 0.0
    %1203 = vmatpush1.msra.mxu0 0.0
    %1204 = vmatprep.subr.mxu0 0.0
    %1205 = vmatpush1.msra.mxu0 0.0
    %1206 = vmatprep.subr.mxu0 0.0
    %1207 = vmatpush1.msra.mxu0 0.0
    %1208 = vmatprep.subr.mxu0 0.0
    %1209 = vmatpush1.msra.mxu0 0.0
    %1210 = vmatprep.subr.mxu0 0.0
    %1211 = vmatpush1.msra.mxu0 0.0
    %1212 = vmatprep.subr.mxu0 0.0
    %1213 = vmatpush1.msra.mxu0 0.0
    %1214 = vmatprep.subr.mxu0 0.0
    %1215 = vmatpush1.msra.mxu0 0.0
    %1216 = vmatprep.subr.mxu0 0.0
    %1217 = vmatpush1.msra.mxu0 0.0
    %1218 = vmatprep.subr.mxu0 0.0
    %1219 = vmatpush1.msra.mxu0 0.0
    %1220 = vmatprep.subr.mxu0 0.0
    %1221 = vmatpush1.msra.mxu0 0.0
    %1222 = vmatprep.subr.mxu0 0.0
    %1223 = vmatpush1.msra.mxu0 0.0
    %1224 = vmatprep.subr.mxu0 0.0
    %1225 = vmatpush1.msra.mxu0 0.0
    %1226 = vmatprep.subr.mxu0 0.0
    %1227 = vmatpush1.msra.mxu0 0.0
    %1228 = vmatprep.subr.mxu0 0.0
    %1229 = vmatpush1.msra.mxu0 0.0
    %1230 = vmatprep.subr.mxu0 0.0
    %1231 = vmatpush1.msra.mxu0 0.0
    %1232 = vmatprep.subr.mxu0 0.0
    %v1233 = vand.u32 %v900, 4294901760
    %v1234 = vsub.f32 %v900, %v1233
    %v1235 = vand.u32 %v1234, 4294901760
    %1236 = vmatpush1.msra.mxu0 %v1235
    %1237 = vmatprep.subr.mxu0 0.0
    %1238 = vmatpush2.msra.mxu0 0.0
    %1239 = vmatprep.subr.mxu0 0.0
    %1240 = vmatpush2.msra.mxu0 0.0
    %1241 = vmatprep.subr.mxu0 0.0
    %1242 = vmatpush2.msra.mxu0 0.0
    %1243 = vmatprep.subr.mxu0 0.0
    %1244 = vmatpush2.msra.mxu0 0.0
    %1245 = vmatprep.subr.mxu0 0.0
    %1246 = vmatpush2.msra.mxu0 0.0
    %1247 = vmatprep.subr.mxu0 0.0
    %1248 = vmatpush2.msra.mxu0 0.0
    %1249 = vmatprep.subr.mxu0 0.0
    %1250 = vmatpush2.msra.mxu0 0.0
    %1251 = vmatprep.subr.mxu0 0.0
    %1252 = vmatpush2.msra.mxu0 0.0
    %1253 = vmatprep.subr.mxu0 0.0
    %1254 = vmatpush2.msra.mxu0 0.0
    %1255 = vmatprep.subr.mxu0 0.0
    %1256 = vmatpush2.msra.mxu0 0.0
    %1257 = vmatprep.subr.mxu0 0.0
    %1258 = vmatpush2.msra.mxu0 0.0
    %1259 = vmatprep.subr.mxu0 0.0
    %1260 = vmatpush2.msra.mxu0 0.0
    %1261 = vmatprep.subr.mxu0 0.0
    %1262 = vmatpush2.msra.mxu0 0.0
    %1263 = vmatprep.subr.mxu0 0.0
    %1264 = vmatpush2.msra.mxu0 0.0
    %1265 = vmatprep.subr.mxu0 0.0
    %1266 = vmatpush2.msra.mxu0 0.0
    %1267 = vmatprep.subr.mxu0 0.0
    %1268 = vmatpush2.msra.mxu0 0.0
    %1269 = vmatprep.mubr.f32.mxu0 0.0
    %v1270 = vand.u32 %v896, 4294901760
    %1271 = vmatmul.mubr.f32.gmra.mxu0 %v1270
    %v1272 = vpop.f32.mrf.mxu0
    %v1273 = vadd.f32 %v1199, %v1272
    %v1274 = vpop.f32.mrf.mxu0
    %1275 = vdwg.mxu0
    %1276 = vmatprep.subr.mxu0 0.0
    %1277 = vmatpush1.msra.mxu0 0.0
    %1278 = vmatprep.subr.mxu0 0.0
    %1279 = vmatpush1.msra.mxu0 0.0
    %1280 = vmatprep.subr.mxu0 0.0
    %1281 = vmatpush1.msra.mxu0 0.0
    %1282 = vmatprep.subr.mxu0 0.0
    %1283 = vmatpush1.msra.mxu0 0.0
    %1284 = vmatprep.subr.mxu0 0.0
    %1285 = vmatpush1.msra.mxu0 0.0
    %1286 = vmatprep.subr.mxu0 0.0
    %1287 = vmatpush1.msra.mxu0 0.0
    %1288 = vmatprep.subr.mxu0 0.0
    %1289 = vmatpush1.msra.mxu0 0.0
    %1290 = vmatprep.subr.mxu0 0.0
    %1291 = vmatpush1.msra.mxu0 0.0
    %1292 = vmatprep.subr.mxu0 0.0
    %1293 = vmatpush1.msra.mxu0 0.0
    %1294 = vmatprep.subr.mxu0 0.0
    %1295 = vmatpush1.msra.mxu0 0.0
    %1296 = vmatprep.subr.mxu0 0.0
    %1297 = vmatpush1.msra.mxu0 0.0
    %1298 = vmatprep.subr.mxu0 0.0
    %1299 = vmatpush1.msra.mxu0 0.0
    %1300 = vmatprep.subr.mxu0 0.0
    %1301 = vmatpush1.msra.mxu0 0.0
    %1302 = vmatprep.subr.mxu0 0.0
    %1303 = vmatpush1.msra.mxu0 0.0
    %1304 = vmatprep.subr.mxu0 0.0
    %1305 = vmatpush1.msra.mxu0 0.0
    %1306 = vmatprep.subr.mxu0 0.0
    %v1307 = vand.u32 %v900, 4294901760
    %1308 = vmatpush1.msra.mxu0 %v1307
    %1309 = vmatprep.subr.mxu0 0.0
    %1310 = vmatpush2.msra.mxu0 0.0
    %1311 = vmatprep.subr.mxu0 0.0
    %1312 = vmatpush2.msra.mxu0 0.0
    %1313 = vmatprep.subr.mxu0 0.0
    %1314 = vmatpush2.msra.mxu0 0.0
    %1315 = vmatprep.subr.mxu0 0.0
    %1316 = vmatpush2.msra.mxu0 0.0
    %1317 = vmatprep.subr.mxu0 0.0
    %1318 = vmatpush2.msra.mxu0 0.0
    %1319 = vmatprep.subr.mxu0 0.0
    %1320 = vmatpush2.msra.mxu0 0.0
    %1321 = vmatprep.subr.mxu0 0.0
    %1322 = vmatpush2.msra.mxu0 0.0
    %1323 = vmatprep.subr.mxu0 0.0
    %1324 = vmatpush2.msra.mxu0 0.0
    %1325 = vmatprep.subr.mxu0 0.0
    %1326 = vmatpush2.msra.mxu0 0.0
    %1327 = vmatprep.subr.mxu0 0.0
    %1328 = vmatpush2.msra.mxu0 0.0
    %1329 = vmatprep.subr.mxu0 0.0
    %1330 = vmatpush2.msra.mxu0 0.0
    %1331 = vmatprep.subr.mxu0 0.0
    %1332 = vmatpush2.msra.mxu0 0.0
    %1333 = vmatprep.subr.mxu0 0.0
    %1334 = vmatpush2.msra.mxu0 0.0
    %1335 = vmatprep.subr.mxu0 0.0
    %1336 = vmatpush2.msra.mxu0 0.0
    %1337 = vmatprep.subr.mxu0 0.0
    %1338 = vmatpush2.msra.mxu0 0.0
    %1339 = vmatprep.subr.mxu0 0.0
    %1340 = vmatpush2.msra.mxu0 0.0
    %1341 = vmatprep.mubr.f32.mxu0 0.0
    %v1342 = vand.u32 %v896, 4294901760
    %1343 = vmatmul.mubr.f32.gmra.mxu0 %v1342
    %v1344 = vpop.f32.mrf.mxu0
    %v1345 = vadd.f32 %v1273, %v1344
    %v1346 = vpop.f32.mrf.mxu0
    %1347 = vdwg.mxu0
    %v1349 = vrot.slane %v1345, 4
    %v1351 = vadd.f32 %v1345, %v1349
    %v1352 = vxor.u32 %v1351, 2147483648
    %v1353 = vmul.f32 %v1352, 1.442695
    %v1354 = vpow.pop %v1353
    %v1355 = vadd.f32 %v1354, 1.0
    %v1356 = vrcp.pop %v1355
    %v1357 = vmul.f32 1.0, %v1356
    %v1358 = vlaneseq
    %v1359 = vshrl.u32 %v1358, 7
    %v1360 = vsub.s32 0, %v1359
    %v1361 = vrot.slane %v1357, %v1360
    %1363 = vbcast.lane.b32.xlu0 %v1361, 256
    %v1364 = vpop.permute.xlu0 %1363
    %s1366 = sor.u32 256, 8
    %1367 = vbcast.lane.b32.xlu0 %v1361, %s1366
    %v1368 = vpop.permute.xlu0 %1367
    %s1370 = sor.u32 256, 16
    %1371 = vbcast.lane.b32.xlu0 %v1361, %s1370
    %v1372 = vpop.permute.xlu0 %1371
    %s1374 = sor.u32 256, 24
    %1375 = vbcast.lane.b32.xlu0 %v1361, %s1374
    %v1376 = vpop.permute.xlu0 %1375
    %v1377 = vlaneseq
    %v1378 = vshrl.u32 %v1377, 7
    %v1379 = vsub.s32 1, %v1378
    %v1380 = vrot.slane %v1357, %v1379
    %1382 = vbcast.lane.b32.xlu0 %v1380, 256
    %v1383 = vpop.permute.xlu0 %1382
    %s1385 = sor.u32 256, 8
    %1386 = vbcast.lane.b32.xlu0 %v1380, %s1385
    %v1387 = vpop.permute.xlu0 %1386
    %s1389 = sor.u32 256, 16
    %1390 = vbcast.lane.b32.xlu0 %v1380, %s1389
    %v1391 = vpop.permute.xlu0 %1390
    %s1393 = sor.u32 256, 24
    %1394 = vbcast.lane.b32.xlu0 %v1380, %s1393
    %v1395 = vpop.permute.xlu0 %1394
    %v1396 = vlaneseq
    %v1397 = vshrl.u32 %v1396, 7
    %v1398 = vsub.s32 2, %v1397
    %v1399 = vrot.slane %v1357, %v1398
    %1401 = vbcast.lane.b32.xlu0 %v1399, 256
    %v1402 = vpop.permute.xlu0 %1401
    %s1404 = sor.u32 256, 8
    %1405 = vbcast.lane.b32.xlu0 %v1399, %s1404
    %v1406 = vpop.permute.xlu0 %1405
    %s1408 = sor.u32 256, 16
    %1409 = vbcast.lane.b32.xlu0 %v1399, %s1408
    %v1410 = vpop.permute.xlu0 %1409
    %s1412 = sor.u32 256, 24
    %1413 = vbcast.lane.b32.xlu0 %v1399, %s1412
    %v1414 = vpop.permute.xlu0 %1413
    %v1415 = vlaneseq
    %v1416 = vshrl.u32 %v1415, 7
    %v1417 = vsub.s32 3, %v1416
    %v1418 = vrot.slane %v1357, %v1417
    %1420 = vbcast.lane.b32.xlu0 %v1418, 256
    %v1421 = vpop.permute.xlu0 %1420
    %s1423 = sor.u32 256, 8
    %1424 = vbcast.lane.b32.xlu0 %v1418, %s1423
    %v1425 = vpop.permute.xlu0 %1424
    %s1427 = sor.u32 256, 16
    %1428 = vbcast.lane.b32.xlu0 %v1418, %s1427
    %v1429 = vpop.permute.xlu0 %1428
    %s1431 = sor.u32 256, 24
    %1432 = vbcast.lane.b32.xlu0 %v1418, %s1431
    %v1433 = vpop.permute.xlu0 %1432
    %v1434 = vmul.f32 %v46, %v1364
    %v1435 = vmul.f32 %v47, %v1364
    %v1436 = vmul.f32 %v48, %v1368
    %v1437 = vmul.f32 %v49, %v1368
    %v1438 = vmul.f32 %v50, %v1372
    %v1439 = vmul.f32 %v51, %v1372
    %v1440 = vmul.f32 %v52, %v1376
    %v1441 = vmul.f32 %v53, %v1376
    %v1442 = vmul.f32 %v54, %v1383
    %v1443 = vmul.f32 %v55, %v1383
    %v1444 = vmul.f32 %v56, %v1387
    %v1445 = vmul.f32 %v57, %v1387
    %v1446 = vmul.f32 %v58, %v1391
    %v1447 = vmul.f32 %v59, %v1391
    %v1448 = vmul.f32 %v60, %v1395
    %v1449 = vmul.f32 %v61, %v1395
    %v1450 = vmul.f32 %v62, %v1402
    %v1451 = vmul.f32 %v63, %v1402
    %v1452 = vmul.f32 %v64, %v1406
    %v1453 = vmul.f32 %v65, %v1406
    %v1454 = vmul.f32 %v66, %v1410
    %v1455 = vmul.f32 %v67, %v1410
    %v1456 = vmul.f32 %v68, %v1414
    %v1457 = vmul.f32 %v69, %v1414
    %v1458 = vmul.f32 %v70, %v1421
    %v1459 = vmul.f32 %v71, %v1421
    %v1460 = vmul.f32 %v72, %v1425
    %v1461 = vmul.f32 %v73, %v1425
    %v1462 = vmul.f32 %v74, %v1429
    %v1463 = vmul.f32 %v75, %v1429
    %v1464 = vmul.f32 %v76, %v1433
    %v1465 = vmul.f32 %v77, %v1433
    %v1466 = vadd.f32 %v1434, %v1436
    %v1467 = vadd.f32 %v1466, %v1438
    %v1468 = vadd.f32 %v1467, %v1440
    %v1469 = vrot.slane %v1468, 4
    %v1470 = vadd.f32 %v1468, %v1469
    %v1471 = vrot.slane %v1470, 2
    %v1472 = vadd.f32 %v1470, %v1471
    %v1473 = vrot.slane %v1472, 1
    %v1474 = vadd.f32 %v1472, %v1473
    %v1475 = vadd.f32 %v1435, %v1437
    %v1476 = vadd.f32 %v1475, %v1439
    %v1477 = vadd.f32 %v1476, %v1441
    %v1478 = vrot.slane %v1477, 4
    %v1479 = vadd.f32 %v1477, %v1478
    %v1480 = vrot.slane %v1479, 2
    %v1481 = vadd.f32 %v1479, %v1480
    %v1482 = vrot.slane %v1481, 1
    %v1483 = vadd.f32 %v1481, %v1482
    %v1484 = vadd.f32 %v1442, %v1444
    %v1485 = vadd.f32 %v1484, %v1446
    %v1486 = vadd.f32 %v1485, %v1448
    %v1487 = vrot.slane %v1486, 4
    %v1488 = vadd.f32 %v1486, %v1487
    %v1489 = vrot.slane %v1488, 2
    %v1490 = vadd.f32 %v1488, %v1489
    %v1491 = vrot.slane %v1490, 1
    %v1492 = vadd.f32 %v1490, %v1491
    %v1493 = vadd.f32 %v1443, %v1445
    %v1494 = vadd.f32 %v1493, %v1447
    %v1495 = vadd.f32 %v1494, %v1449
    %v1496 = vrot.slane %v1495, 4
    %v1497 = vadd.f32 %v1495, %v1496
    %v1498 = vrot.slane %v1497, 2
    %v1499 = vadd.f32 %v1497, %v1498
    %v1500 = vrot.slane %v1499, 1
    %v1501 = vadd.f32 %v1499, %v1500
    %v1502 = vadd.f32 %v1450, %v1452
    %v1503 = vadd.f32 %v1502, %v1454
    %v1504 = vadd.f32 %v1503, %v1456
    %v1505 = vrot.slane %v1504, 4
    %v1506 = vadd.f32 %v1504, %v1505
    %v1507 = vrot.slane %v1506, 2
    %v1508 = vadd.f32 %v1506, %v1507
    %v1509 = vrot.slane %v1508, 1
    %v1510 = vadd.f32 %v1508, %v1509
    %v1511 = vadd.f32 %v1451, %v1453
    %v1512 = vadd.f32 %v1511, %v1455
    %v1513 = vadd.f32 %v1512, %v1457
    %v1514 = vrot.slane %v1513, 4
    %v1515 = vadd.f32 %v1513, %v1514
    %v1516 = vrot.slane %v1515, 2
    %v1517 = vadd.f32 %v1515, %v1516
    %v1518 = vrot.slane %v1517, 1
    %v1519 = vadd.f32 %v1517, %v1518
    %v1520 = vadd.f32 %v1458, %v1460
    %v1521 = vadd.f32 %v1520, %v1462
    %v1522 = vadd.f32 %v1521, %v1464
    %v1523 = vrot.slane %v1522, 4
    %v1524 = vadd.f32 %v1522, %v1523
    %v1525 = vrot.slane %v1524, 2
    %v1526 = vadd.f32 %v1524, %v1525
    %v1527 = vrot.slane %v1526, 1
    %v1528 = vadd.f32 %v1526, %v1527
    %v1529 = vadd.f32 %v1459, %v1461
    %v1530 = vadd.f32 %v1529, %v1463
    %v1531 = vadd.f32 %v1530, %v1465
    %v1532 = vrot.slane %v1531, 4
    %v1533 = vadd.f32 %v1531, %v1532
    %v1534 = vrot.slane %v1533, 2
    %v1535 = vadd.f32 %v1533, %v1534
    %v1536 = vrot.slane %v1535, 1
    %v1537 = vadd.f32 %v1535, %v1536
    %v1538 = vrcp.pop 32.0
    %v1539 = vmul.f32 %v1474, %v1538
    %v1540 = vmul.f32 %v1483, %v1538
    %v1541 = vmul.f32 %v1492, %v1538
    %v1542 = vmul.f32 %v1501, %v1538
    %v1543 = vmul.f32 %v1510, %v1538
    %v1544 = vmul.f32 %v1519, %v1538
    %v1545 = vmul.f32 %v1528, %v1538
    %v1546 = vmul.f32 %v1537, %v1538
    %v1547 = vmax.f32 %v1434, %v1436
    %v1548 = vmax.f32 %v1547, %v1438
    %v1549 = vmax.f32 %v1548, %v1440
    %v1550 = vrot.slane %v1549, 4
    %v1551 = vmax.f32 %v1549, %v1550
    %v1552 = vrot.slane %v1551, 2
    %v1553 = vmax.f32 %v1551, %v1552
    %v1554 = vrot.slane %v1553, 1
    %v1555 = vmax.f32 %v1553, %v1554
    %v1556 = vmax.f32 %v1435, %v1437
    %v1557 = vmax.f32 %v1556, %v1439
    %v1558 = vmax.f32 %v1557, %v1441
    %v1559 = vrot.slane %v1558, 4
    %v1560 = vmax.f32 %v1558, %v1559
    %v1561 = vrot.slane %v1560, 2
    %v1562 = vmax.f32 %v1560, %v1561
    %v1563 = vrot.slane %v1562, 1
    %v1564 = vmax.f32 %v1562, %v1563
    %v1565 = vmax.f32 %v1442, %v1444
    %v1566 = vmax.f32 %v1565, %v1446
    %v1567 = vmax.f32 %v1566, %v1448
    %v1568 = vrot.slane %v1567, 4
    %v1569 = vmax.f32 %v1567, %v1568
    %v1570 = vrot.slane %v1569, 2
    %v1571 = vmax.f32 %v1569, %v1570
    %v1572 = vrot.slane %v1571, 1
    %v1573 = vmax.f32 %v1571, %v1572
    %v1574 = vmax.f32 %v1443, %v1445
    %v1575 = vmax.f32 %v1574, %v1447
    %v1576 = vmax.f32 %v1575, %v1449
    %v1577 = vrot.slane %v1576, 4
    %v1578 = vmax.f32 %v1576, %v1577
    %v1579 = vrot.slane %v1578, 2
    %v1580 = vmax.f32 %v1578, %v1579
    %v1581 = vrot.slane %v1580, 1
    %v1582 = vmax.f32 %v1580, %v1581
    %v1583 = vmax.f32 %v1450, %v1452
    %v1584 = vmax.f32 %v1583, %v1454
    %v1585 = vmax.f32 %v1584, %v1456
    %v1586 = vrot.slane %v1585, 4
    %v1587 = vmax.f32 %v1585, %v1586
    %v1588 = vrot.slane %v1587, 2
    %v1589 = vmax.f32 %v1587, %v1588
    %v1590 = vrot.slane %v1589, 1
    %v1591 = vmax.f32 %v1589, %v1590
    %v1592 = vmax.f32 %v1451, %v1453
    %v1593 = vmax.f32 %v1592, %v1455
    %v1594 = vmax.f32 %v1593, %v1457
    %v1595 = vrot.slane %v1594, 4
    %v1596 = vmax.f32 %v1594, %v1595
    %v1597 = vrot.slane %v1596, 2
    %v1598 = vmax.f32 %v1596, %v1597
    %v1599 = vrot.slane %v1598, 1
    %v1600 = vmax.f32 %v1598, %v1599
    %v1601 = vmax.f32 %v1458, %v1460
    %v1602 = vmax.f32 %v1601, %v1462
    %v1603 = vmax.f32 %v1602, %v1464
    %v1604 = vrot.slane %v1603, 4
    %v1605 = vmax.f32 %v1603, %v1604
    %v1606 = vrot.slane %v1605, 2
    %v1607 = vmax.f32 %v1605, %v1606
    %v1608 = vrot.slane %v1607, 1
    %v1609 = vmax.f32 %v1607, %v1608
    %v1610 = vmax.f32 %v1459, %v1461
    %v1611 = vmax.f32 %v1610, %v1463
    %v1612 = vmax.f32 %v1611, %v1465
    %v1613 = vrot.slane %v1612, 4
    %v1614 = vmax.f32 %v1612, %v1613
    %v1615 = vrot.slane %v1614, 2
    %v1616 = vmax.f32 %v1614, %v1615
    %v1617 = vrot.slane %v1616, 1
    %v1618 = vmax.f32 %v1616, %v1617
    %v1627 = vsel %vm291, %v1541, %v1539
    %v1628 = vsel %vm293, %v1543, %v1627
    %v1629 = vsel %vm295, %v1545, %v1628
    %v1630 = vsel %vm291, %v1542, %v1540
    %v1631 = vsel %vm293, %v1544, %v1630
    %v1632 = vsel %vm295, %v1546, %v1631
    %v1643 = vsel %vm291, %v1573, %v1555
    %v1644 = vsel %vm293, %v1591, %v1643
    %v1645 = vsel %vm295, %v1609, %v1644
    %v1646 = vsel %vm291, %v1582, %v1564
    %v1647 = vsel %vm293, %v1600, %v1646
    %v1648 = vsel %vm295, %v1618, %v1647
    %v1651 = vld [vmem:[#allocation5] sm:$0xff]
    %v1652 = vld [vmem:[#allocation5 + $0x8] sm:$0xff]
    %v1653 = vld [vmem:[#allocation5 + $0x10] sm:$0xff]
    %v1654 = vld [vmem:[#allocation5 + $0x18] sm:$0xff]
    %v1655 = vld [vmem:[#allocation5 + $0x20] sm:$0xff]
    %v1656 = vld [vmem:[#allocation5 + $0x28] sm:$0xff]
    %v1657 = vld [vmem:[#allocation5 + $0x30] sm:$0xff]
    %v1658 = vld [vmem:[#allocation5 + $0x38] sm:$0xff]
    %v1659 = vld [vmem:[#allocation5 + $0x40] sm:$0xff]
    %v1660 = vld [vmem:[#allocation5 + $0x48] sm:$0xff]
    %v1661 = vld [vmem:[#allocation5 + $0x50] sm:$0xff]
    %v1662 = vld [vmem:[#allocation5 + $0x58] sm:$0xff]
    %v1663 = vld [vmem:[#allocation5 + $0x60] sm:$0xff]
    %v1664 = vld [vmem:[#allocation5 + $0x68] sm:$0xff]
    %v1665 = vld [vmem:[#allocation5 + $0x70] sm:$0xff]
    %v1666 = vld [vmem:[#allocation5 + $0x78] sm:$0xff]
    %v1667 = vld [vmem:[#allocation5 + $0x80] sm:$0xff]
    %v1668 = vld [vmem:[#allocation5 + $0x88] sm:$0xff]
    %v1669 = vld [vmem:[#allocation5 + $0x90] sm:$0xff]
    %v1670 = vld [vmem:[#allocation5 + $0x98] sm:$0xff]
    %v1671 = vld [vmem:[#allocation5 + $0xa0] sm:$0xff]
    %v1672 = vld [vmem:[#allocation5 + $0xa8] sm:$0xff]
    %v1673 = vld [vmem:[#allocation5 + $0xb0] sm:$0xff]
    %v1674 = vld [vmem:[#allocation5 + $0xb8] sm:$0xff]
    %v1675 = vld [vmem:[#allocation5 + $0xc0] sm:$0xff]
    %v1676 = vld [vmem:[#allocation5 + $0xc8] sm:$0xff]
    %v1677 = vld [vmem:[#allocation5 + $0xd0] sm:$0xff]
    %v1678 = vld [vmem:[#allocation5 + $0xd8] sm:$0xff]
    %v1679 = vld [vmem:[#allocation5 + $0xe0] sm:$0xff]
    %v1680 = vld [vmem:[#allocation5 + $0xe8] sm:$0xff]
    %v1681 = vld [vmem:[#allocation5 + $0xf0] sm:$0xff]
    %v1682 = vld [vmem:[#allocation5 + $0xf8] sm:$0xff]
    %v1683 = vld [vmem:[#allocation5 + $0x100] sm:$0xff]
    %v1684 = vld [vmem:[#allocation5 + $0x108] sm:$0xff]
    %v1685 = vld [vmem:[#allocation5 + $0x110] sm:$0xff]
    %v1686 = vld [vmem:[#allocation5 + $0x118] sm:$0xff]
    %v1687 = vld [vmem:[#allocation5 + $0x120] sm:$0xff]
    %v1688 = vld [vmem:[#allocation5 + $0x128] sm:$0xff]
    %v1689 = vld [vmem:[#allocation5 + $0x130] sm:$0xff]
    %v1690 = vld [vmem:[#allocation5 + $0x138] sm:$0xff]
    %v1691 = vld [vmem:[#allocation5 + $0x140] sm:$0xff]
    %v1692 = vld [vmem:[#allocation5 + $0x148] sm:$0xff]
    %v1693 = vld [vmem:[#allocation5 + $0x150] sm:$0xff]
    %v1694 = vld [vmem:[#allocation5 + $0x158] sm:$0xff]
    %v1695 = vld [vmem:[#allocation5 + $0x160] sm:$0xff]
    %v1696 = vld [vmem:[#allocation5 + $0x168] sm:$0xff]
    %v1697 = vld [vmem:[#allocation5 + $0x170] sm:$0xff]
    %v1698 = vld [vmem:[#allocation5 + $0x178] sm:$0xff]
    %v1699 = vld [vmem:[#allocation5 + $0x180] sm:$0xff]
    %v1700 = vld [vmem:[#allocation5 + $0x188] sm:$0xff]
    %v1701 = vld [vmem:[#allocation5 + $0x190] sm:$0xff]
    %v1702 = vld [vmem:[#allocation5 + $0x198] sm:$0xff]
    %v1703 = vld [vmem:[#allocation5 + $0x1a0] sm:$0xff]
    %v1704 = vld [vmem:[#allocation5 + $0x1a8] sm:$0xff]
    %v1705 = vld [vmem:[#allocation5 + $0x1b0] sm:$0xff]
    %v1706 = vld [vmem:[#allocation5 + $0x1b8] sm:$0xff]
    %v1707 = vld [vmem:[#allocation5 + $0x1c0] sm:$0xff]
    %v1708 = vld [vmem:[#allocation5 + $0x1c8] sm:$0xff]
    %v1709 = vld [vmem:[#allocation5 + $0x1d0] sm:$0xff]
    %v1710 = vld [vmem:[#allocation5 + $0x1d8] sm:$0xff]
    %v1711 = vld [vmem:[#allocation5 + $0x1e0] sm:$0xff]
    %v1712 = vld [vmem:[#allocation5 + $0x1e8] sm:$0xff]
    %v1713 = vld [vmem:[#allocation5 + $0x1f0] sm:$0xff]
    %v1714 = vld [vmem:[#allocation5 + $0x1f8] sm:$0xff]
    %v1715 = vld [vmem:[#allocation5 + $0x200] sm:$0xff]
    %v1716 = vld [vmem:[#allocation5 + $0x208] sm:$0xff]
    %v1717 = vld [vmem:[#allocation5 + $0x210] sm:$0xff]
    %v1718 = vld [vmem:[#allocation5 + $0x218] sm:$0xff]
    %v1719 = vld [vmem:[#allocation5 + $0x220] sm:$0xff]
    %v1720 = vld [vmem:[#allocation5 + $0x228] sm:$0xff]
    %v1721 = vld [vmem:[#allocation5 + $0x230] sm:$0xff]
    %v1722 = vld [vmem:[#allocation5 + $0x238] sm:$0xff]
    %v1723 = vld [vmem:[#allocation5 + $0x240] sm:$0xff]
    %v1724 = vld [vmem:[#allocation5 + $0x248] sm:$0xff]
    %v1725 = vld [vmem:[#allocation5 + $0x250] sm:$0xff]
    %v1726 = vld [vmem:[#allocation5 + $0x258] sm:$0xff]
    %v1727 = vld [vmem:[#allocation5 + $0x260] sm:$0xff]
    %v1728 = vld [vmem:[#allocation5 + $0x268] sm:$0xff]
    %v1729 = vld [vmem:[#allocation5 + $0x270] sm:$0xff]
    %v1730 = vld [vmem:[#allocation5 + $0x278] sm:$0xff]
    %v1731 = vld [vmem:[#allocation5 + $0x280] sm:$0xff]
    %v1732 = vld [vmem:[#allocation5 + $0x288] sm:$0xff]
    %v1733 = vld [vmem:[#allocation5 + $0x290] sm:$0xff]
    %v1734 = vld [vmem:[#allocation5 + $0x298] sm:$0xff]
    %v1735 = vld [vmem:[#allocation5 + $0x2a0] sm:$0xff]
    %v1736 = vld [vmem:[#allocation5 + $0x2a8] sm:$0xff]
    %v1737 = vld [vmem:[#allocation5 + $0x2b0] sm:$0xff]
    %v1738 = vld [vmem:[#allocation5 + $0x2b8] sm:$0xff]
    %v1739 = vld [vmem:[#allocation5 + $0x2c0] sm:$0xff]
    %v1740 = vld [vmem:[#allocation5 + $0x2c8] sm:$0xff]
    %v1741 = vld [vmem:[#allocation5 + $0x2d0] sm:$0xff]
    %v1742 = vld [vmem:[#allocation5 + $0x2d8] sm:$0xff]
    %v1743 = vld [vmem:[#allocation5 + $0x2e0] sm:$0xff]
    %v1744 = vld [vmem:[#allocation5 + $0x2e8] sm:$0xff]
    %v1745 = vld [vmem:[#allocation5 + $0x2f0] sm:$0xff]
    %v1746 = vld [vmem:[#allocation5 + $0x2f8] sm:$0xff]
    %v1747 = vld [vmem:[#allocation5 + $0x300] sm:$0xff]
    %v1748 = vld [vmem:[#allocation5 + $0x308] sm:$0xff]
    %v1749 = vld [vmem:[#allocation5 + $0x310] sm:$0xff]
    %v1750 = vld [vmem:[#allocation5 + $0x318] sm:$0xff]
    %v1751 = vld [vmem:[#allocation5 + $0x320] sm:$0xff]
    %v1752 = vld [vmem:[#allocation5 + $0x328] sm:$0xff]
    %v1753 = vld [vmem:[#allocation5 + $0x330] sm:$0xff]
    %v1754 = vld [vmem:[#allocation5 + $0x338] sm:$0xff]
    %v1755 = vld [vmem:[#allocation5 + $0x340] sm:$0xff]
    %v1756 = vld [vmem:[#allocation5 + $0x348] sm:$0xff]
    %v1757 = vld [vmem:[#allocation5 + $0x350] sm:$0xff]
    %v1758 = vld [vmem:[#allocation5 + $0x358] sm:$0xff]
    %v1759 = vld [vmem:[#allocation5 + $0x360] sm:$0xff]
    %v1760 = vld [vmem:[#allocation5 + $0x368] sm:$0xff]
    %v1761 = vld [vmem:[#allocation5 + $0x370] sm:$0xff]
    %v1762 = vld [vmem:[#allocation5 + $0x378] sm:$0xff]
    %v1763 = vld [vmem:[#allocation5 + $0x380] sm:$0xff]
    %v1764 = vld [vmem:[#allocation5 + $0x388] sm:$0xff]
    %v1765 = vld [vmem:[#allocation5 + $0x390] sm:$0xff]
    %v1766 = vld [vmem:[#allocation5 + $0x398] sm:$0xff]
    %v1767 = vld [vmem:[#allocation5 + $0x3a0] sm:$0xff]
    %v1768 = vld [vmem:[#allocation5 + $0x3a8] sm:$0xff]
    %v1769 = vld [vmem:[#allocation5 + $0x3b0] sm:$0xff]
    %v1770 = vld [vmem:[#allocation5 + $0x3b8] sm:$0xff]
    %v1771 = vld [vmem:[#allocation5 + $0x3c0] sm:$0xff]
    %v1772 = vld [vmem:[#allocation5 + $0x3c8] sm:$0xff]
    %v1773 = vld [vmem:[#allocation5 + $0x3d0] sm:$0xff]
    %v1774 = vld [vmem:[#allocation5 + $0x3d8] sm:$0xff]
    %v1775 = vld [vmem:[#allocation5 + $0x3e0] sm:$0xff]
    %v1776 = vld [vmem:[#allocation5 + $0x3e8] sm:$0xff]
    %v1777 = vld [vmem:[#allocation5 + $0x3f0] sm:$0xff]
    %v1778 = vld [vmem:[#allocation5 + $0x3f8] sm:$0xff]
    %v1779 = vand.u32 %v1682, 4294901760
    %1780 = vmatprep.subr.mxu0 %v1779
    %v1781 = vand.u32 %v1681, 4294901760
    %1782 = vmatpush1.msra.mxu0 %v1781
    %v1783 = vand.u32 %v1680, 4294901760
    %1784 = vmatprep.subr.mxu0 %v1783
    %v1785 = vand.u32 %v1679, 4294901760
    %1786 = vmatpush1.msra.mxu0 %v1785
    %v1787 = vand.u32 %v1678, 4294901760
    %1788 = vmatprep.subr.mxu0 %v1787
    %v1789 = vand.u32 %v1677, 4294901760
    %1790 = vmatpush1.msra.mxu0 %v1789
    %v1791 = vand.u32 %v1676, 4294901760
    %1792 = vmatprep.subr.mxu0 %v1791
    %v1793 = vand.u32 %v1675, 4294901760
    %1794 = vmatpush1.msra.mxu0 %v1793
    %v1795 = vand.u32 %v1674, 4294901760
    %1796 = vmatprep.subr.mxu0 %v1795
    %v1797 = vand.u32 %v1673, 4294901760
    %1798 = vmatpush1.msra.mxu0 %v1797
    %v1799 = vand.u32 %v1672, 4294901760
    %1800 = vmatprep.subr.mxu0 %v1799
    %v1801 = vand.u32 %v1671, 4294901760
    %1802 = vmatpush1.msra.mxu0 %v1801
    %v1803 = vand.u32 %v1670, 4294901760
    %1804 = vmatprep.subr.mxu0 %v1803
    %v1805 = vand.u32 %v1669, 4294901760
    %1806 = vmatpush1.msra.mxu0 %v1805
    %v1807 = vand.u32 %v1668, 4294901760
    %1808 = vmatprep.subr.mxu0 %v1807
    %v1809 = vand.u32 %v1667, 4294901760
    %1810 = vmatpush1.msra.mxu0 %v1809
    %v1811 = vand.u32 %v1666, 4294901760
    %1812 = vmatprep.subr.mxu0 %v1811
    %v1813 = vand.u32 %v1665, 4294901760
    %1814 = vmatpush1.msra.mxu0 %v1813
    %v1815 = vand.u32 %v1664, 4294901760
    %1816 = vmatprep.subr.mxu0 %v1815
    %v1817 = vand.u32 %v1663, 4294901760
    %1818 = vmatpush1.msra.mxu0 %v1817
    %v1819 = vand.u32 %v1662, 4294901760
    %1820 = vmatprep.subr.mxu0 %v1819
    %v1821 = vand.u32 %v1661, 4294901760
    %1822 = vmatpush1.msra.mxu0 %v1821
    %v1823 = vand.u32 %v1660, 4294901760
    %1824 = vmatprep.subr.mxu0 %v1823
    %v1825 = vand.u32 %v1659, 4294901760
    %1826 = vmatpush1.msra.mxu0 %v1825
    %v1827 = vand.u32 %v1658, 4294901760
    %1828 = vmatprep.subr.mxu0 %v1827
    %v1829 = vand.u32 %v1657, 4294901760
    %1830 = vmatpush1.msra.mxu0 %v1829
    %v1831 = vand.u32 %v1656, 4294901760
    %1832 = vmatprep.subr.mxu0 %v1831
    %v1833 = vand.u32 %v1655, 4294901760
    %1834 = vmatpush1.msra.mxu0 %v1833
    %v1835 = vand.u32 %v1654, 4294901760
    %1836 = vmatprep.subr.mxu0 %v1835
    %v1837 = vand.u32 %v1653, 4294901760
    %1838 = vmatpush1.msra.mxu0 %v1837
    %v1839 = vand.u32 %v1652, 4294901760
    %1840 = vmatprep.subr.mxu0 %v1839
    %v1841 = vand.u32 %v1651, 4294901760
    %1842 = vmatpush1.msra.mxu0 %v1841
    %v1843 = vand.u32 %v1714, 4294901760
    %1844 = vmatprep.subr.mxu0 %v1843
    %v1845 = vand.u32 %v1713, 4294901760
    %1846 = vmatpush2.msra.mxu0 %v1845
    %v1847 = vand.u32 %v1712, 4294901760
    %1848 = vmatprep.subr.mxu0 %v1847
    %v1849 = vand.u32 %v1711, 4294901760
    %1850 = vmatpush2.msra.mxu0 %v1849
    %v1851 = vand.u32 %v1710, 4294901760
    %1852 = vmatprep.subr.mxu0 %v1851
    %v1853 = vand.u32 %v1709, 4294901760
    %1854 = vmatpush2.msra.mxu0 %v1853
    %v1855 = vand.u32 %v1708, 4294901760
    %1856 = vmatprep.subr.mxu0 %v1855
    %v1857 = vand.u32 %v1707, 4294901760
    %1858 = vmatpush2.msra.mxu0 %v1857
    %v1859 = vand.u32 %v1706, 4294901760
    %1860 = vmatprep.subr.mxu0 %v1859
    %v1861 = vand.u32 %v1705, 4294901760
    %1862 = vmatpush2.msra.mxu0 %v1861
    %v1863 = vand.u32 %v1704, 4294901760
    %1864 = vmatprep.subr.mxu0 %v1863
    %v1865 = vand.u32 %v1703, 4294901760
    %1866 = vmatpush2.msra.mxu0 %v1865
    %v1867 = vand.u32 %v1702, 4294901760
    %1868 = vmatprep.subr.mxu0 %v1867
    %v1869 = vand.u32 %v1701, 4294901760
    %1870 = vmatpush2.msra.mxu0 %v1869
    %v1871 = vand.u32 %v1700, 4294901760
    %1872 = vmatprep.subr.mxu0 %v1871
    %v1873 = vand.u32 %v1699, 4294901760
    %1874 = vmatpush2.msra.mxu0 %v1873
    %v1875 = vand.u32 %v1698, 4294901760
    %1876 = vmatprep.subr.mxu0 %v1875
    %v1877 = vand.u32 %v1697, 4294901760
    %1878 = vmatpush2.msra.mxu0 %v1877
    %v1879 = vand.u32 %v1696, 4294901760
    %1880 = vmatprep.subr.mxu0 %v1879
    %v1881 = vand.u32 %v1695, 4294901760
    %1882 = vmatpush2.msra.mxu0 %v1881
    %v1883 = vand.u32 %v1694, 4294901760
    %1884 = vmatprep.subr.mxu0 %v1883
    %v1885 = vand.u32 %v1693, 4294901760
    %1886 = vmatpush2.msra.mxu0 %v1885
    %v1887 = vand.u32 %v1692, 4294901760
    %1888 = vmatprep.subr.mxu0 %v1887
    %v1889 = vand.u32 %v1691, 4294901760
    %1890 = vmatpush2.msra.mxu0 %v1889
    %v1891 = vand.u32 %v1690, 4294901760
    %1892 = vmatprep.subr.mxu0 %v1891
    %v1893 = vand.u32 %v1689, 4294901760
    %1894 = vmatpush2.msra.mxu0 %v1893
    %v1895 = vand.u32 %v1688, 4294901760
    %1896 = vmatprep.subr.mxu0 %v1895
    %v1897 = vand.u32 %v1687, 4294901760
    %1898 = vmatpush2.msra.mxu0 %v1897
    %v1899 = vand.u32 %v1686, 4294901760
    %1900 = vmatprep.subr.mxu0 %v1899
    %v1901 = vand.u32 %v1685, 4294901760
    %1902 = vmatpush2.msra.mxu0 %v1901
    %v1903 = vand.u32 %v1684, 4294901760
    %1904 = vmatprep.subr.mxu0 %v1903
    %v1905 = vand.u32 %v1683, 4294901760
    %1906 = vmatpush2.msra.mxu0 %v1905
    %v1907 = vand.u32 %v1632, 4294901760
    %v1908 = vsub.f32 %v1632, %v1907
    %v1909 = vand.u32 %v1908, 4294901760
    %v1910 = vsub.f32 %v1908, %v1909
    %v1911 = vand.u32 %v1910, 4294901760
    %1912 = vmatprep.mubr.f32.mxu0 %v1911
    %v1913 = vand.u32 %v1629, 4294901760
    %v1914 = vsub.f32 %v1629, %v1913
    %v1915 = vand.u32 %v1914, 4294901760
    %v1916 = vsub.f32 %v1914, %v1915
    %v1917 = vand.u32 %v1916, 4294901760
    %1918 = vmatmul.mubr.f32.gmra.mxu0 %v1917
    %v1919 = vpop.f32.mrf.mxu0
    %v1920 = vadd.f32 0.0, %v1919
    %v1921 = vpop.f32.mrf.mxu0
    %v1922 = vadd.f32 0.0, %v1921
    %1923 = vdwg.mxu0
    %v1924 = vand.u32 %v1682, 4294901760
    %v1925 = vsub.f32 %v1682, %v1924
    %v1926 = vand.u32 %v1925, 4294901760
    %v1927 = vsub.f32 %v1925, %v1926
    %v1928 = vand.u32 %v1927, 4294901760
    %1929 = vmatprep.subr.mxu0 %v1928
    %v1930 = vand.u32 %v1681, 4294901760
    %v1931 = vsub.f32 %v1681, %v1930
    %v1932 = vand.u32 %v1931, 4294901760
    %v1933 = vsub.f32 %v1931, %v1932
    %v1934 = vand.u32 %v1933, 4294901760
    %1935 = vmatpush1.msra.mxu0 %v1934
    %v1936 = vand.u32 %v1680, 4294901760
    %v1937 = vsub.f32 %v1680, %v1936
    %v1938 = vand.u32 %v1937, 4294901760
    %v1939 = vsub.f32 %v1937, %v1938
    %v1940 = vand.u32 %v1939, 4294901760
    %1941 = vmatprep.subr.mxu0 %v1940
    %v1942 = vand.u32 %v1679, 4294901760
    %v1943 = vsub.f32 %v1679, %v1942
    %v1944 = vand.u32 %v1943, 4294901760
    %v1945 = vsub.f32 %v1943, %v1944
    %v1946 = vand.u32 %v1945, 4294901760
    %1947 = vmatpush1.msra.mxu0 %v1946
    %v1948 = vand.u32 %v1678, 4294901760
    %v1949 = vsub.f32 %v1678, %v1948
    %v1950 = vand.u32 %v1949, 4294901760
    %v1951 = vsub.f32 %v1949, %v1950
    %v1952 = vand.u32 %v1951, 4294901760
    %1953 = vmatprep.subr.mxu0 %v1952
    %v1954 = vand.u32 %v1677, 4294901760
    %v1955 = vsub.f32 %v1677, %v1954
    %v1956 = vand.u32 %v1955, 4294901760
    %v1957 = vsub.f32 %v1955, %v1956
    %v1958 = vand.u32 %v1957, 4294901760
    %1959 = vmatpush1.msra.mxu0 %v1958
    %v1960 = vand.u32 %v1676, 4294901760
    %v1961 = vsub.f32 %v1676, %v1960
    %v1962 = vand.u32 %v1961, 4294901760
    %v1963 = vsub.f32 %v1961, %v1962
    %v1964 = vand.u32 %v1963, 4294901760
    %1965 = vmatprep.subr.mxu0 %v1964
    %v1966 = vand.u32 %v1675, 4294901760
    %v1967 = vsub.f32 %v1675, %v1966
    %v1968 = vand.u32 %v1967, 4294901760
    %v1969 = vsub.f32 %v1967, %v1968
    %v1970 = vand.u32 %v1969, 4294901760
    %1971 = vmatpush1.msra.mxu0 %v1970
    %v1972 = vand.u32 %v1674, 4294901760
    %v1973 = vsub.f32 %v1674, %v1972
    %v1974 = vand.u32 %v1973, 4294901760
    %v1975 = vsub.f32 %v1973, %v1974
    %v1976 = vand.u32 %v1975, 4294901760
    %1977 = vmatprep.subr.mxu0 %v1976
    %v1978 = vand.u32 %v1673, 4294901760
    %v1979 = vsub.f32 %v1673, %v1978
    %v1980 = vand.u32 %v1979, 4294901760
    %v1981 = vsub.f32 %v1979, %v1980
    %v1982 = vand.u32 %v1981, 4294901760
    %1983 = vmatpush1.msra.mxu0 %v1982
    %v1984 = vand.u32 %v1672, 4294901760
    %v1985 = vsub.f32 %v1672, %v1984
    %v1986 = vand.u32 %v1985, 4294901760
    %v1987 = vsub.f32 %v1985, %v1986
    %v1988 = vand.u32 %v1987, 4294901760
    %1989 = vmatprep.subr.mxu0 %v1988
    %v1990 = vand.u32 %v1671, 4294901760
    %v1991 = vsub.f32 %v1671, %v1990
    %v1992 = vand.u32 %v1991, 4294901760
    %v1993 = vsub.f32 %v1991, %v1992
    %v1994 = vand.u32 %v1993, 4294901760
    %1995 = vmatpush1.msra.mxu0 %v1994
    %v1996 = vand.u32 %v1670, 4294901760
    %v1997 = vsub.f32 %v1670, %v1996
    %v1998 = vand.u32 %v1997, 4294901760
    %v1999 = vsub.f32 %v1997, %v1998
    %v2000 = vand.u32 %v1999, 4294901760
    %2001 = vmatprep.subr.mxu0 %v2000
    %v2002 = vand.u32 %v1669, 4294901760
    %v2003 = vsub.f32 %v1669, %v2002
    %v2004 = vand.u32 %v2003, 4294901760
    %v2005 = vsub.f32 %v2003, %v2004
    %v2006 = vand.u32 %v2005, 4294901760
    %2007 = vmatpush1.msra.mxu0 %v2006
    %v2008 = vand.u32 %v1668, 4294901760
    %v2009 = vsub.f32 %v1668, %v2008
    %v2010 = vand.u32 %v2009, 4294901760
    %v2011 = vsub.f32 %v2009, %v2010
    %v2012 = vand.u32 %v2011, 4294901760
    %2013 = vmatprep.subr.mxu0 %v2012
    %v2014 = vand.u32 %v1667, 4294901760
    %v2015 = vsub.f32 %v1667, %v2014
    %v2016 = vand.u32 %v2015, 4294901760
    %v2017 = vsub.f32 %v2015, %v2016
    %v2018 = vand.u32 %v2017, 4294901760
    %2019 = vmatpush1.msra.mxu0 %v2018
    %v2020 = vand.u32 %v1666, 4294901760
    %v2021 = vsub.f32 %v1666, %v2020
    %v2022 = vand.u32 %v2021, 4294901760
    %v2023 = vsub.f32 %v2021, %v2022
    %v2024 = vand.u32 %v2023, 4294901760
    %2025 = vmatprep.subr.mxu0 %v2024
    %v2026 = vand.u32 %v1665, 4294901760
    %v2027 = vsub.f32 %v1665, %v2026
    %v2028 = vand.u32 %v2027, 4294901760
    %v2029 = vsub.f32 %v2027, %v2028
    %v2030 = vand.u32 %v2029, 4294901760
    %2031 = vmatpush1.msra.mxu0 %v2030
    %v2032 = vand.u32 %v1664, 4294901760
    %v2033 = vsub.f32 %v1664, %v2032
    %v2034 = vand.u32 %v2033, 4294901760
    %v2035 = vsub.f32 %v2033, %v2034
    %v2036 = vand.u32 %v2035, 4294901760
    %2037 = vmatprep.subr.mxu0 %v2036
    %v2038 = vand.u32 %v1663, 4294901760
    %v2039 = vsub.f32 %v1663, %v2038
    %v2040 = vand.u32 %v2039, 4294901760
    %v2041 = vsub.f32 %v2039, %v2040
    %v2042 = vand.u32 %v2041, 4294901760
    %2043 = vmatpush1.msra.mxu0 %v2042
    %v2044 = vand.u32 %v1662, 4294901760
    %v2045 = vsub.f32 %v1662, %v2044
    %v2046 = vand.u32 %v2045, 4294901760
    %v2047 = vsub.f32 %v2045, %v2046
    %v2048 = vand.u32 %v2047, 4294901760
    %2049 = vmatprep.subr.mxu0 %v2048
    %v2050 = vand.u32 %v1661, 4294901760
    %v2051 = vsub.f32 %v1661, %v2050
    %v2052 = vand.u32 %v2051, 4294901760
    %v2053 = vsub.f32 %v2051, %v2052
    %v2054 = vand.u32 %v2053, 4294901760
    %2055 = vmatpush1.msra.mxu0 %v2054
    %v2056 = vand.u32 %v1660, 4294901760
    %v2057 = vsub.f32 %v1660, %v2056
    %v2058 = vand.u32 %v2057, 4294901760
    %v2059 = vsub.f32 %v2057, %v2058
    %v2060 = vand.u32 %v2059, 4294901760
    %2061 = vmatprep.subr.mxu0 %v2060
    %v2062 = vand.u32 %v1659, 4294901760
    %v2063 = vsub.f32 %v1659, %v2062
    %v2064 = vand.u32 %v2063, 4294901760
    %v2065 = vsub.f32 %v2063, %v2064
    %v2066 = vand.u32 %v2065, 4294901760
    %2067 = vmatpush1.msra.mxu0 %v2066
    %v2068 = vand.u32 %v1658, 4294901760
    %v2069 = vsub.f32 %v1658, %v2068
    %v2070 = vand.u32 %v2069, 4294901760
    %v2071 = vsub.f32 %v2069, %v2070
    %v2072 = vand.u32 %v2071, 4294901760
    %2073 = vmatprep.subr.mxu0 %v2072
    %v2074 = vand.u32 %v1657, 4294901760
    %v2075 = vsub.f32 %v1657, %v2074
    %v2076 = vand.u32 %v2075, 4294901760
    %v2077 = vsub.f32 %v2075, %v2076
    %v2078 = vand.u32 %v2077, 4294901760
    %2079 = vmatpush1.msra.mxu0 %v2078
    %v2080 = vand.u32 %v1656, 4294901760
    %v2081 = vsub.f32 %v1656, %v2080
    %v2082 = vand.u32 %v2081, 4294901760
    %v2083 = vsub.f32 %v2081, %v2082
    %v2084 = vand.u32 %v2083, 4294901760
    %2085 = vmatprep.subr.mxu0 %v2084
    %v2086 = vand.u32 %v1655, 4294901760
    %v2087 = vsub.f32 %v1655, %v2086
    %v2088 = vand.u32 %v2087, 4294901760
    %v2089 = vsub.f32 %v2087, %v2088
    %v2090 = vand.u32 %v2089, 4294901760
    %2091 = vmatpush1.msra.mxu0 %v2090
    %v2092 = vand.u32 %v1654, 4294901760
    %v2093 = vsub.f32 %v1654, %v2092
    %v2094 = vand.u32 %v2093, 4294901760
    %v2095 = vsub.f32 %v2093, %v2094
    %v2096 = vand.u32 %v2095, 4294901760
    %2097 = vmatprep.subr.mxu0 %v2096
    %v2098 = vand.u32 %v1653, 4294901760
    %v2099 = vsub.f32 %v1653, %v2098
    %v2100 = vand.u32 %v2099, 4294901760
    %v2101 = vsub.f32 %v2099, %v2100
    %v2102 = vand.u32 %v2101, 4294901760
    %2103 = vmatpush1.msra.mxu0 %v2102
    %v2104 = vand.u32 %v1652, 4294901760
    %v2105 = vsub.f32 %v1652, %v2104
    %v2106 = vand.u32 %v2105, 4294901760
    %v2107 = vsub.f32 %v2105, %v2106
    %v2108 = vand.u32 %v2107, 4294901760
    %2109 = vmatprep.subr.mxu0 %v2108
    %v2110 = vand.u32 %v1651, 4294901760
    %v2111 = vsub.f32 %v1651, %v2110
    %v2112 = vand.u32 %v2111, 4294901760
    %v2113 = vsub.f32 %v2111, %v2112
    %v2114 = vand.u32 %v2113, 4294901760
    %2115 = vmatpush1.msra.mxu0 %v2114
    %v2116 = vand.u32 %v1714, 4294901760
    %v2117 = vsub.f32 %v1714, %v2116
    %v2118 = vand.u32 %v2117, 4294901760
    %v2119 = vsub.f32 %v2117, %v2118
    %v2120 = vand.u32 %v2119, 4294901760
    %2121 = vmatprep.subr.mxu0 %v2120
    %v2122 = vand.u32 %v1713, 4294901760
    %v2123 = vsub.f32 %v1713, %v2122
    %v2124 = vand.u32 %v2123, 4294901760
    %v2125 = vsub.f32 %v2123, %v2124
    %v2126 = vand.u32 %v2125, 4294901760
    %2127 = vmatpush2.msra.mxu0 %v2126
    %v2128 = vand.u32 %v1712, 4294901760
    %v2129 = vsub.f32 %v1712, %v2128
    %v2130 = vand.u32 %v2129, 4294901760
    %v2131 = vsub.f32 %v2129, %v2130
    %v2132 = vand.u32 %v2131, 4294901760
    %2133 = vmatprep.subr.mxu0 %v2132
    %v2134 = vand.u32 %v1711, 4294901760
    %v2135 = vsub.f32 %v1711, %v2134
    %v2136 = vand.u32 %v2135, 4294901760
    %v2137 = vsub.f32 %v2135, %v2136
    %v2138 = vand.u32 %v2137, 4294901760
    %2139 = vmatpush2.msra.mxu0 %v2138
    %v2140 = vand.u32 %v1710, 4294901760
    %v2141 = vsub.f32 %v1710, %v2140
    %v2142 = vand.u32 %v2141, 4294901760
    %v2143 = vsub.f32 %v2141, %v2142
    %v2144 = vand.u32 %v2143, 4294901760
    %2145 = vmatprep.subr.mxu0 %v2144
    %v2146 = vand.u32 %v1709, 4294901760
    %v2147 = vsub.f32 %v1709, %v2146
    %v2148 = vand.u32 %v2147, 4294901760
    %v2149 = vsub.f32 %v2147, %v2148
    %v2150 = vand.u32 %v2149, 4294901760
    %2151 = vmatpush2.msra.mxu0 %v2150
    %v2152 = vand.u32 %v1708, 4294901760
    %v2153 = vsub.f32 %v1708, %v2152
    %v2154 = vand.u32 %v2153, 4294901760
    %v2155 = vsub.f32 %v2153, %v2154
    %v2156 = vand.u32 %v2155, 4294901760
    %2157 = vmatprep.subr.mxu0 %v2156
    %v2158 = vand.u32 %v1707, 4294901760
    %v2159 = vsub.f32 %v1707, %v2158
    %v2160 = vand.u32 %v2159, 4294901760
    %v2161 = vsub.f32 %v2159, %v2160
    %v2162 = vand.u32 %v2161, 4294901760
    %2163 = vmatpush2.msra.mxu0 %v2162
    %v2164 = vand.u32 %v1706, 4294901760
    %v2165 = vsub.f32 %v1706, %v2164
    %v2166 = vand.u32 %v2165, 4294901760
    %v2167 = vsub.f32 %v2165, %v2166
    %v2168 = vand.u32 %v2167, 4294901760
    %2169 = vmatprep.subr.mxu0 %v2168
    %v2170 = vand.u32 %v1705, 4294901760
    %v2171 = vsub.f32 %v1705, %v2170
    %v2172 = vand.u32 %v2171, 4294901760
    %v2173 = vsub.f32 %v2171, %v2172
    %v2174 = vand.u32 %v2173, 4294901760
    %2175 = vmatpush2.msra.mxu0 %v2174
    %v2176 = vand.u32 %v1704, 4294901760
    %v2177 = vsub.f32 %v1704, %v2176
    %v2178 = vand.u32 %v2177, 4294901760
    %v2179 = vsub.f32 %v2177, %v2178
    %v2180 = vand.u32 %v2179, 4294901760
    %2181 = vmatprep.subr.mxu0 %v2180
    %v2182 = vand.u32 %v1703, 4294901760
    %v2183 = vsub.f32 %v1703, %v2182
    %v2184 = vand.u32 %v2183, 4294901760
    %v2185 = vsub.f32 %v2183, %v2184
    %v2186 = vand.u32 %v2185, 4294901760
    %2187 = vmatpush2.msra.mxu0 %v2186
    %v2188 = vand.u32 %v1702, 4294901760
    %v2189 = vsub.f32 %v1702, %v2188
    %v2190 = vand.u32 %v2189, 4294901760
    %v2191 = vsub.f32 %v2189, %v2190
    %v2192 = vand.u32 %v2191, 4294901760
    %2193 = vmatprep.subr.mxu0 %v2192
    %v2194 = vand.u32 %v1701, 4294901760
    %v2195 = vsub.f32 %v1701, %v2194
    %v2196 = vand.u32 %v2195, 4294901760
    %v2197 = vsub.f32 %v2195, %v2196
    %v2198 = vand.u32 %v2197, 4294901760
    %2199 = vmatpush2.msra.mxu0 %v2198
    %v2200 = vand.u32 %v1700, 4294901760
    %v2201 = vsub.f32 %v1700, %v2200
    %v2202 = vand.u32 %v2201, 4294901760
    %v2203 = vsub.f32 %v2201, %v2202
    %v2204 = vand.u32 %v2203, 4294901760
    %2205 = vmatprep.subr.mxu0 %v2204
    %v2206 = vand.u32 %v1699, 4294901760
    %v2207 = vsub.f32 %v1699, %v2206
    %v2208 = vand.u32 %v2207, 4294901760
    %v2209 = vsub.f32 %v2207, %v2208
    %v2210 = vand.u32 %v2209, 4294901760
    %2211 = vmatpush2.msra.mxu0 %v2210
    %v2212 = vand.u32 %v1698, 4294901760
    %v2213 = vsub.f32 %v1698, %v2212
    %v2214 = vand.u32 %v2213, 4294901760
    %v2215 = vsub.f32 %v2213, %v2214
    %v2216 = vand.u32 %v2215, 4294901760
    %2217 = vmatprep.subr.mxu0 %v2216
    %v2218 = vand.u32 %v1697, 4294901760
    %v2219 = vsub.f32 %v1697, %v2218
    %v2220 = vand.u32 %v2219, 4294901760
    %v2221 = vsub.f32 %v2219, %v2220
    %v2222 = vand.u32 %v2221, 4294901760
    %2223 = vmatpush2.msra.mxu0 %v2222
    %v2224 = vand.u32 %v1696, 4294901760
    %v2225 = vsub.f32 %v1696, %v2224
    %v2226 = vand.u32 %v2225, 4294901760
    %v2227 = vsub.f32 %v2225, %v2226
    %v2228 = vand.u32 %v2227, 4294901760
    %2229 = vmatprep.subr.mxu0 %v2228
    %v2230 = vand.u32 %v1695, 4294901760
    %v2231 = vsub.f32 %v1695, %v2230
    %v2232 = vand.u32 %v2231, 4294901760
    %v2233 = vsub.f32 %v2231, %v2232
    %v2234 = vand.u32 %v2233, 4294901760
    %2235 = vmatpush2.msra.mxu0 %v2234
    %v2236 = vand.u32 %v1694, 4294901760
    %v2237 = vsub.f32 %v1694, %v2236
    %v2238 = vand.u32 %v2237, 4294901760
    %v2239 = vsub.f32 %v2237, %v2238
    %v2240 = vand.u32 %v2239, 4294901760
    %2241 = vmatprep.subr.mxu0 %v2240
    %v2242 = vand.u32 %v1693, 4294901760
    %v2243 = vsub.f32 %v1693, %v2242
    %v2244 = vand.u32 %v2243, 4294901760
    %v2245 = vsub.f32 %v2243, %v2244
    %v2246 = vand.u32 %v2245, 4294901760
    %2247 = vmatpush2.msra.mxu0 %v2246
    %v2248 = vand.u32 %v1692, 4294901760
    %v2249 = vsub.f32 %v1692, %v2248
    %v2250 = vand.u32 %v2249, 4294901760
    %v2251 = vsub.f32 %v2249, %v2250
    %v2252 = vand.u32 %v2251, 4294901760
    %2253 = vmatprep.subr.mxu0 %v2252
    %v2254 = vand.u32 %v1691, 4294901760
    %v2255 = vsub.f32 %v1691, %v2254
    %v2256 = vand.u32 %v2255, 4294901760
    %v2257 = vsub.f32 %v2255, %v2256
    %v2258 = vand.u32 %v2257, 4294901760
    %2259 = vmatpush2.msra.mxu0 %v2258
    %v2260 = vand.u32 %v1690, 4294901760
    %v2261 = vsub.f32 %v1690, %v2260
    %v2262 = vand.u32 %v2261, 4294901760
    %v2263 = vsub.f32 %v2261, %v2262
    %v2264 = vand.u32 %v2263, 4294901760
    %2265 = vmatprep.subr.mxu0 %v2264
    %v2266 = vand.u32 %v1689, 4294901760
    %v2267 = vsub.f32 %v1689, %v2266
    %v2268 = vand.u32 %v2267, 4294901760
    %v2269 = vsub.f32 %v2267, %v2268
    %v2270 = vand.u32 %v2269, 4294901760
    %2271 = vmatpush2.msra.mxu0 %v2270
    %v2272 = vand.u32 %v1688, 4294901760
    %v2273 = vsub.f32 %v1688, %v2272
    %v2274 = vand.u32 %v2273, 4294901760
    %v2275 = vsub.f32 %v2273, %v2274
    %v2276 = vand.u32 %v2275, 4294901760
    %2277 = vmatprep.subr.mxu0 %v2276
    %v2278 = vand.u32 %v1687, 4294901760
    %v2279 = vsub.f32 %v1687, %v2278
    %v2280 = vand.u32 %v2279, 4294901760
    %v2281 = vsub.f32 %v2279, %v2280
    %v2282 = vand.u32 %v2281, 4294901760
    %2283 = vmatpush2.msra.mxu0 %v2282
    %v2284 = vand.u32 %v1686, 4294901760
    %v2285 = vsub.f32 %v1686, %v2284
    %v2286 = vand.u32 %v2285, 4294901760
    %v2287 = vsub.f32 %v2285, %v2286
    %v2288 = vand.u32 %v2287, 4294901760
    %2289 = vmatprep.subr.mxu0 %v2288
    %v2290 = vand.u32 %v1685, 4294901760
    %v2291 = vsub.f32 %v1685, %v2290
    %v2292 = vand.u32 %v2291, 4294901760
    %v2293 = vsub.f32 %v2291, %v2292
    %v2294 = vand.u32 %v2293, 4294901760
    %2295 = vmatpush2.msra.mxu0 %v2294
    %v2296 = vand.u32 %v1684, 4294901760
    %v2297 = vsub.f32 %v1684, %v2296
    %v2298 = vand.u32 %v2297, 4294901760
    %v2299 = vsub.f32 %v2297, %v2298
    %v2300 = vand.u32 %v2299, 4294901760
    %2301 = vmatprep.subr.mxu0 %v2300
    %v2302 = vand.u32 %v1683, 4294901760
    %v2303 = vsub.f32 %v1683, %v2302
    %v2304 = vand.u32 %v2303, 4294901760
    %v2305 = vsub.f32 %v2303, %v2304
    %v2306 = vand.u32 %v2305, 4294901760
    %2307 = vmatpush2.msra.mxu0 %v2306
    %v2308 = vand.u32 %v1632, 4294901760
    %2309 = vmatprep.mubr.f32.mxu0 %v2308
    %v2310 = vand.u32 %v1629, 4294901760
    %2311 = vmatmul.mubr.f32.gmra.mxu0 %v2310
    %v2312 = vpop.f32.mrf.mxu0
    %v2313 = vadd.f32 %v1920, %v2312
    %v2314 = vpop.f32.mrf.mxu0
    %v2315 = vadd.f32 %v1922, %v2314
    %2316 = vdwg.mxu0
    %v2317 = vand.u32 %v1682, 4294901760
    %v2318 = vsub.f32 %v1682, %v2317
    %2319 = vmatprep.subr.mxu0 %v2318
    %v2320 = vand.u32 %v1681, 4294901760
    %v2321 = vsub.f32 %v1681, %v2320
    %2322 = vmatpush1.msra.mxu0 %v2321
    %v2323 = vand.u32 %v1680, 4294901760
    %v2324 = vsub.f32 %v1680, %v2323
    %2325 = vmatprep.subr.mxu0 %v2324
    %v2326 = vand.u32 %v1679, 4294901760
    %v2327 = vsub.f32 %v1679, %v2326
    %2328 = vmatpush1.msra.mxu0 %v2327
    %v2329 = vand.u32 %v1678, 4294901760
    %v2330 = vsub.f32 %v1678, %v2329
    %2331 = vmatprep.subr.mxu0 %v2330
    %v2332 = vand.u32 %v1677, 4294901760
    %v2333 = vsub.f32 %v1677, %v2332
    %2334 = vmatpush1.msra.mxu0 %v2333
    %v2335 = vand.u32 %v1676, 4294901760
    %v2336 = vsub.f32 %v1676, %v2335
    %2337 = vmatprep.subr.mxu0 %v2336
    %v2338 = vand.u32 %v1675, 4294901760
    %v2339 = vsub.f32 %v1675, %v2338
    %2340 = vmatpush1.msra.mxu0 %v2339
    %v2341 = vand.u32 %v1674, 4294901760
    %v2342 = vsub.f32 %v1674, %v2341
    %2343 = vmatprep.subr.mxu0 %v2342
    %v2344 = vand.u32 %v1673, 4294901760
    %v2345 = vsub.f32 %v1673, %v2344
    %2346 = vmatpush1.msra.mxu0 %v2345
    %v2347 = vand.u32 %v1672, 4294901760
    %v2348 = vsub.f32 %v1672, %v2347
    %2349 = vmatprep.subr.mxu0 %v2348
    %v2350 = vand.u32 %v1671, 4294901760
    %v2351 = vsub.f32 %v1671, %v2350
    %2352 = vmatpush1.msra.mxu0 %v2351
    %v2353 = vand.u32 %v1670, 4294901760
    %v2354 = vsub.f32 %v1670, %v2353
    %2355 = vmatprep.subr.mxu0 %v2354
    %v2356 = vand.u32 %v1669, 4294901760
    %v2357 = vsub.f32 %v1669, %v2356
    %2358 = vmatpush1.msra.mxu0 %v2357
    %v2359 = vand.u32 %v1668, 4294901760
    %v2360 = vsub.f32 %v1668, %v2359
    %2361 = vmatprep.subr.mxu0 %v2360
    %v2362 = vand.u32 %v1667, 4294901760
    %v2363 = vsub.f32 %v1667, %v2362
    %2364 = vmatpush1.msra.mxu0 %v2363
    %v2365 = vand.u32 %v1666, 4294901760
    %v2366 = vsub.f32 %v1666, %v2365
    %2367 = vmatprep.subr.mxu0 %v2366
    %v2368 = vand.u32 %v1665, 4294901760
    %v2369 = vsub.f32 %v1665, %v2368
    %2370 = vmatpush1.msra.mxu0 %v2369
    %v2371 = vand.u32 %v1664, 4294901760
    %v2372 = vsub.f32 %v1664, %v2371
    %2373 = vmatprep.subr.mxu0 %v2372
    %v2374 = vand.u32 %v1663, 4294901760
    %v2375 = vsub.f32 %v1663, %v2374
    %2376 = vmatpush1.msra.mxu0 %v2375
    %v2377 = vand.u32 %v1662, 4294901760
    %v2378 = vsub.f32 %v1662, %v2377
    %2379 = vmatprep.subr.mxu0 %v2378
    %v2380 = vand.u32 %v1661, 4294901760
    %v2381 = vsub.f32 %v1661, %v2380
    %2382 = vmatpush1.msra.mxu0 %v2381
    %v2383 = vand.u32 %v1660, 4294901760
    %v2384 = vsub.f32 %v1660, %v2383
    %2385 = vmatprep.subr.mxu0 %v2384
    %v2386 = vand.u32 %v1659, 4294901760
    %v2387 = vsub.f32 %v1659, %v2386
    %2388 = vmatpush1.msra.mxu0 %v2387
    %v2389 = vand.u32 %v1658, 4294901760
    %v2390 = vsub.f32 %v1658, %v2389
    %2391 = vmatprep.subr.mxu0 %v2390
    %v2392 = vand.u32 %v1657, 4294901760
    %v2393 = vsub.f32 %v1657, %v2392
    %2394 = vmatpush1.msra.mxu0 %v2393
    %v2395 = vand.u32 %v1656, 4294901760
    %v2396 = vsub.f32 %v1656, %v2395
    %2397 = vmatprep.subr.mxu0 %v2396
    %v2398 = vand.u32 %v1655, 4294901760
    %v2399 = vsub.f32 %v1655, %v2398
    %2400 = vmatpush1.msra.mxu0 %v2399
    %v2401 = vand.u32 %v1654, 4294901760
    %v2402 = vsub.f32 %v1654, %v2401
    %2403 = vmatprep.subr.mxu0 %v2402
    %v2404 = vand.u32 %v1653, 4294901760
    %v2405 = vsub.f32 %v1653, %v2404
    %2406 = vmatpush1.msra.mxu0 %v2405
    %v2407 = vand.u32 %v1652, 4294901760
    %v2408 = vsub.f32 %v1652, %v2407
    %2409 = vmatprep.subr.mxu0 %v2408
    %v2410 = vand.u32 %v1651, 4294901760
    %v2411 = vsub.f32 %v1651, %v2410
    %2412 = vmatpush1.msra.mxu0 %v2411
    %v2413 = vand.u32 %v1714, 4294901760
    %v2414 = vsub.f32 %v1714, %v2413
    %2415 = vmatprep.subr.mxu0 %v2414
    %v2416 = vand.u32 %v1713, 4294901760
    %v2417 = vsub.f32 %v1713, %v2416
    %2418 = vmatpush2.msra.mxu0 %v2417
    %v2419 = vand.u32 %v1712, 4294901760
    %v2420 = vsub.f32 %v1712, %v2419
    %2421 = vmatprep.subr.mxu0 %v2420
    %v2422 = vand.u32 %v1711, 4294901760
    %v2423 = vsub.f32 %v1711, %v2422
    %2424 = vmatpush2.msra.mxu0 %v2423
    %v2425 = vand.u32 %v1710, 4294901760
    %v2426 = vsub.f32 %v1710, %v2425
    %2427 = vmatprep.subr.mxu0 %v2426
    %v2428 = vand.u32 %v1709, 4294901760
    %v2429 = vsub.f32 %v1709, %v2428
    %2430 = vmatpush2.msra.mxu0 %v2429
    %v2431 = vand.u32 %v1708, 4294901760
    %v2432 = vsub.f32 %v1708, %v2431
    %2433 = vmatprep.subr.mxu0 %v2432
    %v2434 = vand.u32 %v1707, 4294901760
    %v2435 = vsub.f32 %v1707, %v2434
    %2436 = vmatpush2.msra.mxu0 %v2435
    %v2437 = vand.u32 %v1706, 4294901760
    %v2438 = vsub.f32 %v1706, %v2437
    %2439 = vmatprep.subr.mxu0 %v2438
    %v2440 = vand.u32 %v1705, 4294901760
    %v2441 = vsub.f32 %v1705, %v2440
    %2442 = vmatpush2.msra.mxu0 %v2441
    %v2443 = vand.u32 %v1704, 4294901760
    %v2444 = vsub.f32 %v1704, %v2443
    %2445 = vmatprep.subr.mxu0 %v2444
    %v2446 = vand.u32 %v1703, 4294901760
    %v2447 = vsub.f32 %v1703, %v2446
    %2448 = vmatpush2.msra.mxu0 %v2447
    %v2449 = vand.u32 %v1702, 4294901760
    %v2450 = vsub.f32 %v1702, %v2449
    %2451 = vmatprep.subr.mxu0 %v2450
    %v2452 = vand.u32 %v1701, 4294901760
    %v2453 = vsub.f32 %v1701, %v2452
    %2454 = vmatpush2.msra.mxu0 %v2453
    %v2455 = vand.u32 %v1700, 4294901760
    %v2456 = vsub.f32 %v1700, %v2455
    %2457 = vmatprep.subr.mxu0 %v2456
    %v2458 = vand.u32 %v1699, 4294901760
    %v2459 = vsub.f32 %v1699, %v2458
    %2460 = vmatpush2.msra.mxu0 %v2459
    %v2461 = vand.u32 %v1698, 4294901760
    %v2462 = vsub.f32 %v1698, %v2461
    %2463 = vmatprep.subr.mxu0 %v2462
    %v2464 = vand.u32 %v1697, 4294901760
    %v2465 = vsub.f32 %v1697, %v2464
    %2466 = vmatpush2.msra.mxu0 %v2465
    %v2467 = vand.u32 %v1696, 4294901760
    %v2468 = vsub.f32 %v1696, %v2467
    %2469 = vmatprep.subr.mxu0 %v2468
    %v2470 = vand.u32 %v1695, 4294901760
    %v2471 = vsub.f32 %v1695, %v2470
    %2472 = vmatpush2.msra.mxu0 %v2471
    %v2473 = vand.u32 %v1694, 4294901760
    %v2474 = vsub.f32 %v1694, %v2473
    %2475 = vmatprep.subr.mxu0 %v2474
    %v2476 = vand.u32 %v1693, 4294901760
    %v2477 = vsub.f32 %v1693, %v2476
    %2478 = vmatpush2.msra.mxu0 %v2477
    %v2479 = vand.u32 %v1692, 4294901760
    %v2480 = vsub.f32 %v1692, %v2479
    %2481 = vmatprep.subr.mxu0 %v2480
    %v2482 = vand.u32 %v1691, 4294901760
    %v2483 = vsub.f32 %v1691, %v2482
    %2484 = vmatpush2.msra.mxu0 %v2483
    %v2485 = vand.u32 %v1690, 4294901760
    %v2486 = vsub.f32 %v1690, %v2485
    %2487 = vmatprep.subr.mxu0 %v2486
    %v2488 = vand.u32 %v1689, 4294901760
    %v2489 = vsub.f32 %v1689, %v2488
    %2490 = vmatpush2.msra.mxu0 %v2489
    %v2491 = vand.u32 %v1688, 4294901760
    %v2492 = vsub.f32 %v1688, %v2491
    %2493 = vmatprep.subr.mxu0 %v2492
    %v2494 = vand.u32 %v1687, 4294901760
    %v2495 = vsub.f32 %v1687, %v2494
    %2496 = vmatpush2.msra.mxu0 %v2495
    %v2497 = vand.u32 %v1686, 4294901760
    %v2498 = vsub.f32 %v1686, %v2497
    %2499 = vmatprep.subr.mxu0 %v2498
    %v2500 = vand.u32 %v1685, 4294901760
    %v2501 = vsub.f32 %v1685, %v2500
    %2502 = vmatpush2.msra.mxu0 %v2501
    %v2503 = vand.u32 %v1684, 4294901760
    %v2504 = vsub.f32 %v1684, %v2503
    %2505 = vmatprep.subr.mxu0 %v2504
    %v2506 = vand.u32 %v1683, 4294901760
    %v2507 = vsub.f32 %v1683, %v2506
    %2508 = vmatpush2.msra.mxu0 %v2507
    %v2509 = vand.u32 %v1632, 4294901760
    %v2510 = vsub.f32 %v1632, %v2509
    %2511 = vmatprep.mubr.f32.mxu0 %v2510
    %v2512 = vand.u32 %v1629, 4294901760
    %v2513 = vsub.f32 %v1629, %v2512
    %2514 = vmatmul.mubr.f32.gmra.mxu0 %v2513
    %v2515 = vpop.f32.mrf.mxu0
    %v2516 = vadd.f32 %v2313, %v2515
    %v2517 = vpop.f32.mrf.mxu0
    %v2518 = vadd.f32 %v2315, %v2517
    %2519 = vdwg.mxu0
    %v2520 = vand.u32 %v1682, 4294901760
    %2521 = vmatprep.subr.mxu0 %v2520
    %v2522 = vand.u32 %v1681, 4294901760
    %2523 = vmatpush1.msra.mxu0 %v2522
    %v2524 = vand.u32 %v1680, 4294901760
    %2525 = vmatprep.subr.mxu0 %v2524
    %v2526 = vand.u32 %v1679, 4294901760
    %2527 = vmatpush1.msra.mxu0 %v2526
    %v2528 = vand.u32 %v1678, 4294901760
    %2529 = vmatprep.subr.mxu0 %v2528
    %v2530 = vand.u32 %v1677, 4294901760
    %2531 = vmatpush1.msra.mxu0 %v2530
    %v2532 = vand.u32 %v1676, 4294901760
    %2533 = vmatprep.subr.mxu0 %v2532
    %v2534 = vand.u32 %v1675, 4294901760
    %2535 = vmatpush1.msra.mxu0 %v2534
    %v2536 = vand.u32 %v1674, 4294901760
    %2537 = vmatprep.subr.mxu0 %v2536
    %v2538 = vand.u32 %v1673, 4294901760
    %2539 = vmatpush1.msra.mxu0 %v2538
    %v2540 = vand.u32 %v1672, 4294901760
    %2541 = vmatprep.subr.mxu0 %v2540
    %v2542 = vand.u32 %v1671, 4294901760
    %2543 = vmatpush1.msra.mxu0 %v2542
    %v2544 = vand.u32 %v1670, 4294901760
    %2545 = vmatprep.subr.mxu0 %v2544
    %v2546 = vand.u32 %v1669, 4294901760
    %2547 = vmatpush1.msra.mxu0 %v2546
    %v2548 = vand.u32 %v1668, 4294901760
    %2549 = vmatprep.subr.mxu0 %v2548
    %v2550 = vand.u32 %v1667, 4294901760
    %2551 = vmatpush1.msra.mxu0 %v2550
    %v2552 = vand.u32 %v1666, 4294901760
    %2553 = vmatprep.subr.mxu0 %v2552
    %v2554 = vand.u32 %v1665, 4294901760
    %2555 = vmatpush1.msra.mxu0 %v2554
    %v2556 = vand.u32 %v1664, 4294901760
    %2557 = vmatprep.subr.mxu0 %v2556
    %v2558 = vand.u32 %v1663, 4294901760
    %2559 = vmatpush1.msra.mxu0 %v2558
    %v2560 = vand.u32 %v1662, 4294901760
    %2561 = vmatprep.subr.mxu0 %v2560
    %v2562 = vand.u32 %v1661, 4294901760
    %2563 = vmatpush1.msra.mxu0 %v2562
    %v2564 = vand.u32 %v1660, 4294901760
    %2565 = vmatprep.subr.mxu0 %v2564
    %v2566 = vand.u32 %v1659, 4294901760
    %2567 = vmatpush1.msra.mxu0 %v2566
    %v2568 = vand.u32 %v1658, 4294901760
    %2569 = vmatprep.subr.mxu0 %v2568
    %v2570 = vand.u32 %v1657, 4294901760
    %2571 = vmatpush1.msra.mxu0 %v2570
    %v2572 = vand.u32 %v1656, 4294901760
    %2573 = vmatprep.subr.mxu0 %v2572
    %v2574 = vand.u32 %v1655, 4294901760
    %2575 = vmatpush1.msra.mxu0 %v2574
    %v2576 = vand.u32 %v1654, 4294901760
    %2577 = vmatprep.subr.mxu0 %v2576
    %v2578 = vand.u32 %v1653, 4294901760
    %2579 = vmatpush1.msra.mxu0 %v2578
    %v2580 = vand.u32 %v1652, 4294901760
    %2581 = vmatprep.subr.mxu0 %v2580
    %v2582 = vand.u32 %v1651, 4294901760
    %2583 = vmatpush1.msra.mxu0 %v2582
    %v2584 = vand.u32 %v1714, 4294901760
    %2585 = vmatprep.subr.mxu0 %v2584
    %v2586 = vand.u32 %v1713, 4294901760
    %2587 = vmatpush2.msra.mxu0 %v2586
    %v2588 = vand.u32 %v1712, 4294901760
    %2589 = vmatprep.subr.mxu0 %v2588
    %v2590 = vand.u32 %v1711, 4294901760
    %2591 = vmatpush2.msra.mxu0 %v2590
    %v2592 = vand.u32 %v1710, 4294901760
    %2593 = vmatprep.subr.mxu0 %v2592
    %v2594 = vand.u32 %v1709, 4294901760
    %2595 = vmatpush2.msra.mxu0 %v2594
    %v2596 = vand.u32 %v1708, 4294901760
    %2597 = vmatprep.subr.mxu0 %v2596
    %v2598 = vand.u32 %v1707, 4294901760
    %2599 = vmatpush2.msra.mxu0 %v2598
    %v2600 = vand.u32 %v1706, 4294901760
    %2601 = vmatprep.subr.mxu0 %v2600
    %v2602 = vand.u32 %v1705, 4294901760
    %2603 = vmatpush2.msra.mxu0 %v2602
    %v2604 = vand.u32 %v1704, 4294901760
    %2605 = vmatprep.subr.mxu0 %v2604
    %v2606 = vand.u32 %v1703, 4294901760
    %2607 = vmatpush2.msra.mxu0 %v2606
    %v2608 = vand.u32 %v1702, 4294901760
    %2609 = vmatprep.subr.mxu0 %v2608
    %v2610 = vand.u32 %v1701, 4294901760
    %2611 = vmatpush2.msra.mxu0 %v2610
    %v2612 = vand.u32 %v1700, 4294901760
    %2613 = vmatprep.subr.mxu0 %v2612
    %v2614 = vand.u32 %v1699, 4294901760
    %2615 = vmatpush2.msra.mxu0 %v2614
    %v2616 = vand.u32 %v1698, 4294901760
    %2617 = vmatprep.subr.mxu0 %v2616
    %v2618 = vand.u32 %v1697, 4294901760
    %2619 = vmatpush2.msra.mxu0 %v2618
    %v2620 = vand.u32 %v1696, 4294901760
    %2621 = vmatprep.subr.mxu0 %v2620
    %v2622 = vand.u32 %v1695, 4294901760
    %2623 = vmatpush2.msra.mxu0 %v2622
    %v2624 = vand.u32 %v1694, 4294901760
    %2625 = vmatprep.subr.mxu0 %v2624
    %v2626 = vand.u32 %v1693, 4294901760
    %2627 = vmatpush2.msra.mxu0 %v2626
    %v2628 = vand.u32 %v1692, 4294901760
    %2629 = vmatprep.subr.mxu0 %v2628
    %v2630 = vand.u32 %v1691, 4294901760
    %2631 = vmatpush2.msra.mxu0 %v2630
    %v2632 = vand.u32 %v1690, 4294901760
    %2633 = vmatprep.subr.mxu0 %v2632
    %v2634 = vand.u32 %v1689, 4294901760
    %2635 = vmatpush2.msra.mxu0 %v2634
    %v2636 = vand.u32 %v1688, 4294901760
    %2637 = vmatprep.subr.mxu0 %v2636
    %v2638 = vand.u32 %v1687, 4294901760
    %2639 = vmatpush2.msra.mxu0 %v2638
    %v2640 = vand.u32 %v1686, 4294901760
    %2641 = vmatprep.subr.mxu0 %v2640
    %v2642 = vand.u32 %v1685, 4294901760
    %2643 = vmatpush2.msra.mxu0 %v2642
    %v2644 = vand.u32 %v1684, 4294901760
    %2645 = vmatprep.subr.mxu0 %v2644
    %v2646 = vand.u32 %v1683, 4294901760
    %2647 = vmatpush2.msra.mxu0 %v2646
    %v2648 = vand.u32 %v1632, 4294901760
    %v2649 = vsub.f32 %v1632, %v2648
    %v2650 = vand.u32 %v2649, 4294901760
    %2651 = vmatprep.mubr.f32.mxu0 %v2650
    %v2652 = vand.u32 %v1629, 4294901760
    %v2653 = vsub.f32 %v1629, %v2652
    %v2654 = vand.u32 %v2653, 4294901760
    %2655 = vmatmul.mubr.f32.gmra.mxu0 %v2654
    %v2656 = vpop.f32.mrf.mxu0
    %v2657 = vadd.f32 %v2516, %v2656
    %v2658 = vpop.f32.mrf.mxu0
    %v2659 = vadd.f32 %v2518, %v2658
    %2660 = vdwg.mxu0
    %v2661 = vand.u32 %v1682, 4294901760
    %v2662 = vsub.f32 %v1682, %v2661
    %v2663 = vand.u32 %v2662, 4294901760
    %2664 = vmatprep.subr.mxu0 %v2663
    %v2665 = vand.u32 %v1681, 4294901760
    %v2666 = vsub.f32 %v1681, %v2665
    %v2667 = vand.u32 %v2666, 4294901760
    %2668 = vmatpush1.msra.mxu0 %v2667
    %v2669 = vand.u32 %v1680, 4294901760
    %v2670 = vsub.f32 %v1680, %v2669
    %v2671 = vand.u32 %v2670, 4294901760
    %2672 = vmatprep.subr.mxu0 %v2671
    %v2673 = vand.u32 %v1679, 4294901760
    %v2674 = vsub.f32 %v1679, %v2673
    %v2675 = vand.u32 %v2674, 4294901760
    %2676 = vmatpush1.msra.mxu0 %v2675
    %v2677 = vand.u32 %v1678, 4294901760
    %v2678 = vsub.f32 %v1678, %v2677
    %v2679 = vand.u32 %v2678, 4294901760
    %2680 = vmatprep.subr.mxu0 %v2679
    %v2681 = vand.u32 %v1677, 4294901760
    %v2682 = vsub.f32 %v1677, %v2681
    %v2683 = vand.u32 %v2682, 4294901760
    %2684 = vmatpush1.msra.mxu0 %v2683
    %v2685 = vand.u32 %v1676, 4294901760
    %v2686 = vsub.f32 %v1676, %v2685
    %v2687 = vand.u32 %v2686, 4294901760
    %2688 = vmatprep.subr.mxu0 %v2687
    %v2689 = vand.u32 %v1675, 4294901760
    %v2690 = vsub.f32 %v1675, %v2689
    %v2691 = vand.u32 %v2690, 4294901760
    %2692 = vmatpush1.msra.mxu0 %v2691
    %v2693 = vand.u32 %v1674, 4294901760
    %v2694 = vsub.f32 %v1674, %v2693
    %v2695 = vand.u32 %v2694, 4294901760
    %2696 = vmatprep.subr.mxu0 %v2695
    %v2697 = vand.u32 %v1673, 4294901760
    %v2698 = vsub.f32 %v1673, %v2697
    %v2699 = vand.u32 %v2698, 4294901760
    %2700 = vmatpush1.msra.mxu0 %v2699
    %v2701 = vand.u32 %v1672, 4294901760
    %v2702 = vsub.f32 %v1672, %v2701
    %v2703 = vand.u32 %v2702, 4294901760
    %2704 = vmatprep.subr.mxu0 %v2703
    %v2705 = vand.u32 %v1671, 4294901760
    %v2706 = vsub.f32 %v1671, %v2705
    %v2707 = vand.u32 %v2706, 4294901760
    %2708 = vmatpush1.msra.mxu0 %v2707
    %v2709 = vand.u32 %v1670, 4294901760
    %v2710 = vsub.f32 %v1670, %v2709
    %v2711 = vand.u32 %v2710, 4294901760
    %2712 = vmatprep.subr.mxu0 %v2711
    %v2713 = vand.u32 %v1669, 4294901760
    %v2714 = vsub.f32 %v1669, %v2713
    %v2715 = vand.u32 %v2714, 4294901760
    %2716 = vmatpush1.msra.mxu0 %v2715
    %v2717 = vand.u32 %v1668, 4294901760
    %v2718 = vsub.f32 %v1668, %v2717
    %v2719 = vand.u32 %v2718, 4294901760
    %2720 = vmatprep.subr.mxu0 %v2719
    %v2721 = vand.u32 %v1667, 4294901760
    %v2722 = vsub.f32 %v1667, %v2721
    %v2723 = vand.u32 %v2722, 4294901760
    %2724 = vmatpush1.msra.mxu0 %v2723
    %v2725 = vand.u32 %v1666, 4294901760
    %v2726 = vsub.f32 %v1666, %v2725
    %v2727 = vand.u32 %v2726, 4294901760
    %2728 = vmatprep.subr.mxu0 %v2727
    %v2729 = vand.u32 %v1665, 4294901760
    %v2730 = vsub.f32 %v1665, %v2729
    %v2731 = vand.u32 %v2730, 4294901760
    %2732 = vmatpush1.msra.mxu0 %v2731
    %v2733 = vand.u32 %v1664, 4294901760
    %v2734 = vsub.f32 %v1664, %v2733
    %v2735 = vand.u32 %v2734, 4294901760
    %2736 = vmatprep.subr.mxu0 %v2735
    %v2737 = vand.u32 %v1663, 4294901760
    %v2738 = vsub.f32 %v1663, %v2737
    %v2739 = vand.u32 %v2738, 4294901760
    %2740 = vmatpush1.msra.mxu0 %v2739
    %v2741 = vand.u32 %v1662, 4294901760
    %v2742 = vsub.f32 %v1662, %v2741
    %v2743 = vand.u32 %v2742, 4294901760
    %2744 = vmatprep.subr.mxu0 %v2743
    %v2745 = vand.u32 %v1661, 4294901760
    %v2746 = vsub.f32 %v1661, %v2745
    %v2747 = vand.u32 %v2746, 4294901760
    %2748 = vmatpush1.msra.mxu0 %v2747
    %v2749 = vand.u32 %v1660, 4294901760
    %v2750 = vsub.f32 %v1660, %v2749
    %v2751 = vand.u32 %v2750, 4294901760
    %2752 = vmatprep.subr.mxu0 %v2751
    %v2753 = vand.u32 %v1659, 4294901760
    %v2754 = vsub.f32 %v1659, %v2753
    %v2755 = vand.u32 %v2754, 4294901760
    %2756 = vmatpush1.msra.mxu0 %v2755
    %v2757 = vand.u32 %v1658, 4294901760
    %v2758 = vsub.f32 %v1658, %v2757
    %v2759 = vand.u32 %v2758, 4294901760
    %2760 = vmatprep.subr.mxu0 %v2759
    %v2761 = vand.u32 %v1657, 4294901760
    %v2762 = vsub.f32 %v1657, %v2761
    %v2763 = vand.u32 %v2762, 4294901760
    %2764 = vmatpush1.msra.mxu0 %v2763
    %v2765 = vand.u32 %v1656, 4294901760
    %v2766 = vsub.f32 %v1656, %v2765
    %v2767 = vand.u32 %v2766, 4294901760
    %2768 = vmatprep.subr.mxu0 %v2767
    %v2769 = vand.u32 %v1655, 4294901760
    %v2770 = vsub.f32 %v1655, %v2769
    %v2771 = vand.u32 %v2770, 4294901760
    %2772 = vmatpush1.msra.mxu0 %v2771
    %v2773 = vand.u32 %v1654, 4294901760
    %v2774 = vsub.f32 %v1654, %v2773
    %v2775 = vand.u32 %v2774, 4294901760
    %2776 = vmatprep.subr.mxu0 %v2775
    %v2777 = vand.u32 %v1653, 4294901760
    %v2778 = vsub.f32 %v1653, %v2777
    %v2779 = vand.u32 %v2778, 4294901760
    %2780 = vmatpush1.msra.mxu0 %v2779
    %v2781 = vand.u32 %v1652, 4294901760
    %v2782 = vsub.f32 %v1652, %v2781
    %v2783 = vand.u32 %v2782, 4294901760
    %2784 = vmatprep.subr.mxu0 %v2783
    %v2785 = vand.u32 %v1651, 4294901760
    %v2786 = vsub.f32 %v1651, %v2785
    %v2787 = vand.u32 %v2786, 4294901760
    %2788 = vmatpush1.msra.mxu0 %v2787
    %v2789 = vand.u32 %v1714, 4294901760
    %v2790 = vsub.f32 %v1714, %v2789
    %v2791 = vand.u32 %v2790, 4294901760
    %2792 = vmatprep.subr.mxu0 %v2791
    %v2793 = vand.u32 %v1713, 4294901760
    %v2794 = vsub.f32 %v1713, %v2793
    %v2795 = vand.u32 %v2794, 4294901760
    %2796 = vmatpush2.msra.mxu0 %v2795
    %v2797 = vand.u32 %v1712, 4294901760
    %v2798 = vsub.f32 %v1712, %v2797
    %v2799 = vand.u32 %v2798, 4294901760
    %2800 = vmatprep.subr.mxu0 %v2799
    %v2801 = vand.u32 %v1711, 4294901760
    %v2802 = vsub.f32 %v1711, %v2801
    %v2803 = vand.u32 %v2802, 4294901760
    %2804 = vmatpush2.msra.mxu0 %v2803
    %v2805 = vand.u32 %v1710, 4294901760
    %v2806 = vsub.f32 %v1710, %v2805
    %v2807 = vand.u32 %v2806, 4294901760
    %2808 = vmatprep.subr.mxu0 %v2807
    %v2809 = vand.u32 %v1709, 4294901760
    %v2810 = vsub.f32 %v1709, %v2809
    %v2811 = vand.u32 %v2810, 4294901760
    %2812 = vmatpush2.msra.mxu0 %v2811
    %v2813 = vand.u32 %v1708, 4294901760
    %v2814 = vsub.f32 %v1708, %v2813
    %v2815 = vand.u32 %v2814, 4294901760
    %2816 = vmatprep.subr.mxu0 %v2815
    %v2817 = vand.u32 %v1707, 4294901760
    %v2818 = vsub.f32 %v1707, %v2817
    %v2819 = vand.u32 %v2818, 4294901760
    %2820 = vmatpush2.msra.mxu0 %v2819
    %v2821 = vand.u32 %v1706, 4294901760
    %v2822 = vsub.f32 %v1706, %v2821
    %v2823 = vand.u32 %v2822, 4294901760
    %2824 = vmatprep.subr.mxu0 %v2823
    %v2825 = vand.u32 %v1705, 4294901760
    %v2826 = vsub.f32 %v1705, %v2825
    %v2827 = vand.u32 %v2826, 4294901760
    %2828 = vmatpush2.msra.mxu0 %v2827
    %v2829 = vand.u32 %v1704, 4294901760
    %v2830 = vsub.f32 %v1704, %v2829
    %v2831 = vand.u32 %v2830, 4294901760
    %2832 = vmatprep.subr.mxu0 %v2831
    %v2833 = vand.u32 %v1703, 4294901760
    %v2834 = vsub.f32 %v1703, %v2833
    %v2835 = vand.u32 %v2834, 4294901760
    %2836 = vmatpush2.msra.mxu0 %v2835
    %v2837 = vand.u32 %v1702, 4294901760
    %v2838 = vsub.f32 %v1702, %v2837
    %v2839 = vand.u32 %v2838, 4294901760
    %2840 = vmatprep.subr.mxu0 %v2839
    %v2841 = vand.u32 %v1701, 4294901760
    %v2842 = vsub.f32 %v1701, %v2841
    %v2843 = vand.u32 %v2842, 4294901760
    %2844 = vmatpush2.msra.mxu0 %v2843
    %v2845 = vand.u32 %v1700, 4294901760
    %v2846 = vsub.f32 %v1700, %v2845
    %v2847 = vand.u32 %v2846, 4294901760
    %2848 = vmatprep.subr.mxu0 %v2847
    %v2849 = vand.u32 %v1699, 4294901760
    %v2850 = vsub.f32 %v1699, %v2849
    %v2851 = vand.u32 %v2850, 4294901760
    %2852 = vmatpush2.msra.mxu0 %v2851
    %v2853 = vand.u32 %v1698, 4294901760
    %v2854 = vsub.f32 %v1698, %v2853
    %v2855 = vand.u32 %v2854, 4294901760
    %2856 = vmatprep.subr.mxu0 %v2855
    %v2857 = vand.u32 %v1697, 4294901760
    %v2858 = vsub.f32 %v1697, %v2857
    %v2859 = vand.u32 %v2858, 4294901760
    %2860 = vmatpush2.msra.mxu0 %v2859
    %v2861 = vand.u32 %v1696, 4294901760
    %v2862 = vsub.f32 %v1696, %v2861
    %v2863 = vand.u32 %v2862, 4294901760
    %2864 = vmatprep.subr.mxu0 %v2863
    %v2865 = vand.u32 %v1695, 4294901760
    %v2866 = vsub.f32 %v1695, %v2865
    %v2867 = vand.u32 %v2866, 4294901760
    %2868 = vmatpush2.msra.mxu0 %v2867
    %v2869 = vand.u32 %v1694, 4294901760
    %v2870 = vsub.f32 %v1694, %v2869
    %v2871 = vand.u32 %v2870, 4294901760
    %2872 = vmatprep.subr.mxu0 %v2871
    %v2873 = vand.u32 %v1693, 4294901760
    %v2874 = vsub.f32 %v1693, %v2873
    %v2875 = vand.u32 %v2874, 4294901760
    %2876 = vmatpush2.msra.mxu0 %v2875
    %v2877 = vand.u32 %v1692, 4294901760
    %v2878 = vsub.f32 %v1692, %v2877
    %v2879 = vand.u32 %v2878, 4294901760
    %2880 = vmatprep.subr.mxu0 %v2879
    %v2881 = vand.u32 %v1691, 4294901760
    %v2882 = vsub.f32 %v1691, %v2881
    %v2883 = vand.u32 %v2882, 4294901760
    %2884 = vmatpush2.msra.mxu0 %v2883
    %v2885 = vand.u32 %v1690, 4294901760
    %v2886 = vsub.f32 %v1690, %v2885
    %v2887 = vand.u32 %v2886, 4294901760
    %2888 = vmatprep.subr.mxu0 %v2887
    %v2889 = vand.u32 %v1689, 4294901760
    %v2890 = vsub.f32 %v1689, %v2889
    %v2891 = vand.u32 %v2890, 4294901760
    %2892 = vmatpush2.msra.mxu0 %v2891
    %v2893 = vand.u32 %v1688, 4294901760
    %v2894 = vsub.f32 %v1688, %v2893
    %v2895 = vand.u32 %v2894, 4294901760
    %2896 = vmatprep.subr.mxu0 %v2895
    %v2897 = vand.u32 %v1687, 4294901760
    %v2898 = vsub.f32 %v1687, %v2897
    %v2899 = vand.u32 %v2898, 4294901760
    %2900 = vmatpush2.msra.mxu0 %v2899
    %v2901 = vand.u32 %v1686, 4294901760
    %v2902 = vsub.f32 %v1686, %v2901
    %v2903 = vand.u32 %v2902, 4294901760
    %2904 = vmatprep.subr.mxu0 %v2903
    %v2905 = vand.u32 %v1685, 4294901760
    %v2906 = vsub.f32 %v1685, %v2905
    %v2907 = vand.u32 %v2906, 4294901760
    %2908 = vmatpush2.msra.mxu0 %v2907
    %v2909 = vand.u32 %v1684, 4294901760
    %v2910 = vsub.f32 %v1684, %v2909
    %v2911 = vand.u32 %v2910, 4294901760
    %2912 = vmatprep.subr.mxu0 %v2911
    %v2913 = vand.u32 %v1683, 4294901760
    %v2914 = vsub.f32 %v1683, %v2913
    %v2915 = vand.u32 %v2914, 4294901760
    %2916 = vmatpush2.msra.mxu0 %v2915
    %v2917 = vand.u32 %v1632, 4294901760
    %2918 = vmatprep.mubr.f32.mxu0 %v2917
    %v2919 = vand.u32 %v1629, 4294901760
    %2920 = vmatmul.mubr.f32.gmra.mxu0 %v2919
    %v2921 = vpop.f32.mrf.mxu0
    %v2922 = vadd.f32 %v2657, %v2921
    %v2923 = vpop.f32.mrf.mxu0
    %v2924 = vadd.f32 %v2659, %v2923
    %2925 = vdwg.mxu0
    %v2926 = vand.u32 %v1682, 4294901760
    %2927 = vmatprep.subr.mxu0 %v2926
    %v2928 = vand.u32 %v1681, 4294901760
    %2929 = vmatpush1.msra.mxu0 %v2928
    %v2930 = vand.u32 %v1680, 4294901760
    %2931 = vmatprep.subr.mxu0 %v2930
    %v2932 = vand.u32 %v1679, 4294901760
    %2933 = vmatpush1.msra.mxu0 %v2932
    %v2934 = vand.u32 %v1678, 4294901760
    %2935 = vmatprep.subr.mxu0 %v2934
    %v2936 = vand.u32 %v1677, 4294901760
    %2937 = vmatpush1.msra.mxu0 %v2936
    %v2938 = vand.u32 %v1676, 4294901760
    %2939 = vmatprep.subr.mxu0 %v2938
    %v2940 = vand.u32 %v1675, 4294901760
    %2941 = vmatpush1.msra.mxu0 %v2940
    %v2942 = vand.u32 %v1674, 4294901760
    %2943 = vmatprep.subr.mxu0 %v2942
    %v2944 = vand.u32 %v1673, 4294901760
    %2945 = vmatpush1.msra.mxu0 %v2944
    %v2946 = vand.u32 %v1672, 4294901760
    %2947 = vmatprep.subr.mxu0 %v2946
    %v2948 = vand.u32 %v1671, 4294901760
    %2949 = vmatpush1.msra.mxu0 %v2948
    %v2950 = vand.u32 %v1670, 4294901760
    %2951 = vmatprep.subr.mxu0 %v2950
    %v2952 = vand.u32 %v1669, 4294901760
    %2953 = vmatpush1.msra.mxu0 %v2952
    %v2954 = vand.u32 %v1668, 4294901760
    %2955 = vmatprep.subr.mxu0 %v2954
    %v2956 = vand.u32 %v1667, 4294901760
    %2957 = vmatpush1.msra.mxu0 %v2956
    %v2958 = vand.u32 %v1666, 4294901760
    %2959 = vmatprep.subr.mxu0 %v2958
    %v2960 = vand.u32 %v1665, 4294901760
    %2961 = vmatpush1.msra.mxu0 %v2960
    %v2962 = vand.u32 %v1664, 4294901760
    %2963 = vmatprep.subr.mxu0 %v2962
    %v2964 = vand.u32 %v1663, 4294901760
    %2965 = vmatpush1.msra.mxu0 %v2964
    %v2966 = vand.u32 %v1662, 4294901760
    %2967 = vmatprep.subr.mxu0 %v2966
    %v2968 = vand.u32 %v1661, 4294901760
    %2969 = vmatpush1.msra.mxu0 %v2968
    %v2970 = vand.u32 %v1660, 4294901760
    %2971 = vmatprep.subr.mxu0 %v2970
    %v2972 = vand.u32 %v1659, 4294901760
    %2973 = vmatpush1.msra.mxu0 %v2972
    %v2974 = vand.u32 %v1658, 4294901760
    %2975 = vmatprep.subr.mxu0 %v2974
    %v2976 = vand.u32 %v1657, 4294901760
    %2977 = vmatpush1.msra.mxu0 %v2976
    %v2978 = vand.u32 %v1656, 4294901760
    %2979 = vmatprep.subr.mxu0 %v2978
    %v2980 = vand.u32 %v1655, 4294901760
    %2981 = vmatpush1.msra.mxu0 %v2980
    %v2982 = vand.u32 %v1654, 4294901760
    %2983 = vmatprep.subr.mxu0 %v2982
    %v2984 = vand.u32 %v1653, 4294901760
    %2985 = vmatpush1.msra.mxu0 %v2984
    %v2986 = vand.u32 %v1652, 4294901760
    %2987 = vmatprep.subr.mxu0 %v2986
    %v2988 = vand.u32 %v1651, 4294901760
    %2989 = vmatpush1.msra.mxu0 %v2988
    %v2990 = vand.u32 %v1714, 4294901760
    %2991 = vmatprep.subr.mxu0 %v2990
    %v2992 = vand.u32 %v1713, 4294901760
    %2993 = vmatpush2.msra.mxu0 %v2992
    %v2994 = vand.u32 %v1712, 4294901760
    %2995 = vmatprep.subr.mxu0 %v2994
    %v2996 = vand.u32 %v1711, 4294901760
    %2997 = vmatpush2.msra.mxu0 %v2996
    %v2998 = vand.u32 %v1710, 4294901760
    %2999 = vmatprep.subr.mxu0 %v2998
    %v3000 = vand.u32 %v1709, 4294901760
    %3001 = vmatpush2.msra.mxu0 %v3000
    %v3002 = vand.u32 %v1708, 4294901760
    %3003 = vmatprep.subr.mxu0 %v3002
    %v3004 = vand.u32 %v1707, 4294901760
    %3005 = vmatpush2.msra.mxu0 %v3004
    %v3006 = vand.u32 %v1706, 4294901760
    %3007 = vmatprep.subr.mxu0 %v3006
    %v3008 = vand.u32 %v1705, 4294901760
    %3009 = vmatpush2.msra.mxu0 %v3008
    %v3010 = vand.u32 %v1704, 4294901760
    %3011 = vmatprep.subr.mxu0 %v3010
    %v3012 = vand.u32 %v1703, 4294901760
    %3013 = vmatpush2.msra.mxu0 %v3012
    %v3014 = vand.u32 %v1702, 4294901760
    %3015 = vmatprep.subr.mxu0 %v3014
    %v3016 = vand.u32 %v1701, 4294901760
    %3017 = vmatpush2.msra.mxu0 %v3016
    %v3018 = vand.u32 %v1700, 4294901760
    %3019 = vmatprep.subr.mxu0 %v3018
    %v3020 = vand.u32 %v1699, 4294901760
    %3021 = vmatpush2.msra.mxu0 %v3020
    %v3022 = vand.u32 %v1698, 4294901760
    %3023 = vmatprep.subr.mxu0 %v3022
    %v3024 = vand.u32 %v1697, 4294901760
    %3025 = vmatpush2.msra.mxu0 %v3024
    %v3026 = vand.u32 %v1696, 4294901760
    %3027 = vmatprep.subr.mxu0 %v3026
    %v3028 = vand.u32 %v1695, 4294901760
    %3029 = vmatpush2.msra.mxu0 %v3028
    %v3030 = vand.u32 %v1694, 4294901760
    %3031 = vmatprep.subr.mxu0 %v3030
    %v3032 = vand.u32 %v1693, 4294901760
    %3033 = vmatpush2.msra.mxu0 %v3032
    %v3034 = vand.u32 %v1692, 4294901760
    %3035 = vmatprep.subr.mxu0 %v3034
    %v3036 = vand.u32 %v1691, 4294901760
    %3037 = vmatpush2.msra.mxu0 %v3036
    %v3038 = vand.u32 %v1690, 4294901760
    %3039 = vmatprep.subr.mxu0 %v3038
    %v3040 = vand.u32 %v1689, 4294901760
    %3041 = vmatpush2.msra.mxu0 %v3040
    %v3042 = vand.u32 %v1688, 4294901760
    %3043 = vmatprep.subr.mxu0 %v3042
    %v3044 = vand.u32 %v1687, 4294901760
    %3045 = vmatpush2.msra.mxu0 %v3044
    %v3046 = vand.u32 %v1686, 4294901760
    %3047 = vmatprep.subr.mxu0 %v3046
    %v3048 = vand.u32 %v1685, 4294901760
    %3049 = vmatpush2.msra.mxu0 %v3048
    %v3050 = vand.u32 %v1684, 4294901760
    %3051 = vmatprep.subr.mxu0 %v3050
    %v3052 = vand.u32 %v1683, 4294901760
    %3053 = vmatpush2.msra.mxu0 %v3052
    %v3054 = vand.u32 %v1632, 4294901760
    %3055 = vmatprep.mubr.f32.mxu0 %v3054
    %v3056 = vand.u32 %v1629, 4294901760
    %3057 = vmatmul.mubr.f32.gmra.mxu0 %v3056
    %v3058 = vpop.f32.mrf.mxu0
    %v3059 = vadd.f32 %v2922, %v3058
    %v3060 = vpop.f32.mrf.mxu0
    %v3061 = vadd.f32 %v2924, %v3060
    %3062 = vdwg.mxu0
    %v3063 = vand.u32 %v1746, 4294901760
    %3064 = vmatprep.subr.mxu0 %v3063
    %v3065 = vand.u32 %v1745, 4294901760
    %3066 = vmatpush1.msra.mxu0 %v3065
    %v3067 = vand.u32 %v1744, 4294901760
    %3068 = vmatprep.subr.mxu0 %v3067
    %v3069 = vand.u32 %v1743, 4294901760
    %3070 = vmatpush1.msra.mxu0 %v3069
    %v3071 = vand.u32 %v1742, 4294901760
    %3072 = vmatprep.subr.mxu0 %v3071
    %v3073 = vand.u32 %v1741, 4294901760
    %3074 = vmatpush1.msra.mxu0 %v3073
    %v3075 = vand.u32 %v1740, 4294901760
    %3076 = vmatprep.subr.mxu0 %v3075
    %v3077 = vand.u32 %v1739, 4294901760
    %3078 = vmatpush1.msra.mxu0 %v3077
    %v3079 = vand.u32 %v1738, 4294901760
    %3080 = vmatprep.subr.mxu0 %v3079
    %v3081 = vand.u32 %v1737, 4294901760
    %3082 = vmatpush1.msra.mxu0 %v3081
    %v3083 = vand.u32 %v1736, 4294901760
    %3084 = vmatprep.subr.mxu0 %v3083
    %v3085 = vand.u32 %v1735, 4294901760
    %3086 = vmatpush1.msra.mxu0 %v3085
    %v3087 = vand.u32 %v1734, 4294901760
    %3088 = vmatprep.subr.mxu0 %v3087
    %v3089 = vand.u32 %v1733, 4294901760
    %3090 = vmatpush1.msra.mxu0 %v3089
    %v3091 = vand.u32 %v1732, 4294901760
    %3092 = vmatprep.subr.mxu0 %v3091
    %v3093 = vand.u32 %v1731, 4294901760
    %3094 = vmatpush1.msra.mxu0 %v3093
    %v3095 = vand.u32 %v1730, 4294901760
    %3096 = vmatprep.subr.mxu0 %v3095
    %v3097 = vand.u32 %v1729, 4294901760
    %3098 = vmatpush1.msra.mxu0 %v3097
    %v3099 = vand.u32 %v1728, 4294901760
    %3100 = vmatprep.subr.mxu0 %v3099
    %v3101 = vand.u32 %v1727, 4294901760
    %3102 = vmatpush1.msra.mxu0 %v3101
    %v3103 = vand.u32 %v1726, 4294901760
    %3104 = vmatprep.subr.mxu0 %v3103
    %v3105 = vand.u32 %v1725, 4294901760
    %3106 = vmatpush1.msra.mxu0 %v3105
    %v3107 = vand.u32 %v1724, 4294901760
    %3108 = vmatprep.subr.mxu0 %v3107
    %v3109 = vand.u32 %v1723, 4294901760
    %3110 = vmatpush1.msra.mxu0 %v3109
    %v3111 = vand.u32 %v1722, 4294901760
    %3112 = vmatprep.subr.mxu0 %v3111
    %v3113 = vand.u32 %v1721, 4294901760
    %3114 = vmatpush1.msra.mxu0 %v3113
    %v3115 = vand.u32 %v1720, 4294901760
    %3116 = vmatprep.subr.mxu0 %v3115
    %v3117 = vand.u32 %v1719, 4294901760
    %3118 = vmatpush1.msra.mxu0 %v3117
    %v3119 = vand.u32 %v1718, 4294901760
    %3120 = vmatprep.subr.mxu0 %v3119
    %v3121 = vand.u32 %v1717, 4294901760
    %3122 = vmatpush1.msra.mxu0 %v3121
    %v3123 = vand.u32 %v1716, 4294901760
    %3124 = vmatprep.subr.mxu0 %v3123
    %v3125 = vand.u32 %v1715, 4294901760
    %3126 = vmatpush1.msra.mxu0 %v3125
    %v3127 = vand.u32 %v1778, 4294901760
    %3128 = vmatprep.subr.mxu0 %v3127
    %v3129 = vand.u32 %v1777, 4294901760
    %3130 = vmatpush2.msra.mxu0 %v3129
    %v3131 = vand.u32 %v1776, 4294901760
    %3132 = vmatprep.subr.mxu0 %v3131
    %v3133 = vand.u32 %v1775, 4294901760
    %3134 = vmatpush2.msra.mxu0 %v3133
    %v3135 = vand.u32 %v1774, 4294901760
    %3136 = vmatprep.subr.mxu0 %v3135
    %v3137 = vand.u32 %v1773, 4294901760
    %3138 = vmatpush2.msra.mxu0 %v3137
    %v3139 = vand.u32 %v1772, 4294901760
    %3140 = vmatprep.subr.mxu0 %v3139
    %v3141 = vand.u32 %v1771, 4294901760
    %3142 = vmatpush2.msra.mxu0 %v3141
    %v3143 = vand.u32 %v1770, 4294901760
    %3144 = vmatprep.subr.mxu0 %v3143
    %v3145 = vand.u32 %v1769, 4294901760
    %3146 = vmatpush2.msra.mxu0 %v3145
    %v3147 = vand.u32 %v1768, 4294901760
    %3148 = vmatprep.subr.mxu0 %v3147
    %v3149 = vand.u32 %v1767, 4294901760
    %3150 = vmatpush2.msra.mxu0 %v3149
    %v3151 = vand.u32 %v1766, 4294901760
    %3152 = vmatprep.subr.mxu0 %v3151
    %v3153 = vand.u32 %v1765, 4294901760
    %3154 = vmatpush2.msra.mxu0 %v3153
    %v3155 = vand.u32 %v1764, 4294901760
    %3156 = vmatprep.subr.mxu0 %v3155
    %v3157 = vand.u32 %v1763, 4294901760
    %3158 = vmatpush2.msra.mxu0 %v3157
    %v3159 = vand.u32 %v1762, 4294901760
    %3160 = vmatprep.subr.mxu0 %v3159
    %v3161 = vand.u32 %v1761, 4294901760
    %3162 = vmatpush2.msra.mxu0 %v3161
    %v3163 = vand.u32 %v1760, 4294901760
    %3164 = vmatprep.subr.mxu0 %v3163
    %v3165 = vand.u32 %v1759, 4294901760
    %3166 = vmatpush2.msra.mxu0 %v3165
    %v3167 = vand.u32 %v1758, 4294901760
    %3168 = vmatprep.subr.mxu0 %v3167
    %v3169 = vand.u32 %v1757, 4294901760
    %3170 = vmatpush2.msra.mxu0 %v3169
    %v3171 = vand.u32 %v1756, 4294901760
    %3172 = vmatprep.subr.mxu0 %v3171
    %v3173 = vand.u32 %v1755, 4294901760
    %3174 = vmatpush2.msra.mxu0 %v3173
    %v3175 = vand.u32 %v1754, 4294901760
    %3176 = vmatprep.subr.mxu0 %v3175
    %v3177 = vand.u32 %v1753, 4294901760
    %3178 = vmatpush2.msra.mxu0 %v3177
    %v3179 = vand.u32 %v1752, 4294901760
    %3180 = vmatprep.subr.mxu0 %v3179
    %v3181 = vand.u32 %v1751, 4294901760
    %3182 = vmatpush2.msra.mxu0 %v3181
    %v3183 = vand.u32 %v1750, 4294901760
    %3184 = vmatprep.subr.mxu0 %v3183
    %v3185 = vand.u32 %v1749, 4294901760
    %3186 = vmatpush2.msra.mxu0 %v3185
    %v3187 = vand.u32 %v1748, 4294901760
    %3188 = vmatprep.subr.mxu0 %v3187
    %v3189 = vand.u32 %v1747, 4294901760
    %3190 = vmatpush2.msra.mxu0 %v3189
    %v3191 = vand.u32 %v1648, 4294901760
    %v3192 = vsub.f32 %v1648, %v3191
    %v3193 = vand.u32 %v3192, 4294901760
    %v3194 = vsub.f32 %v3192, %v3193
    %v3195 = vand.u32 %v3194, 4294901760
    %3196 = vmatprep.mubr.f32.mxu0 %v3195
    %v3197 = vand.u32 %v1645, 4294901760
    %v3198 = vsub.f32 %v1645, %v3197
    %v3199 = vand.u32 %v3198, 4294901760
    %v3200 = vsub.f32 %v3198, %v3199
    %v3201 = vand.u32 %v3200, 4294901760
    %3202 = vmatmul.mubr.f32.gmra.mxu0 %v3201
    %v3203 = vpop.f32.mrf.mxu0
    %v3204 = vadd.f32 %v3059, %v3203
    %v3205 = vpop.f32.mrf.mxu0
    %v3206 = vadd.f32 %v3061, %v3205
    %3207 = vdwg.mxu0
    %v3208 = vand.u32 %v1746, 4294901760
    %v3209 = vsub.f32 %v1746, %v3208
    %v3210 = vand.u32 %v3209, 4294901760
    %v3211 = vsub.f32 %v3209, %v3210
    %v3212 = vand.u32 %v3211, 4294901760
    %3213 = vmatprep.subr.mxu0 %v3212
    %v3214 = vand.u32 %v1745, 4294901760
    %v3215 = vsub.f32 %v1745, %v3214
    %v3216 = vand.u32 %v3215, 4294901760
    %v3217 = vsub.f32 %v3215, %v3216
    %v3218 = vand.u32 %v3217, 4294901760
    %3219 = vmatpush1.msra.mxu0 %v3218
    %v3220 = vand.u32 %v1744, 4294901760
    %v3221 = vsub.f32 %v1744, %v3220
    %v3222 = vand.u32 %v3221, 4294901760
    %v3223 = vsub.f32 %v3221, %v3222
    %v3224 = vand.u32 %v3223, 4294901760
    %3225 = vmatprep.subr.mxu0 %v3224
    %v3226 = vand.u32 %v1743, 4294901760
    %v3227 = vsub.f32 %v1743, %v3226
    %v3228 = vand.u32 %v3227, 4294901760
    %v3229 = vsub.f32 %v3227, %v3228
    %v3230 = vand.u32 %v3229, 4294901760
    %3231 = vmatpush1.msra.mxu0 %v3230
    %v3232 = vand.u32 %v1742, 4294901760
    %v3233 = vsub.f32 %v1742, %v3232
    %v3234 = vand.u32 %v3233, 4294901760
    %v3235 = vsub.f32 %v3233, %v3234
    %v3236 = vand.u32 %v3235, 4294901760
    %3237 = vmatprep.subr.mxu0 %v3236
    %v3238 = vand.u32 %v1741, 4294901760
    %v3239 = vsub.f32 %v1741, %v3238
    %v3240 = vand.u32 %v3239, 4294901760
    %v3241 = vsub.f32 %v3239, %v3240
    %v3242 = vand.u32 %v3241, 4294901760
    %3243 = vmatpush1.msra.mxu0 %v3242
    %v3244 = vand.u32 %v1740, 4294901760
    %v3245 = vsub.f32 %v1740, %v3244
    %v3246 = vand.u32 %v3245, 4294901760
    %v3247 = vsub.f32 %v3245, %v3246
    %v3248 = vand.u32 %v3247, 4294901760
    %3249 = vmatprep.subr.mxu0 %v3248
    %v3250 = vand.u32 %v1739, 4294901760
    %v3251 = vsub.f32 %v1739, %v3250
    %v3252 = vand.u32 %v3251, 4294901760
    %v3253 = vsub.f32 %v3251, %v3252
    %v3254 = vand.u32 %v3253, 4294901760
    %3255 = vmatpush1.msra.mxu0 %v3254
    %v3256 = vand.u32 %v1738, 4294901760
    %v3257 = vsub.f32 %v1738, %v3256
    %v3258 = vand.u32 %v3257, 4294901760
    %v3259 = vsub.f32 %v3257, %v3258
    %v3260 = vand.u32 %v3259, 4294901760
    %3261 = vmatprep.subr.mxu0 %v3260
    %v3262 = vand.u32 %v1737, 4294901760
    %v3263 = vsub.f32 %v1737, %v3262
    %v3264 = vand.u32 %v3263, 4294901760
    %v3265 = vsub.f32 %v3263, %v3264
    %v3266 = vand.u32 %v3265, 4294901760
    %3267 = vmatpush1.msra.mxu0 %v3266
    %v3268 = vand.u32 %v1736, 4294901760
    %v3269 = vsub.f32 %v1736, %v3268
    %v3270 = vand.u32 %v3269, 4294901760
    %v3271 = vsub.f32 %v3269, %v3270
    %v3272 = vand.u32 %v3271, 4294901760
    %3273 = vmatprep.subr.mxu0 %v3272
    %v3274 = vand.u32 %v1735, 4294901760
    %v3275 = vsub.f32 %v1735, %v3274
    %v3276 = vand.u32 %v3275, 4294901760
    %v3277 = vsub.f32 %v3275, %v3276
    %v3278 = vand.u32 %v3277, 4294901760
    %3279 = vmatpush1.msra.mxu0 %v3278
    %v3280 = vand.u32 %v1734, 4294901760
    %v3281 = vsub.f32 %v1734, %v3280
    %v3282 = vand.u32 %v3281, 4294901760
    %v3283 = vsub.f32 %v3281, %v3282
    %v3284 = vand.u32 %v3283, 4294901760
    %3285 = vmatprep.subr.mxu0 %v3284
    %v3286 = vand.u32 %v1733, 4294901760
    %v3287 = vsub.f32 %v1733, %v3286
    %v3288 = vand.u32 %v3287, 4294901760
    %v3289 = vsub.f32 %v3287, %v3288
    %v3290 = vand.u32 %v3289, 4294901760
    %3291 = vmatpush1.msra.mxu0 %v3290
    %v3292 = vand.u32 %v1732, 4294901760
    %v3293 = vsub.f32 %v1732, %v3292
    %v3294 = vand.u32 %v3293, 4294901760
    %v3295 = vsub.f32 %v3293, %v3294
    %v3296 = vand.u32 %v3295, 4294901760
    %3297 = vmatprep.subr.mxu0 %v3296
    %v3298 = vand.u32 %v1731, 4294901760
    %v3299 = vsub.f32 %v1731, %v3298
    %v3300 = vand.u32 %v3299, 4294901760
    %v3301 = vsub.f32 %v3299, %v3300
    %v3302 = vand.u32 %v3301, 4294901760
    %3303 = vmatpush1.msra.mxu0 %v3302
    %v3304 = vand.u32 %v1730, 4294901760
    %v3305 = vsub.f32 %v1730, %v3304
    %v3306 = vand.u32 %v3305, 4294901760
    %v3307 = vsub.f32 %v3305, %v3306
    %v3308 = vand.u32 %v3307, 4294901760
    %3309 = vmatprep.subr.mxu0 %v3308
    %v3310 = vand.u32 %v1729, 4294901760
    %v3311 = vsub.f32 %v1729, %v3310
    %v3312 = vand.u32 %v3311, 4294901760
    %v3313 = vsub.f32 %v3311, %v3312
    %v3314 = vand.u32 %v3313, 4294901760
    %3315 = vmatpush1.msra.mxu0 %v3314
    %v3316 = vand.u32 %v1728, 4294901760
    %v3317 = vsub.f32 %v1728, %v3316
    %v3318 = vand.u32 %v3317, 4294901760
    %v3319 = vsub.f32 %v3317, %v3318
    %v3320 = vand.u32 %v3319, 4294901760
    %3321 = vmatprep.subr.mxu0 %v3320
    %v3322 = vand.u32 %v1727, 4294901760
    %v3323 = vsub.f32 %v1727, %v3322
    %v3324 = vand.u32 %v3323, 4294901760
    %v3325 = vsub.f32 %v3323, %v3324
    %v3326 = vand.u32 %v3325, 4294901760
    %3327 = vmatpush1.msra.mxu0 %v3326
    %v3328 = vand.u32 %v1726, 4294901760
    %v3329 = vsub.f32 %v1726, %v3328
    %v3330 = vand.u32 %v3329, 4294901760
    %v3331 = vsub.f32 %v3329, %v3330
    %v3332 = vand.u32 %v3331, 4294901760
    %3333 = vmatprep.subr.mxu0 %v3332
    %v3334 = vand.u32 %v1725, 4294901760
    %v3335 = vsub.f32 %v1725, %v3334
    %v3336 = vand.u32 %v3335, 4294901760
    %v3337 = vsub.f32 %v3335, %v3336
    %v3338 = vand.u32 %v3337, 4294901760
    %3339 = vmatpush1.msra.mxu0 %v3338
    %v3340 = vand.u32 %v1724, 4294901760
    %v3341 = vsub.f32 %v1724, %v3340
    %v3342 = vand.u32 %v3341, 4294901760
    %v3343 = vsub.f32 %v3341, %v3342
    %v3344 = vand.u32 %v3343, 4294901760
    %3345 = vmatprep.subr.mxu0 %v3344
    %v3346 = vand.u32 %v1723, 4294901760
    %v3347 = vsub.f32 %v1723, %v3346
    %v3348 = vand.u32 %v3347, 4294901760
    %v3349 = vsub.f32 %v3347, %v3348
    %v3350 = vand.u32 %v3349, 4294901760
    %3351 = vmatpush1.msra.mxu0 %v3350
    %v3352 = vand.u32 %v1722, 4294901760
    %v3353 = vsub.f32 %v1722, %v3352
    %v3354 = vand.u32 %v3353, 4294901760
    %v3355 = vsub.f32 %v3353, %v3354
    %v3356 = vand.u32 %v3355, 4294901760
    %3357 = vmatprep.subr.mxu0 %v3356
    %v3358 = vand.u32 %v1721, 4294901760
    %v3359 = vsub.f32 %v1721, %v3358
    %v3360 = vand.u32 %v3359, 4294901760
    %v3361 = vsub.f32 %v3359, %v3360
    %v3362 = vand.u32 %v3361, 4294901760
    %3363 = vmatpush1.msra.mxu0 %v3362
    %v3364 = vand.u32 %v1720, 4294901760
    %v3365 = vsub.f32 %v1720, %v3364
    %v3366 = vand.u32 %v3365, 4294901760
    %v3367 = vsub.f32 %v3365, %v3366
    %v3368 = vand.u32 %v3367, 4294901760
    %3369 = vmatprep.subr.mxu0 %v3368
    %v3370 = vand.u32 %v1719, 4294901760
    %v3371 = vsub.f32 %v1719, %v3370
    %v3372 = vand.u32 %v3371, 4294901760
    %v3373 = vsub.f32 %v3371, %v3372
    %v3374 = vand.u32 %v3373, 4294901760
    %3375 = vmatpush1.msra.mxu0 %v3374
    %v3376 = vand.u32 %v1718, 4294901760
    %v3377 = vsub.f32 %v1718, %v3376
    %v3378 = vand.u32 %v3377, 4294901760
    %v3379 = vsub.f32 %v3377, %v3378
    %v3380 = vand.u32 %v3379, 4294901760
    %3381 = vmatprep.subr.mxu0 %v3380
    %v3382 = vand.u32 %v1717, 4294901760
    %v3383 = vsub.f32 %v1717, %v3382
    %v3384 = vand.u32 %v3383, 4294901760
    %v3385 = vsub.f32 %v3383, %v3384
    %v3386 = vand.u32 %v3385, 4294901760
    %3387 = vmatpush1.msra.mxu0 %v3386
    %v3388 = vand.u32 %v1716, 4294901760
    %v3389 = vsub.f32 %v1716, %v3388
    %v3390 = vand.u32 %v3389, 4294901760
    %v3391 = vsub.f32 %v3389, %v3390
    %v3392 = vand.u32 %v3391, 4294901760
    %3393 = vmatprep.subr.mxu0 %v3392
    %v3394 = vand.u32 %v1715, 4294901760
    %v3395 = vsub.f32 %v1715, %v3394
    %v3396 = vand.u32 %v3395, 4294901760
    %v3397 = vsub.f32 %v3395, %v3396
    %v3398 = vand.u32 %v3397, 4294901760
    %3399 = vmatpush1.msra.mxu0 %v3398
    %v3400 = vand.u32 %v1778, 4294901760
    %v3401 = vsub.f32 %v1778, %v3400
    %v3402 = vand.u32 %v3401, 4294901760
    %v3403 = vsub.f32 %v3401, %v3402
    %v3404 = vand.u32 %v3403, 4294901760
    %3405 = vmatprep.subr.mxu0 %v3404
    %v3406 = vand.u32 %v1777, 4294901760
    %v3407 = vsub.f32 %v1777, %v3406
    %v3408 = vand.u32 %v3407, 4294901760
    %v3409 = vsub.f32 %v3407, %v3408
    %v3410 = vand.u32 %v3409, 4294901760
    %3411 = vmatpush2.msra.mxu0 %v3410
    %v3412 = vand.u32 %v1776, 4294901760
    %v3413 = vsub.f32 %v1776, %v3412
    %v3414 = vand.u32 %v3413, 4294901760
    %v3415 = vsub.f32 %v3413, %v3414
    %v3416 = vand.u32 %v3415, 4294901760
    %3417 = vmatprep.subr.mxu0 %v3416
    %v3418 = vand.u32 %v1775, 4294901760
    %v3419 = vsub.f32 %v1775, %v3418
    %v3420 = vand.u32 %v3419, 4294901760
    %v3421 = vsub.f32 %v3419, %v3420
    %v3422 = vand.u32 %v3421, 4294901760
    %3423 = vmatpush2.msra.mxu0 %v3422
    %v3424 = vand.u32 %v1774, 4294901760
    %v3425 = vsub.f32 %v1774, %v3424
    %v3426 = vand.u32 %v3425, 4294901760
    %v3427 = vsub.f32 %v3425, %v3426
    %v3428 = vand.u32 %v3427, 4294901760
    %3429 = vmatprep.subr.mxu0 %v3428
    %v3430 = vand.u32 %v1773, 4294901760
    %v3431 = vsub.f32 %v1773, %v3430
    %v3432 = vand.u32 %v3431, 4294901760
    %v3433 = vsub.f32 %v3431, %v3432
    %v3434 = vand.u32 %v3433, 4294901760
    %3435 = vmatpush2.msra.mxu0 %v3434
    %v3436 = vand.u32 %v1772, 4294901760
    %v3437 = vsub.f32 %v1772, %v3436
    %v3438 = vand.u32 %v3437, 4294901760
    %v3439 = vsub.f32 %v3437, %v3438
    %v3440 = vand.u32 %v3439, 4294901760
    %3441 = vmatprep.subr.mxu0 %v3440
    %v3442 = vand.u32 %v1771, 4294901760
    %v3443 = vsub.f32 %v1771, %v3442
    %v3444 = vand.u32 %v3443, 4294901760
    %v3445 = vsub.f32 %v3443, %v3444
    %v3446 = vand.u32 %v3445, 4294901760
    %3447 = vmatpush2.msra.mxu0 %v3446
    %v3448 = vand.u32 %v1770, 4294901760
    %v3449 = vsub.f32 %v1770, %v3448
    %v3450 = vand.u32 %v3449, 4294901760
    %v3451 = vsub.f32 %v3449, %v3450
    %v3452 = vand.u32 %v3451, 4294901760
    %3453 = vmatprep.subr.mxu0 %v3452
    %v3454 = vand.u32 %v1769, 4294901760
    %v3455 = vsub.f32 %v1769, %v3454
    %v3456 = vand.u32 %v3455, 4294901760
    %v3457 = vsub.f32 %v3455, %v3456
    %v3458 = vand.u32 %v3457, 4294901760
    %3459 = vmatpush2.msra.mxu0 %v3458
    %v3460 = vand.u32 %v1768, 4294901760
    %v3461 = vsub.f32 %v1768, %v3460
    %v3462 = vand.u32 %v3461, 4294901760
    %v3463 = vsub.f32 %v3461, %v3462
    %v3464 = vand.u32 %v3463, 4294901760
    %3465 = vmatprep.subr.mxu0 %v3464
    %v3466 = vand.u32 %v1767, 4294901760
    %v3467 = vsub.f32 %v1767, %v3466
    %v3468 = vand.u32 %v3467, 4294901760
    %v3469 = vsub.f32 %v3467, %v3468
    %v3470 = vand.u32 %v3469, 4294901760
    %3471 = vmatpush2.msra.mxu0 %v3470
    %v3472 = vand.u32 %v1766, 4294901760
    %v3473 = vsub.f32 %v1766, %v3472
    %v3474 = vand.u32 %v3473, 4294901760
    %v3475 = vsub.f32 %v3473, %v3474
    %v3476 = vand.u32 %v3475, 4294901760
    %3477 = vmatprep.subr.mxu0 %v3476
    %v3478 = vand.u32 %v1765, 4294901760
    %v3479 = vsub.f32 %v1765, %v3478
    %v3480 = vand.u32 %v3479, 4294901760
    %v3481 = vsub.f32 %v3479, %v3480
    %v3482 = vand.u32 %v3481, 4294901760
    %3483 = vmatpush2.msra.mxu0 %v3482
    %v3484 = vand.u32 %v1764, 4294901760
    %v3485 = vsub.f32 %v1764, %v3484
    %v3486 = vand.u32 %v3485, 4294901760
    %v3487 = vsub.f32 %v3485, %v3486
    %v3488 = vand.u32 %v3487, 4294901760
    %3489 = vmatprep.subr.mxu0 %v3488
    %v3490 = vand.u32 %v1763, 4294901760
    %v3491 = vsub.f32 %v1763, %v3490
    %v3492 = vand.u32 %v3491, 4294901760
    %v3493 = vsub.f32 %v3491, %v3492
    %v3494 = vand.u32 %v3493, 4294901760
    %3495 = vmatpush2.msra.mxu0 %v3494
    %v3496 = vand.u32 %v1762, 4294901760
    %v3497 = vsub.f32 %v1762, %v3496
    %v3498 = vand.u32 %v3497, 4294901760
    %v3499 = vsub.f32 %v3497, %v3498
    %v3500 = vand.u32 %v3499, 4294901760
    %3501 = vmatprep.subr.mxu0 %v3500
    %v3502 = vand.u32 %v1761, 4294901760
    %v3503 = vsub.f32 %v1761, %v3502
    %v3504 = vand.u32 %v3503, 4294901760
    %v3505 = vsub.f32 %v3503, %v3504
    %v3506 = vand.u32 %v3505, 4294901760
    %3507 = vmatpush2.msra.mxu0 %v3506
    %v3508 = vand.u32 %v1760, 4294901760
    %v3509 = vsub.f32 %v1760, %v3508
    %v3510 = vand.u32 %v3509, 4294901760
    %v3511 = vsub.f32 %v3509, %v3510
    %v3512 = vand.u32 %v3511, 4294901760
    %3513 = vmatprep.subr.mxu0 %v3512
    %v3514 = vand.u32 %v1759, 4294901760
    %v3515 = vsub.f32 %v1759, %v3514
    %v3516 = vand.u32 %v3515, 4294901760
    %v3517 = vsub.f32 %v3515, %v3516
    %v3518 = vand.u32 %v3517, 4294901760
    %3519 = vmatpush2.msra.mxu0 %v3518
    %v3520 = vand.u32 %v1758, 4294901760
    %v3521 = vsub.f32 %v1758, %v3520
    %v3522 = vand.u32 %v3521, 4294901760
    %v3523 = vsub.f32 %v3521, %v3522
    %v3524 = vand.u32 %v3523, 4294901760
    %3525 = vmatprep.subr.mxu0 %v3524
    %v3526 = vand.u32 %v1757, 4294901760
    %v3527 = vsub.f32 %v1757, %v3526
    %v3528 = vand.u32 %v3527, 4294901760
    %v3529 = vsub.f32 %v3527, %v3528
    %v3530 = vand.u32 %v3529, 4294901760
    %3531 = vmatpush2.msra.mxu0 %v3530
    %v3532 = vand.u32 %v1756, 4294901760
    %v3533 = vsub.f32 %v1756, %v3532
    %v3534 = vand.u32 %v3533, 4294901760
    %v3535 = vsub.f32 %v3533, %v3534
    %v3536 = vand.u32 %v3535, 4294901760
    %3537 = vmatprep.subr.mxu0 %v3536
    %v3538 = vand.u32 %v1755, 4294901760
    %v3539 = vsub.f32 %v1755, %v3538
    %v3540 = vand.u32 %v3539, 4294901760
    %v3541 = vsub.f32 %v3539, %v3540
    %v3542 = vand.u32 %v3541, 4294901760
    %3543 = vmatpush2.msra.mxu0 %v3542
    %v3544 = vand.u32 %v1754, 4294901760
    %v3545 = vsub.f32 %v1754, %v3544
    %v3546 = vand.u32 %v3545, 4294901760
    %v3547 = vsub.f32 %v3545, %v3546
    %v3548 = vand.u32 %v3547, 4294901760
    %3549 = vmatprep.subr.mxu0 %v3548
    %v3550 = vand.u32 %v1753, 4294901760
    %v3551 = vsub.f32 %v1753, %v3550
    %v3552 = vand.u32 %v3551, 4294901760
    %v3553 = vsub.f32 %v3551, %v3552
    %v3554 = vand.u32 %v3553, 4294901760
    %3555 = vmatpush2.msra.mxu0 %v3554
    %v3556 = vand.u32 %v1752, 4294901760
    %v3557 = vsub.f32 %v1752, %v3556
    %v3558 = vand.u32 %v3557, 4294901760
    %v3559 = vsub.f32 %v3557, %v3558
    %v3560 = vand.u32 %v3559, 4294901760
    %3561 = vmatprep.subr.mxu0 %v3560
    %v3562 = vand.u32 %v1751, 4294901760
    %v3563 = vsub.f32 %v1751, %v3562
    %v3564 = vand.u32 %v3563, 4294901760
    %v3565 = vsub.f32 %v3563, %v3564
    %v3566 = vand.u32 %v3565, 4294901760
    %3567 = vmatpush2.msra.mxu0 %v3566
    %v3568 = vand.u32 %v1750, 4294901760
    %v3569 = vsub.f32 %v1750, %v3568
    %v3570 = vand.u32 %v3569, 4294901760
    %v3571 = vsub.f32 %v3569, %v3570
    %v3572 = vand.u32 %v3571, 4294901760
    %3573 = vmatprep.subr.mxu0 %v3572
    %v3574 = vand.u32 %v1749, 4294901760
    %v3575 = vsub.f32 %v1749, %v3574
    %v3576 = vand.u32 %v3575, 4294901760
    %v3577 = vsub.f32 %v3575, %v3576
    %v3578 = vand.u32 %v3577, 4294901760
    %3579 = vmatpush2.msra.mxu0 %v3578
    %v3580 = vand.u32 %v1748, 4294901760
    %v3581 = vsub.f32 %v1748, %v3580
    %v3582 = vand.u32 %v3581, 4294901760
    %v3583 = vsub.f32 %v3581, %v3582
    %v3584 = vand.u32 %v3583, 4294901760
    %3585 = vmatprep.subr.mxu0 %v3584
    %v3586 = vand.u32 %v1747, 4294901760
    %v3587 = vsub.f32 %v1747, %v3586
    %v3588 = vand.u32 %v3587, 4294901760
    %v3589 = vsub.f32 %v3587, %v3588
    %v3590 = vand.u32 %v3589, 4294901760
    %3591 = vmatpush2.msra.mxu0 %v3590
    %v3592 = vand.u32 %v1648, 4294901760
    %3593 = vmatprep.mubr.f32.mxu0 %v3592
    %v3594 = vand.u32 %v1645, 4294901760
    %3595 = vmatmul.mubr.f32.gmra.mxu0 %v3594
    %v3596 = vpop.f32.mrf.mxu0
    %v3597 = vadd.f32 %v3204, %v3596
    %v3598 = vpop.f32.mrf.mxu0
    %v3599 = vadd.f32 %v3206, %v3598
    %3600 = vdwg.mxu0
    %v3601 = vand.u32 %v1746, 4294901760
    %v3602 = vsub.f32 %v1746, %v3601
    %3603 = vmatprep.subr.mxu0 %v3602
    %v3604 = vand.u32 %v1745, 4294901760
    %v3605 = vsub.f32 %v1745, %v3604
    %3606 = vmatpush1.msra.mxu0 %v3605
    %v3607 = vand.u32 %v1744, 4294901760
    %v3608 = vsub.f32 %v1744, %v3607
    %3609 = vmatprep.subr.mxu0 %v3608
    %v3610 = vand.u32 %v1743, 4294901760
    %v3611 = vsub.f32 %v1743, %v3610
    %3612 = vmatpush1.msra.mxu0 %v3611
    %v3613 = vand.u32 %v1742, 4294901760
    %v3614 = vsub.f32 %v1742, %v3613
    %3615 = vmatprep.subr.mxu0 %v3614
    %v3616 = vand.u32 %v1741, 4294901760
    %v3617 = vsub.f32 %v1741, %v3616
    %3618 = vmatpush1.msra.mxu0 %v3617
    %v3619 = vand.u32 %v1740, 4294901760
    %v3620 = vsub.f32 %v1740, %v3619
    %3621 = vmatprep.subr.mxu0 %v3620
    %v3622 = vand.u32 %v1739, 4294901760
    %v3623 = vsub.f32 %v1739, %v3622
    %3624 = vmatpush1.msra.mxu0 %v3623
    %v3625 = vand.u32 %v1738, 4294901760
    %v3626 = vsub.f32 %v1738, %v3625
    %3627 = vmatprep.subr.mxu0 %v3626
    %v3628 = vand.u32 %v1737, 4294901760
    %v3629 = vsub.f32 %v1737, %v3628
    %3630 = vmatpush1.msra.mxu0 %v3629
    %v3631 = vand.u32 %v1736, 4294901760
    %v3632 = vsub.f32 %v1736, %v3631
    %3633 = vmatprep.subr.mxu0 %v3632
    %v3634 = vand.u32 %v1735, 4294901760
    %v3635 = vsub.f32 %v1735, %v3634
    %3636 = vmatpush1.msra.mxu0 %v3635
    %v3637 = vand.u32 %v1734, 4294901760
    %v3638 = vsub.f32 %v1734, %v3637
    %3639 = vmatprep.subr.mxu0 %v3638
    %v3640 = vand.u32 %v1733, 4294901760
    %v3641 = vsub.f32 %v1733, %v3640
    %3642 = vmatpush1.msra.mxu0 %v3641
    %v3643 = vand.u32 %v1732, 4294901760
    %v3644 = vsub.f32 %v1732, %v3643
    %3645 = vmatprep.subr.mxu0 %v3644
    %v3646 = vand.u32 %v1731, 4294901760
    %v3647 = vsub.f32 %v1731, %v3646
    %3648 = vmatpush1.msra.mxu0 %v3647
    %v3649 = vand.u32 %v1730, 4294901760
    %v3650 = vsub.f32 %v1730, %v3649
    %3651 = vmatprep.subr.mxu0 %v3650
    %v3652 = vand.u32 %v1729, 4294901760
    %v3653 = vsub.f32 %v1729, %v3652
    %3654 = vmatpush1.msra.mxu0 %v3653
    %v3655 = vand.u32 %v1728, 4294901760
    %v3656 = vsub.f32 %v1728, %v3655
    %3657 = vmatprep.subr.mxu0 %v3656
    %v3658 = vand.u32 %v1727, 4294901760
    %v3659 = vsub.f32 %v1727, %v3658
    %3660 = vmatpush1.msra.mxu0 %v3659
    %v3661 = vand.u32 %v1726, 4294901760
    %v3662 = vsub.f32 %v1726, %v3661
    %3663 = vmatprep.subr.mxu0 %v3662
    %v3664 = vand.u32 %v1725, 4294901760
    %v3665 = vsub.f32 %v1725, %v3664
    %3666 = vmatpush1.msra.mxu0 %v3665
    %v3667 = vand.u32 %v1724, 4294901760
    %v3668 = vsub.f32 %v1724, %v3667
    %3669 = vmatprep.subr.mxu0 %v3668
    %v3670 = vand.u32 %v1723, 4294901760
    %v3671 = vsub.f32 %v1723, %v3670
    %3672 = vmatpush1.msra.mxu0 %v3671
    %v3673 = vand.u32 %v1722, 4294901760
    %v3674 = vsub.f32 %v1722, %v3673
    %3675 = vmatprep.subr.mxu0 %v3674
    %v3676 = vand.u32 %v1721, 4294901760
    %v3677 = vsub.f32 %v1721, %v3676
    %3678 = vmatpush1.msra.mxu0 %v3677
    %v3679 = vand.u32 %v1720, 4294901760
    %v3680 = vsub.f32 %v1720, %v3679
    %3681 = vmatprep.subr.mxu0 %v3680
    %v3682 = vand.u32 %v1719, 4294901760
    %v3683 = vsub.f32 %v1719, %v3682
    %3684 = vmatpush1.msra.mxu0 %v3683
    %v3685 = vand.u32 %v1718, 4294901760
    %v3686 = vsub.f32 %v1718, %v3685
    %3687 = vmatprep.subr.mxu0 %v3686
    %v3688 = vand.u32 %v1717, 4294901760
    %v3689 = vsub.f32 %v1717, %v3688
    %3690 = vmatpush1.msra.mxu0 %v3689
    %v3691 = vand.u32 %v1716, 4294901760
    %v3692 = vsub.f32 %v1716, %v3691
    %3693 = vmatprep.subr.mxu0 %v3692
    %v3694 = vand.u32 %v1715, 4294901760
    %v3695 = vsub.f32 %v1715, %v3694
    %3696 = vmatpush1.msra.mxu0 %v3695
    %v3697 = vand.u32 %v1778, 4294901760
    %v3698 = vsub.f32 %v1778, %v3697
    %3699 = vmatprep.subr.mxu0 %v3698
    %v3700 = vand.u32 %v1777, 4294901760
    %v3701 = vsub.f32 %v1777, %v3700
    %3702 = vmatpush2.msra.mxu0 %v3701
    %v3703 = vand.u32 %v1776, 4294901760
    %v3704 = vsub.f32 %v1776, %v3703
    %3705 = vmatprep.subr.mxu0 %v3704
    %v3706 = vand.u32 %v1775, 4294901760
    %v3707 = vsub.f32 %v1775, %v3706
    %3708 = vmatpush2.msra.mxu0 %v3707
    %v3709 = vand.u32 %v1774, 4294901760
    %v3710 = vsub.f32 %v1774, %v3709
    %3711 = vmatprep.subr.mxu0 %v3710
    %v3712 = vand.u32 %v1773, 4294901760
    %v3713 = vsub.f32 %v1773, %v3712
    %3714 = vmatpush2.msra.mxu0 %v3713
    %v3715 = vand.u32 %v1772, 4294901760
    %v3716 = vsub.f32 %v1772, %v3715
    %3717 = vmatprep.subr.mxu0 %v3716
    %v3718 = vand.u32 %v1771, 4294901760
    %v3719 = vsub.f32 %v1771, %v3718
    %3720 = vmatpush2.msra.mxu0 %v3719
    %v3721 = vand.u32 %v1770, 4294901760
    %v3722 = vsub.f32 %v1770, %v3721
    %3723 = vmatprep.subr.mxu0 %v3722
    %v3724 = vand.u32 %v1769, 4294901760
    %v3725 = vsub.f32 %v1769, %v3724
    %3726 = vmatpush2.msra.mxu0 %v3725
    %v3727 = vand.u32 %v1768, 4294901760
    %v3728 = vsub.f32 %v1768, %v3727
    %3729 = vmatprep.subr.mxu0 %v3728
    %v3730 = vand.u32 %v1767, 4294901760
    %v3731 = vsub.f32 %v1767, %v3730
    %3732 = vmatpush2.msra.mxu0 %v3731
    %v3733 = vand.u32 %v1766, 4294901760
    %v3734 = vsub.f32 %v1766, %v3733
    %3735 = vmatprep.subr.mxu0 %v3734
    %v3736 = vand.u32 %v1765, 4294901760
    %v3737 = vsub.f32 %v1765, %v3736
    %3738 = vmatpush2.msra.mxu0 %v3737
    %v3739 = vand.u32 %v1764, 4294901760
    %v3740 = vsub.f32 %v1764, %v3739
    %3741 = vmatprep.subr.mxu0 %v3740
    %v3742 = vand.u32 %v1763, 4294901760
    %v3743 = vsub.f32 %v1763, %v3742
    %3744 = vmatpush2.msra.mxu0 %v3743
    %v3745 = vand.u32 %v1762, 4294901760
    %v3746 = vsub.f32 %v1762, %v3745
    %3747 = vmatprep.subr.mxu0 %v3746
    %v3748 = vand.u32 %v1761, 4294901760
    %v3749 = vsub.f32 %v1761, %v3748
    %3750 = vmatpush2.msra.mxu0 %v3749
    %v3751 = vand.u32 %v1760, 4294901760
    %v3752 = vsub.f32 %v1760, %v3751
    %3753 = vmatprep.subr.mxu0 %v3752
    %v3754 = vand.u32 %v1759, 4294901760
    %v3755 = vsub.f32 %v1759, %v3754
    %3756 = vmatpush2.msra.mxu0 %v3755
    %v3757 = vand.u32 %v1758, 4294901760
    %v3758 = vsub.f32 %v1758, %v3757
    %3759 = vmatprep.subr.mxu0 %v3758
    %v3760 = vand.u32 %v1757, 4294901760
    %v3761 = vsub.f32 %v1757, %v3760
    %3762 = vmatpush2.msra.mxu0 %v3761
    %v3763 = vand.u32 %v1756, 4294901760
    %v3764 = vsub.f32 %v1756, %v3763
    %3765 = vmatprep.subr.mxu0 %v3764
    %v3766 = vand.u32 %v1755, 4294901760
    %v3767 = vsub.f32 %v1755, %v3766
    %3768 = vmatpush2.msra.mxu0 %v3767
    %v3769 = vand.u32 %v1754, 4294901760
    %v3770 = vsub.f32 %v1754, %v3769
    %3771 = vmatprep.subr.mxu0 %v3770
    %v3772 = vand.u32 %v1753, 4294901760
    %v3773 = vsub.f32 %v1753, %v3772
    %3774 = vmatpush2.msra.mxu0 %v3773
    %v3775 = vand.u32 %v1752, 4294901760
    %v3776 = vsub.f32 %v1752, %v3775
    %3777 = vmatprep.subr.mxu0 %v3776
    %v3778 = vand.u32 %v1751, 4294901760
    %v3779 = vsub.f32 %v1751, %v3778
    %3780 = vmatpush2.msra.mxu0 %v3779
    %v3781 = vand.u32 %v1750, 4294901760
    %v3782 = vsub.f32 %v1750, %v3781
    %3783 = vmatprep.subr.mxu0 %v3782
    %v3784 = vand.u32 %v1749, 4294901760
    %v3785 = vsub.f32 %v1749, %v3784
    %3786 = vmatpush2.msra.mxu0 %v3785
    %v3787 = vand.u32 %v1748, 4294901760
    %v3788 = vsub.f32 %v1748, %v3787
    %3789 = vmatprep.subr.mxu0 %v3788
    %v3790 = vand.u32 %v1747, 4294901760
    %v3791 = vsub.f32 %v1747, %v3790
    %3792 = vmatpush2.msra.mxu0 %v3791
    %v3793 = vand.u32 %v1648, 4294901760
    %v3794 = vsub.f32 %v1648, %v3793
    %3795 = vmatprep.mubr.f32.mxu0 %v3794
    %v3796 = vand.u32 %v1645, 4294901760
    %v3797 = vsub.f32 %v1645, %v3796
    %3798 = vmatmul.mubr.f32.gmra.mxu0 %v3797
    %v3799 = vpop.f32.mrf.mxu0
    %v3800 = vadd.f32 %v3597, %v3799
    %v3801 = vpop.f32.mrf.mxu0
    %v3802 = vadd.f32 %v3599, %v3801
    %3803 = vdwg.mxu0
    %v3804 = vand.u32 %v1746, 4294901760
    %3805 = vmatprep.subr.mxu0 %v3804
    %v3806 = vand.u32 %v1745, 4294901760
    %3807 = vmatpush1.msra.mxu0 %v3806
    %v3808 = vand.u32 %v1744, 4294901760
    %3809 = vmatprep.subr.mxu0 %v3808
    %v3810 = vand.u32 %v1743, 4294901760
    %3811 = vmatpush1.msra.mxu0 %v3810
    %v3812 = vand.u32 %v1742, 4294901760
    %3813 = vmatprep.subr.mxu0 %v3812
    %v3814 = vand.u32 %v1741, 4294901760
    %3815 = vmatpush1.msra.mxu0 %v3814
    %v3816 = vand.u32 %v1740, 4294901760
    %3817 = vmatprep.subr.mxu0 %v3816
    %v3818 = vand.u32 %v1739, 4294901760
    %3819 = vmatpush1.msra.mxu0 %v3818
    %v3820 = vand.u32 %v1738, 4294901760
    %3821 = vmatprep.subr.mxu0 %v3820
    %v3822 = vand.u32 %v1737, 4294901760
    %3823 = vmatpush1.msra.mxu0 %v3822
    %v3824 = vand.u32 %v1736, 4294901760
    %3825 = vmatprep.subr.mxu0 %v3824
    %v3826 = vand.u32 %v1735, 4294901760
    %3827 = vmatpush1.msra.mxu0 %v3826
    %v3828 = vand.u32 %v1734, 4294901760
    %3829 = vmatprep.subr.mxu0 %v3828
    %v3830 = vand.u32 %v1733, 4294901760
    %3831 = vmatpush1.msra.mxu0 %v3830
    %v3832 = vand.u32 %v1732, 4294901760
    %3833 = vmatprep.subr.mxu0 %v3832
    %v3834 = vand.u32 %v1731, 4294901760
    %3835 = vmatpush1.msra.mxu0 %v3834
    %v3836 = vand.u32 %v1730, 4294901760
    %3837 = vmatprep.subr.mxu0 %v3836
    %v3838 = vand.u32 %v1729, 4294901760
    %3839 = vmatpush1.msra.mxu0 %v3838
    %v3840 = vand.u32 %v1728, 4294901760
    %3841 = vmatprep.subr.mxu0 %v3840
    %v3842 = vand.u32 %v1727, 4294901760
    %3843 = vmatpush1.msra.mxu0 %v3842
    %v3844 = vand.u32 %v1726, 4294901760
    %3845 = vmatprep.subr.mxu0 %v3844
    %v3846 = vand.u32 %v1725, 4294901760
    %3847 = vmatpush1.msra.mxu0 %v3846
    %v3848 = vand.u32 %v1724, 4294901760
    %3849 = vmatprep.subr.mxu0 %v3848
    %v3850 = vand.u32 %v1723, 4294901760
    %3851 = vmatpush1.msra.mxu0 %v3850
    %v3852 = vand.u32 %v1722, 4294901760
    %3853 = vmatprep.subr.mxu0 %v3852
    %v3854 = vand.u32 %v1721, 4294901760
    %3855 = vmatpush1.msra.mxu0 %v3854
    %v3856 = vand.u32 %v1720, 4294901760
    %3857 = vmatprep.subr.mxu0 %v3856
    %v3858 = vand.u32 %v1719, 4294901760
    %3859 = vmatpush1.msra.mxu0 %v3858
    %v3860 = vand.u32 %v1718, 4294901760
    %3861 = vmatprep.subr.mxu0 %v3860
    %v3862 = vand.u32 %v1717, 4294901760
    %3863 = vmatpush1.msra.mxu0 %v3862
    %v3864 = vand.u32 %v1716, 4294901760
    %3865 = vmatprep.subr.mxu0 %v3864
    %v3866 = vand.u32 %v1715, 4294901760
    %3867 = vmatpush1.msra.mxu0 %v3866
    %v3868 = vand.u32 %v1778, 4294901760
    %3869 = vmatprep.subr.mxu0 %v3868
    %v3870 = vand.u32 %v1777, 4294901760
    %3871 = vmatpush2.msra.mxu0 %v3870
    %v3872 = vand.u32 %v1776, 4294901760
    %3873 = vmatprep.subr.mxu0 %v3872
    %v3874 = vand.u32 %v1775, 4294901760
    %3875 = vmatpush2.msra.mxu0 %v3874
    %v3876 = vand.u32 %v1774, 4294901760
    %3877 = vmatprep.subr.mxu0 %v3876
    %v3878 = vand.u32 %v1773, 4294901760
    %3879 = vmatpush2.msra.mxu0 %v3878
    %v3880 = vand.u32 %v1772, 4294901760
    %3881 = vmatprep.subr.mxu0 %v3880
    %v3882 = vand.u32 %v1771, 4294901760
    %3883 = vmatpush2.msra.mxu0 %v3882
    %v3884 = vand.u32 %v1770, 4294901760
    %3885 = vmatprep.subr.mxu0 %v3884
    %v3886 = vand.u32 %v1769, 4294901760
    %3887 = vmatpush2.msra.mxu0 %v3886
    %v3888 = vand.u32 %v1768, 4294901760
    %3889 = vmatprep.subr.mxu0 %v3888
    %v3890 = vand.u32 %v1767, 4294901760
    %3891 = vmatpush2.msra.mxu0 %v3890
    %v3892 = vand.u32 %v1766, 4294901760
    %3893 = vmatprep.subr.mxu0 %v3892
    %v3894 = vand.u32 %v1765, 4294901760
    %3895 = vmatpush2.msra.mxu0 %v3894
    %v3896 = vand.u32 %v1764, 4294901760
    %3897 = vmatprep.subr.mxu0 %v3896
    %v3898 = vand.u32 %v1763, 4294901760
    %3899 = vmatpush2.msra.mxu0 %v3898
    %v3900 = vand.u32 %v1762, 4294901760
    %3901 = vmatprep.subr.mxu0 %v3900
    %v3902 = vand.u32 %v1761, 4294901760
    %3903 = vmatpush2.msra.mxu0 %v3902
    %v3904 = vand.u32 %v1760, 4294901760
    %3905 = vmatprep.subr.mxu0 %v3904
    %v3906 = vand.u32 %v1759, 4294901760
    %3907 = vmatpush2.msra.mxu0 %v3906
    %v3908 = vand.u32 %v1758, 4294901760
    %3909 = vmatprep.subr.mxu0 %v3908
    %v3910 = vand.u32 %v1757, 4294901760
    %3911 = vmatpush2.msra.mxu0 %v3910
    %v3912 = vand.u32 %v1756, 4294901760
    %3913 = vmatprep.subr.mxu0 %v3912
    %v3914 = vand.u32 %v1755, 4294901760
    %3915 = vmatpush2.msra.mxu0 %v3914
    %v3916 = vand.u32 %v1754, 4294901760
    %3917 = vmatprep.subr.mxu0 %v3916
    %v3918 = vand.u32 %v1753, 4294901760
    %3919 = vmatpush2.msra.mxu0 %v3918
    %v3920 = vand.u32 %v1752, 4294901760
    %3921 = vmatprep.subr.mxu0 %v3920
    %v3922 = vand.u32 %v1751, 4294901760
    %3923 = vmatpush2.msra.mxu0 %v3922
    %v3924 = vand.u32 %v1750, 4294901760
    %3925 = vmatprep.subr.mxu0 %v3924
    %v3926 = vand.u32 %v1749, 4294901760
    %3927 = vmatpush2.msra.mxu0 %v3926
    %v3928 = vand.u32 %v1748, 4294901760
    %3929 = vmatprep.subr.mxu0 %v3928
    %v3930 = vand.u32 %v1747, 4294901760
    %3931 = vmatpush2.msra.mxu0 %v3930
    %v3932 = vand.u32 %v1648, 4294901760
    %v3933 = vsub.f32 %v1648, %v3932
    %v3934 = vand.u32 %v3933, 4294901760
    %3935 = vmatprep.mubr.f32.mxu0 %v3934
    %v3936 = vand.u32 %v1645, 4294901760
    %v3937 = vsub.f32 %v1645, %v3936
    %v3938 = vand.u32 %v3937, 4294901760
    %3939 = vmatmul.mubr.f32.gmra.mxu0 %v3938
    %v3940 = vpop.f32.mrf.mxu0
    %v3941 = vadd.f32 %v3800, %v3940
    %v3942 = vpop.f32.mrf.mxu0
    %v3943 = vadd.f32 %v3802, %v3942
    %3944 = vdwg.mxu0
    %v3945 = vand.u32 %v1746, 4294901760
    %v3946 = vsub.f32 %v1746, %v3945
    %v3947 = vand.u32 %v3946, 4294901760
    %3948 = vmatprep.subr.mxu0 %v3947
    %v3949 = vand.u32 %v1745, 4294901760
    %v3950 = vsub.f32 %v1745, %v3949
    %v3951 = vand.u32 %v3950, 4294901760
    %3952 = vmatpush1.msra.mxu0 %v3951
    %v3953 = vand.u32 %v1744, 4294901760
    %v3954 = vsub.f32 %v1744, %v3953
    %v3955 = vand.u32 %v3954, 4294901760
    %3956 = vmatprep.subr.mxu0 %v3955
    %v3957 = vand.u32 %v1743, 4294901760
    %v3958 = vsub.f32 %v1743, %v3957
    %v3959 = vand.u32 %v3958, 4294901760
    %3960 = vmatpush1.msra.mxu0 %v3959
    %v3961 = vand.u32 %v1742, 4294901760
    %v3962 = vsub.f32 %v1742, %v3961
    %v3963 = vand.u32 %v3962, 4294901760
    %3964 = vmatprep.subr.mxu0 %v3963
    %v3965 = vand.u32 %v1741, 4294901760
    %v3966 = vsub.f32 %v1741, %v3965
    %v3967 = vand.u32 %v3966, 4294901760
    %3968 = vmatpush1.msra.mxu0 %v3967
    %v3969 = vand.u32 %v1740, 4294901760
    %v3970 = vsub.f32 %v1740, %v3969
    %v3971 = vand.u32 %v3970, 4294901760
    %3972 = vmatprep.subr.mxu0 %v3971
    %v3973 = vand.u32 %v1739, 4294901760
    %v3974 = vsub.f32 %v1739, %v3973
    %v3975 = vand.u32 %v3974, 4294901760
    %3976 = vmatpush1.msra.mxu0 %v3975
    %v3977 = vand.u32 %v1738, 4294901760
    %v3978 = vsub.f32 %v1738, %v3977
    %v3979 = vand.u32 %v3978, 4294901760
    %3980 = vmatprep.subr.mxu0 %v3979
    %v3981 = vand.u32 %v1737, 4294901760
    %v3982 = vsub.f32 %v1737, %v3981
    %v3983 = vand.u32 %v3982, 4294901760
    %3984 = vmatpush1.msra.mxu0 %v3983
    %v3985 = vand.u32 %v1736, 4294901760
    %v3986 = vsub.f32 %v1736, %v3985
    %v3987 = vand.u32 %v3986, 4294901760
    %3988 = vmatprep.subr.mxu0 %v3987
    %v3989 = vand.u32 %v1735, 4294901760
    %v3990 = vsub.f32 %v1735, %v3989
    %v3991 = vand.u32 %v3990, 4294901760
    %3992 = vmatpush1.msra.mxu0 %v3991
    %v3993 = vand.u32 %v1734, 4294901760
    %v3994 = vsub.f32 %v1734, %v3993
    %v3995 = vand.u32 %v3994, 4294901760
    %3996 = vmatprep.subr.mxu0 %v3995
    %v3997 = vand.u32 %v1733, 4294901760
    %v3998 = vsub.f32 %v1733, %v3997
    %v3999 = vand.u32 %v3998, 4294901760
    %4000 = vmatpush1.msra.mxu0 %v3999
    %v4001 = vand.u32 %v1732, 4294901760
    %v4002 = vsub.f32 %v1732, %v4001
    %v4003 = vand.u32 %v4002, 4294901760
    %4004 = vmatprep.subr.mxu0 %v4003
    %v4005 = vand.u32 %v1731, 4294901760
    %v4006 = vsub.f32 %v1731, %v4005
    %v4007 = vand.u32 %v4006, 4294901760
    %4008 = vmatpush1.msra.mxu0 %v4007
    %v4009 = vand.u32 %v1730, 4294901760
    %v4010 = vsub.f32 %v1730, %v4009
    %v4011 = vand.u32 %v4010, 4294901760
    %4012 = vmatprep.subr.mxu0 %v4011
    %v4013 = vand.u32 %v1729, 4294901760
    %v4014 = vsub.f32 %v1729, %v4013
    %v4015 = vand.u32 %v4014, 4294901760
    %4016 = vmatpush1.msra.mxu0 %v4015
    %v4017 = vand.u32 %v1728, 4294901760
    %v4018 = vsub.f32 %v1728, %v4017
    %v4019 = vand.u32 %v4018, 4294901760
    %4020 = vmatprep.subr.mxu0 %v4019
    %v4021 = vand.u32 %v1727, 4294901760
    %v4022 = vsub.f32 %v1727, %v4021
    %v4023 = vand.u32 %v4022, 4294901760
    %4024 = vmatpush1.msra.mxu0 %v4023
    %v4025 = vand.u32 %v1726, 4294901760
    %v4026 = vsub.f32 %v1726, %v4025
    %v4027 = vand.u32 %v4026, 4294901760
    %4028 = vmatprep.subr.mxu0 %v4027
    %v4029 = vand.u32 %v1725, 4294901760
    %v4030 = vsub.f32 %v1725, %v4029
    %v4031 = vand.u32 %v4030, 4294901760
    %4032 = vmatpush1.msra.mxu0 %v4031
    %v4033 = vand.u32 %v1724, 4294901760
    %v4034 = vsub.f32 %v1724, %v4033
    %v4035 = vand.u32 %v4034, 4294901760
    %4036 = vmatprep.subr.mxu0 %v4035
    %v4037 = vand.u32 %v1723, 4294901760
    %v4038 = vsub.f32 %v1723, %v4037
    %v4039 = vand.u32 %v4038, 4294901760
    %4040 = vmatpush1.msra.mxu0 %v4039
    %v4041 = vand.u32 %v1722, 4294901760
    %v4042 = vsub.f32 %v1722, %v4041
    %v4043 = vand.u32 %v4042, 4294901760
    %4044 = vmatprep.subr.mxu0 %v4043
    %v4045 = vand.u32 %v1721, 4294901760
    %v4046 = vsub.f32 %v1721, %v4045
    %v4047 = vand.u32 %v4046, 4294901760
    %4048 = vmatpush1.msra.mxu0 %v4047
    %v4049 = vand.u32 %v1720, 4294901760
    %v4050 = vsub.f32 %v1720, %v4049
    %v4051 = vand.u32 %v4050, 4294901760
    %4052 = vmatprep.subr.mxu0 %v4051
    %v4053 = vand.u32 %v1719, 4294901760
    %v4054 = vsub.f32 %v1719, %v4053
    %v4055 = vand.u32 %v4054, 4294901760
    %4056 = vmatpush1.msra.mxu0 %v4055
    %v4057 = vand.u32 %v1718, 4294901760
    %v4058 = vsub.f32 %v1718, %v4057
    %v4059 = vand.u32 %v4058, 4294901760
    %4060 = vmatprep.subr.mxu0 %v4059
    %v4061 = vand.u32 %v1717, 4294901760
    %v4062 = vsub.f32 %v1717, %v4061
    %v4063 = vand.u32 %v4062, 4294901760
    %4064 = vmatpush1.msra.mxu0 %v4063
    %v4065 = vand.u32 %v1716, 4294901760
    %v4066 = vsub.f32 %v1716, %v4065
    %v4067 = vand.u32 %v4066, 4294901760
    %4068 = vmatprep.subr.mxu0 %v4067
    %v4069 = vand.u32 %v1715, 4294901760
    %v4070 = vsub.f32 %v1715, %v4069
    %v4071 = vand.u32 %v4070, 4294901760
    %4072 = vmatpush1.msra.mxu0 %v4071
    %v4073 = vand.u32 %v1778, 4294901760
    %v4074 = vsub.f32 %v1778, %v4073
    %v4075 = vand.u32 %v4074, 4294901760
    %4076 = vmatprep.subr.mxu0 %v4075
    %v4077 = vand.u32 %v1777, 4294901760
    %v4078 = vsub.f32 %v1777, %v4077
    %v4079 = vand.u32 %v4078, 4294901760
    %4080 = vmatpush2.msra.mxu0 %v4079
    %v4081 = vand.u32 %v1776, 4294901760
    %v4082 = vsub.f32 %v1776, %v4081
    %v4083 = vand.u32 %v4082, 4294901760
    %4084 = vmatprep.subr.mxu0 %v4083
    %v4085 = vand.u32 %v1775, 4294901760
    %v4086 = vsub.f32 %v1775, %v4085
    %v4087 = vand.u32 %v4086, 4294901760
    %4088 = vmatpush2.msra.mxu0 %v4087
    %v4089 = vand.u32 %v1774, 4294901760
    %v4090 = vsub.f32 %v1774, %v4089
    %v4091 = vand.u32 %v4090, 4294901760
    %4092 = vmatprep.subr.mxu0 %v4091
    %v4093 = vand.u32 %v1773, 4294901760
    %v4094 = vsub.f32 %v1773, %v4093
    %v4095 = vand.u32 %v4094, 4294901760
    %4096 = vmatpush2.msra.mxu0 %v4095
    %v4097 = vand.u32 %v1772, 4294901760
    %v4098 = vsub.f32 %v1772, %v4097
    %v4099 = vand.u32 %v4098, 4294901760
    %4100 = vmatprep.subr.mxu0 %v4099
    %v4101 = vand.u32 %v1771, 4294901760
    %v4102 = vsub.f32 %v1771, %v4101
    %v4103 = vand.u32 %v4102, 4294901760
    %4104 = vmatpush2.msra.mxu0 %v4103
    %v4105 = vand.u32 %v1770, 4294901760
    %v4106 = vsub.f32 %v1770, %v4105
    %v4107 = vand.u32 %v4106, 4294901760
    %4108 = vmatprep.subr.mxu0 %v4107
    %v4109 = vand.u32 %v1769, 4294901760
    %v4110 = vsub.f32 %v1769, %v4109
    %v4111 = vand.u32 %v4110, 4294901760
    %4112 = vmatpush2.msra.mxu0 %v4111
    %v4113 = vand.u32 %v1768, 4294901760
    %v4114 = vsub.f32 %v1768, %v4113
    %v4115 = vand.u32 %v4114, 4294901760
    %4116 = vmatprep.subr.mxu0 %v4115
    %v4117 = vand.u32 %v1767, 4294901760
    %v4118 = vsub.f32 %v1767, %v4117
    %v4119 = vand.u32 %v4118, 4294901760
    %4120 = vmatpush2.msra.mxu0 %v4119
    %v4121 = vand.u32 %v1766, 4294901760
    %v4122 = vsub.f32 %v1766, %v4121
    %v4123 = vand.u32 %v4122, 4294901760
    %4124 = vmatprep.subr.mxu0 %v4123
    %v4125 = vand.u32 %v1765, 4294901760
    %v4126 = vsub.f32 %v1765, %v4125
    %v4127 = vand.u32 %v4126, 4294901760
    %4128 = vmatpush2.msra.mxu0 %v4127
    %v4129 = vand.u32 %v1764, 4294901760
    %v4130 = vsub.f32 %v1764, %v4129
    %v4131 = vand.u32 %v4130, 4294901760
    %4132 = vmatprep.subr.mxu0 %v4131
    %v4133 = vand.u32 %v1763, 4294901760
    %v4134 = vsub.f32 %v1763, %v4133
    %v4135 = vand.u32 %v4134, 4294901760
    %4136 = vmatpush2.msra.mxu0 %v4135
    %v4137 = vand.u32 %v1762, 4294901760
    %v4138 = vsub.f32 %v1762, %v4137
    %v4139 = vand.u32 %v4138, 4294901760
    %4140 = vmatprep.subr.mxu0 %v4139
    %v4141 = vand.u32 %v1761, 4294901760
    %v4142 = vsub.f32 %v1761, %v4141
    %v4143 = vand.u32 %v4142, 4294901760
    %4144 = vmatpush2.msra.mxu0 %v4143
    %v4145 = vand.u32 %v1760, 4294901760
    %v4146 = vsub.f32 %v1760, %v4145
    %v4147 = vand.u32 %v4146, 4294901760
    %4148 = vmatprep.subr.mxu0 %v4147
    %v4149 = vand.u32 %v1759, 4294901760
    %v4150 = vsub.f32 %v1759, %v4149
    %v4151 = vand.u32 %v4150, 4294901760
    %4152 = vmatpush2.msra.mxu0 %v4151
    %v4153 = vand.u32 %v1758, 4294901760
    %v4154 = vsub.f32 %v1758, %v4153
    %v4155 = vand.u32 %v4154, 4294901760
    %4156 = vmatprep.subr.mxu0 %v4155
    %v4157 = vand.u32 %v1757, 4294901760
    %v4158 = vsub.f32 %v1757, %v4157
    %v4159 = vand.u32 %v4158, 4294901760
    %4160 = vmatpush2.msra.mxu0 %v4159
    %v4161 = vand.u32 %v1756, 4294901760
    %v4162 = vsub.f32 %v1756, %v4161
    %v4163 = vand.u32 %v4162, 4294901760
    %4164 = vmatprep.subr.mxu0 %v4163
    %v4165 = vand.u32 %v1755, 4294901760
    %v4166 = vsub.f32 %v1755, %v4165
    %v4167 = vand.u32 %v4166, 4294901760
    %4168 = vmatpush2.msra.mxu0 %v4167
    %v4169 = vand.u32 %v1754, 4294901760
    %v4170 = vsub.f32 %v1754, %v4169
    %v4171 = vand.u32 %v4170, 4294901760
    %4172 = vmatprep.subr.mxu0 %v4171
    %v4173 = vand.u32 %v1753, 4294901760
    %v4174 = vsub.f32 %v1753, %v4173
    %v4175 = vand.u32 %v4174, 4294901760
    %4176 = vmatpush2.msra.mxu0 %v4175
    %v4177 = vand.u32 %v1752, 4294901760
    %v4178 = vsub.f32 %v1752, %v4177
    %v4179 = vand.u32 %v4178, 4294901760
    %4180 = vmatprep.subr.mxu0 %v4179
    %v4181 = vand.u32 %v1751, 4294901760
    %v4182 = vsub.f32 %v1751, %v4181
    %v4183 = vand.u32 %v4182, 4294901760
    %4184 = vmatpush2.msra.mxu0 %v4183
    %v4185 = vand.u32 %v1750, 4294901760
    %v4186 = vsub.f32 %v1750, %v4185
    %v4187 = vand.u32 %v4186, 4294901760
    %4188 = vmatprep.subr.mxu0 %v4187
    %v4189 = vand.u32 %v1749, 4294901760
    %v4190 = vsub.f32 %v1749, %v4189
    %v4191 = vand.u32 %v4190, 4294901760
    %4192 = vmatpush2.msra.mxu0 %v4191
    %v4193 = vand.u32 %v1748, 4294901760
    %v4194 = vsub.f32 %v1748, %v4193
    %v4195 = vand.u32 %v4194, 4294901760
    %4196 = vmatprep.subr.mxu0 %v4195
    %v4197 = vand.u32 %v1747, 4294901760
    %v4198 = vsub.f32 %v1747, %v4197
    %v4199 = vand.u32 %v4198, 4294901760
    %4200 = vmatpush2.msra.mxu0 %v4199
    %v4201 = vand.u32 %v1648, 4294901760
    %4202 = vmatprep.mubr.f32.mxu0 %v4201
    %v4203 = vand.u32 %v1645, 4294901760
    %4204 = vmatmul.mubr.f32.gmra.mxu0 %v4203
    %v4205 = vpop.f32.mrf.mxu0
    %v4206 = vadd.f32 %v3941, %v4205
    %v4207 = vpop.f32.mrf.mxu0
    %v4208 = vadd.f32 %v3943, %v4207
    %4209 = vdwg.mxu0
    %v4210 = vand.u32 %v1746, 4294901760
    %4211 = vmatprep.subr.mxu0 %v4210
    %v4212 = vand.u32 %v1745, 4294901760
    %4213 = vmatpush1.msra.mxu0 %v4212
    %v4214 = vand.u32 %v1744, 4294901760
    %4215 = vmatprep.subr.mxu0 %v4214
    %v4216 = vand.u32 %v1743, 4294901760
    %4217 = vmatpush1.msra.mxu0 %v4216
    %v4218 = vand.u32 %v1742, 4294901760
    %4219 = vmatprep.subr.mxu0 %v4218
    %v4220 = vand.u32 %v1741, 4294901760
    %4221 = vmatpush1.msra.mxu0 %v4220
    %v4222 = vand.u32 %v1740, 4294901760
    %4223 = vmatprep.subr.mxu0 %v4222
    %v4224 = vand.u32 %v1739, 4294901760
    %4225 = vmatpush1.msra.mxu0 %v4224
    %v4226 = vand.u32 %v1738, 4294901760
    %4227 = vmatprep.subr.mxu0 %v4226
    %v4228 = vand.u32 %v1737, 4294901760
    %4229 = vmatpush1.msra.mxu0 %v4228
    %v4230 = vand.u32 %v1736, 4294901760
    %4231 = vmatprep.subr.mxu0 %v4230
    %v4232 = vand.u32 %v1735, 4294901760
    %4233 = vmatpush1.msra.mxu0 %v4232
    %v4234 = vand.u32 %v1734, 4294901760
    %4235 = vmatprep.subr.mxu0 %v4234
    %v4236 = vand.u32 %v1733, 4294901760
    %4237 = vmatpush1.msra.mxu0 %v4236
    %v4238 = vand.u32 %v1732, 4294901760
    %4239 = vmatprep.subr.mxu0 %v4238
    %v4240 = vand.u32 %v1731, 4294901760
    %4241 = vmatpush1.msra.mxu0 %v4240
    %v4242 = vand.u32 %v1730, 4294901760
    %4243 = vmatprep.subr.mxu0 %v4242
    %v4244 = vand.u32 %v1729, 4294901760
    %4245 = vmatpush1.msra.mxu0 %v4244
    %v4246 = vand.u32 %v1728, 4294901760
    %4247 = vmatprep.subr.mxu0 %v4246
    %v4248 = vand.u32 %v1727, 4294901760
    %4249 = vmatpush1.msra.mxu0 %v4248
    %v4250 = vand.u32 %v1726, 4294901760
    %4251 = vmatprep.subr.mxu0 %v4250
    %v4252 = vand.u32 %v1725, 4294901760
    %4253 = vmatpush1.msra.mxu0 %v4252
    %v4254 = vand.u32 %v1724, 4294901760
    %4255 = vmatprep.subr.mxu0 %v4254
    %v4256 = vand.u32 %v1723, 4294901760
    %4257 = vmatpush1.msra.mxu0 %v4256
    %v4258 = vand.u32 %v1722, 4294901760
    %4259 = vmatprep.subr.mxu0 %v4258
    %v4260 = vand.u32 %v1721, 4294901760
    %4261 = vmatpush1.msra.mxu0 %v4260
    %v4262 = vand.u32 %v1720, 4294901760
    %4263 = vmatprep.subr.mxu0 %v4262
    %v4264 = vand.u32 %v1719, 4294901760
    %4265 = vmatpush1.msra.mxu0 %v4264
    %v4266 = vand.u32 %v1718, 4294901760
    %4267 = vmatprep.subr.mxu0 %v4266
    %v4268 = vand.u32 %v1717, 4294901760
    %4269 = vmatpush1.msra.mxu0 %v4268
    %v4270 = vand.u32 %v1716, 4294901760
    %4271 = vmatprep.subr.mxu0 %v4270
    %v4272 = vand.u32 %v1715, 4294901760
    %4273 = vmatpush1.msra.mxu0 %v4272
    %v4274 = vand.u32 %v1778, 4294901760
    %4275 = vmatprep.subr.mxu0 %v4274
    %v4276 = vand.u32 %v1777, 4294901760
    %4277 = vmatpush2.msra.mxu0 %v4276
    %v4278 = vand.u32 %v1776, 4294901760
    %4279 = vmatprep.subr.mxu0 %v4278
    %v4280 = vand.u32 %v1775, 4294901760
    %4281 = vmatpush2.msra.mxu0 %v4280
    %v4282 = vand.u32 %v1774, 4294901760
    %4283 = vmatprep.subr.mxu0 %v4282
    %v4284 = vand.u32 %v1773, 4294901760
    %4285 = vmatpush2.msra.mxu0 %v4284
    %v4286 = vand.u32 %v1772, 4294901760
    %4287 = vmatprep.subr.mxu0 %v4286
    %v4288 = vand.u32 %v1771, 4294901760
    %4289 = vmatpush2.msra.mxu0 %v4288
    %v4290 = vand.u32 %v1770, 4294901760
    %4291 = vmatprep.subr.mxu0 %v4290
    %v4292 = vand.u32 %v1769, 4294901760
    %4293 = vmatpush2.msra.mxu0 %v4292
    %v4294 = vand.u32 %v1768, 4294901760
    %4295 = vmatprep.subr.mxu0 %v4294
    %v4296 = vand.u32 %v1767, 4294901760
    %4297 = vmatpush2.msra.mxu0 %v4296
    %v4298 = vand.u32 %v1766, 4294901760
    %4299 = vmatprep.subr.mxu0 %v4298
    %v4300 = vand.u32 %v1765, 4294901760
    %4301 = vmatpush2.msra.mxu0 %v4300
    %v4302 = vand.u32 %v1764, 4294901760
    %4303 = vmatprep.subr.mxu0 %v4302
    %v4304 = vand.u32 %v1763, 4294901760
    %4305 = vmatpush2.msra.mxu0 %v4304
    %v4306 = vand.u32 %v1762, 4294901760
    %4307 = vmatprep.subr.mxu0 %v4306
    %v4308 = vand.u32 %v1761, 4294901760
    %4309 = vmatpush2.msra.mxu0 %v4308
    %v4310 = vand.u32 %v1760, 4294901760
    %4311 = vmatprep.subr.mxu0 %v4310
    %v4312 = vand.u32 %v1759, 4294901760
    %4313 = vmatpush2.msra.mxu0 %v4312
    %v4314 = vand.u32 %v1758, 4294901760
    %4315 = vmatprep.subr.mxu0 %v4314
    %v4316 = vand.u32 %v1757, 4294901760
    %4317 = vmatpush2.msra.mxu0 %v4316
    %v4318 = vand.u32 %v1756, 4294901760
    %4319 = vmatprep.subr.mxu0 %v4318
    %v4320 = vand.u32 %v1755, 4294901760
    %4321 = vmatpush2.msra.mxu0 %v4320
    %v4322 = vand.u32 %v1754, 4294901760
    %4323 = vmatprep.subr.mxu0 %v4322
    %v4324 = vand.u32 %v1753, 4294901760
    %4325 = vmatpush2.msra.mxu0 %v4324
    %v4326 = vand.u32 %v1752, 4294901760
    %4327 = vmatprep.subr.mxu0 %v4326
    %v4328 = vand.u32 %v1751, 4294901760
    %4329 = vmatpush2.msra.mxu0 %v4328
    %v4330 = vand.u32 %v1750, 4294901760
    %4331 = vmatprep.subr.mxu0 %v4330
    %v4332 = vand.u32 %v1749, 4294901760
    %4333 = vmatpush2.msra.mxu0 %v4332
    %v4334 = vand.u32 %v1748, 4294901760
    %4335 = vmatprep.subr.mxu0 %v4334
    %v4336 = vand.u32 %v1747, 4294901760
    %4337 = vmatpush2.msra.mxu0 %v4336
    %v4338 = vand.u32 %v1648, 4294901760
    %4339 = vmatprep.mubr.f32.mxu0 %v4338
    %v4340 = vand.u32 %v1645, 4294901760
    %4341 = vmatmul.mubr.f32.gmra.mxu0 %v4340
    %v4342 = vpop.f32.mrf.mxu0
    %v4343 = vadd.f32 %v4206, %v4342
    %v4344 = vpop.f32.mrf.mxu0
    %v4345 = vadd.f32 %v4208, %v4344
    %4346 = vdwg.mxu0
    %v4347 = vxor.u32 %v4343, 2147483648
    %v4348 = vxor.u32 %v4345, 2147483648
    %v4349 = vmul.f32 %v4347, 1.442695
    %v4350 = vpow.pop %v4349
    %v4351 = vmul.f32 %v4348, 1.442695
    %v4352 = vpow.pop %v4351
    %v4353 = vadd.f32 %v4350, 1.0
    %v4354 = vadd.f32 %v4352, 1.0
    %v4355 = vrcp.pop %v4353
    %v4356 = vmul.f32 1.0, %v4355
    %v4357 = vrcp.pop %v4354
    %v4358 = vmul.f32 1.0, %v4357
    %v4361 = vcombine.low %v4356, %v4358
    %v4363 = vunpack.c.l.s4 1966171168
    %v4364 = vunpack.c.0.s8 %v4363
    %v4365 = vlaneseq
    %v4366 = vshrl.u32 %v4365, 7
    %v4367 = vsub.s32 %v4364, %v4366
    %v4368 = vrot.slane %v4361, %v4367
    %v4369 = vcombine.high %v4368, %v4368
    %v4371 = vunpack.c.l.s4 1966171168
    %v4372 = vunpack.c.0.s8 %v4371
    %v4373 = vlaneseq
    %v4374 = vshrl.u32 %v4373, 7
    %v4375 = vsub.s32 %v4372, %v4374
    %v4376 = vrot.slane %v4368, %v4375
    %v4378 = vunpack.c.l.s4 1966171168
    %v4379 = vunpack.c.0.s8 %v4378
    %v4380 = vlaneseq
    %v4381 = vshrl.u32 %v4380, 7
    %v4382 = vsub.s32 %v4379, %v4381
    %v4383 = vrot.slane %v4369, %v4382
    %v4384 = vcombine.high %v4376, %v4376
    %v4385 = vcombine.high %v4383, %v4383
    %v4386 = vlaneseq
    %v4387 = vshrl.u32 %v4386, 7
    %v4388 = vsub.s32 0, %v4387
    %v4389 = vrot.slane %v4376, %v4388
    %v4390 = vlaneseq
    %v4391 = vshrl.u32 %v4390, 7
    %v4392 = vsub.s32 1, %v4391
    %v4393 = vrot.slane %v4376, %v4392
    %v4394 = vlaneseq
    %v4395 = vshrl.u32 %v4394, 7
    %v4396 = vsub.s32 0, %v4395
    %v4397 = vrot.slane %v4383, %v4396
    %v4398 = vlaneseq
    %v4399 = vshrl.u32 %v4398, 7
    %v4400 = vsub.s32 1, %v4399
    %v4401 = vrot.slane %v4383, %v4400
    %v4402 = vlaneseq
    %v4403 = vshrl.u32 %v4402, 7
    %v4404 = vsub.s32 0, %v4403
    %v4405 = vrot.slane %v4384, %v4404
    %v4406 = vlaneseq
    %v4407 = vshrl.u32 %v4406, 7
    %v4408 = vsub.s32 1, %v4407
    %v4409 = vrot.slane %v4384, %v4408
    %v4410 = vlaneseq
    %v4411 = vshrl.u32 %v4410, 7
    %v4412 = vsub.s32 0, %v4411
    %v4413 = vrot.slane %v4385, %v4412
    %v4414 = vlaneseq
    %v4415 = vshrl.u32 %v4414, 7
    %v4416 = vsub.s32 1, %v4415
    %v4417 = vrot.slane %v4385, %v4416
    %v4426 = vmul.f32 %v1434, %v4389
    %v4427 = vmul.f32 %v1435, %v4393
    %v4428 = vmul.f32 %v1436, %v4389
    %v4429 = vmul.f32 %v1437, %v4393
    %v4430 = vmul.f32 %v1438, %v4389
    %v4431 = vmul.f32 %v1439, %v4393
    %v4432 = vmul.f32 %v1440, %v4389
    %v4433 = vmul.f32 %v1441, %v4393
    %v4434 = vmul.f32 %v1442, %v4397
    %v4435 = vmul.f32 %v1443, %v4401
    %v4436 = vmul.f32 %v1444, %v4397
    %v4437 = vmul.f32 %v1445, %v4401
    %v4438 = vmul.f32 %v1446, %v4397
    %v4439 = vmul.f32 %v1447, %v4401
    %v4440 = vmul.f32 %v1448, %v4397
    %v4441 = vmul.f32 %v1449, %v4401
    %v4442 = vmul.f32 %v1450, %v4405
    %v4443 = vmul.f32 %v1451, %v4409
    %v4444 = vmul.f32 %v1452, %v4405
    %v4445 = vmul.f32 %v1453, %v4409
    %v4446 = vmul.f32 %v1454, %v4405
    %v4447 = vmul.f32 %v1455, %v4409
    %v4448 = vmul.f32 %v1456, %v4405
    %v4449 = vmul.f32 %v1457, %v4409
    %v4450 = vmul.f32 %v1458, %v4413
    %v4451 = vmul.f32 %v1459, %v4417
    %v4452 = vmul.f32 %v1460, %v4413
    %v4453 = vmul.f32 %v1461, %v4417
    %v4454 = vmul.f32 %v1462, %v4413
    %v4455 = vmul.f32 %v1463, %v4417
    %v4456 = vmul.f32 %v1464, %v4413
    %v4457 = vmul.f32 %v1465, %v4417
    %4458 = vst [vmem:[#allocation7] sm:$0xff] %v4426
    %4459 = vst [vmem:[#allocation7 + $0x8] sm:$0xff] %v4427
    %4460 = vst [vmem:[#allocation7 + $0x10] sm:$0xff] %v4428
    %4461 = vst [vmem:[#allocation7 + $0x18] sm:$0xff] %v4429
    %4462 = vst [vmem:[#allocation7 + $0x20] sm:$0xff] %v4430
    %4463 = vst [vmem:[#allocation7 + $0x28] sm:$0xff] %v4431
    %4464 = vst [vmem:[#allocation7 + $0x30] sm:$0xff] %v4432
    %4465 = vst [vmem:[#allocation7 + $0x38] sm:$0xff] %v4433
    %4466 = vst [vmem:[#allocation7 + $0x40] sm:$0xff] %v4434
    %4467 = vst [vmem:[#allocation7 + $0x48] sm:$0xff] %v4435
    %4468 = vst [vmem:[#allocation7 + $0x50] sm:$0xff] %v4436
    %4469 = vst [vmem:[#allocation7 + $0x58] sm:$0xff] %v4437
    %4470 = vst [vmem:[#allocation7 + $0x60] sm:$0xff] %v4438
    %4471 = vst [vmem:[#allocation7 + $0x68] sm:$0xff] %v4439
    %4472 = vst [vmem:[#allocation7 + $0x70] sm:$0xff] %v4440
    %4473 = vst [vmem:[#allocation7 + $0x78] sm:$0xff] %v4441
    %4474 = vst [vmem:[#allocation7 + $0x80] sm:$0xff] %v4442
    %4475 = vst [vmem:[#allocation7 + $0x88] sm:$0xff] %v4443
    %4476 = vst [vmem:[#allocation7 + $0x90] sm:$0xff] %v4444
    %4477 = vst [vmem:[#allocation7 + $0x98] sm:$0xff] %v4445
    %4478 = vst [vmem:[#allocation7 + $0xa0] sm:$0xff] %v4446
    %4479 = vst [vmem:[#allocation7 + $0xa8] sm:$0xff] %v4447
    %4480 = vst [vmem:[#allocation7 + $0xb0] sm:$0xff] %v4448
    %4481 = vst [vmem:[#allocation7 + $0xb8] sm:$0xff] %v4449
    %4482 = vst [vmem:[#allocation7 + $0xc0] sm:$0xff] %v4450
    %4483 = vst [vmem:[#allocation7 + $0xc8] sm:$0xff] %v4451
    %4484 = vst [vmem:[#allocation7 + $0xd0] sm:$0xff] %v4452
    %4485 = vst [vmem:[#allocation7 + $0xd8] sm:$0xff] %v4453
    %4486 = vst [vmem:[#allocation7 + $0xe0] sm:$0xff] %v4454
    %4487 = vst [vmem:[#allocation7 + $0xe8] sm:$0xff] %v4455
    %4488 = vst [vmem:[#allocation7 + $0xf0] sm:$0xff] %v4456
    %4489 = vst [vmem:[#allocation7 + $0xf8] sm:$0xff] %v4457
    // Predicated region
    $region26: #{tpu_custom_call.1} parent=1 // pred_check
      _
    $region27: #{tpu_custom_call.1} parent=1 // pred_check_branch
      %4491 = sbr.rel (0) target = $region29
    $region28: #{tpu_custom_call.1} parent=1 // pred_region
      %s4493 = ssub.s32 4096, 4096
      %4494 = vsyncadd [#allocation4], %s4493
      %s4495 = sshll.u32 [#allocation7], 4
      %s4496 = int_to_ptr.vmem [resolvable:$true] %s4495
      %4501 = dma.vmem_to_hbm [thread:$0]  %s4496, 4096, %s4, [#allocation4], 256, 256, 16
    $region29: #{tpu_custom_call.1} parent=1 // pred_fallthru
      _
    // Predicated region
    $region30: #{tpu_custom_call.1} parent=1 // pred_check
      _
    $region31: #{tpu_custom_call.1} parent=1 // pred_check_branch
      %4503 = sbr.rel (0) target = $region33
    $region32: #{tpu_custom_call.1} parent=1 // pred_region
      %4504 = dma.done [#allocation4], 4096
    $region33: #{tpu_custom_call.1} parent=1 // pred_fallthru
      _
    %4505 = vsyncpa [#allocation3], 1
    %4506 = vsyncpa [#allocation6], 1
    %4507 = vsyncpa [#allocation4], 1

</llo_original>
